<compile_context>
chip_gen: v7x
topology: tpu7x:2x2x1
jax: 0.10.0
libtpu: 0.0.40
codegen_flags: <defaults>
</compile_context>

<pallas_src>
import math

import jax
import jax.numpy as jnp
from jax import lax
from jax.experimental import pallas as pl
from jax.experimental.pallas import tpu as pltpu

# ---- small synthetic config -------------------------------------------------
B = 2              # batch
D = 8              # backbone tokens per image
C_IN = 64          # backbone feature dim (num_features)
C = C_IN // 2      # MEFARG out_channels == Head in_channels (32)
N = 27             # num_main_classes
C2 = C // 2        # cross-attention q/k dim (16)
ND = N * D         # 216
EPS = 1e-5
_INV_D = 1.0 / D


# =============================================================================
# Single fused kernel: global LinearBlock -> 27 class LinearBlocks -> GEM.FAM
# -> GEM.ARM + edge_proj + eval-BN2d + token mean.   Grid = (B,).
# =============================================================================
def _mefarg_kernel(x_ref, wg_ref, bg_ref, wc_ref, bc_ref,
                   wfq_ref, bfq_ref, wfk_ref, bfk_ref, wfv_ref, bfv_ref,
                   waq_ref, baq_ref, wak_ref, bak_ref, wav_ref, bav_ref,
                   seg_ref, segT_ref, bns_ref, bnt_ref,
                   fv_ref, fe_ref,
                   fu_scr, va_scr, art_scr):
    f32 = jnp.float32

    def mm(a, b):
        return jnp.dot(a, b, preferred_element_type=f32)

    def mm_nt(a, b):
        # a @ b.T without materializing a transposed copy of b.
        return lax.dot_general(a, b, (((1,), (1,)), ((), ())),
                               preferred_element_type=f32)

    # 1) global LinearBlock (fc + folded eval-BN + ReLU): (D, C_IN) -> (D, C)
    xg = jnp.maximum(mm(x_ref[...], wg_ref[...]) + bg_ref[...], 0.0)

    # 2) all 27 class LinearBlocks as ONE lane-dense matmul: (D, C) @ (C, N*C)
    #    bias + ReLU done on the lane-dense (D, N*C) slab before re-layout.
    fu_all = jnp.maximum(mm(xg, wc_ref[...]) + bc_ref[...], 0.0)      # (D, N*C)
    # Re-layout (D, N*C) -> (N*D, C) with static, sublane-aligned stores.
    for n in range(N):
        fu_scr[n * D:(n + 1) * D, :] = fu_all[:, n * C:(n + 1) * C]
    f_u = fu_scr[...]                                                 # (N*D, C)

    # f_v = mean over tokens per class (block-sum matmul * 1/D)
    fv_ref[...] = mm(segT_ref[...], f_u) * _INV_D                     # (N, C)

    # 3) GEM.FAM: K,V from the global feature once per batch; Q for all 27
    #    classes in one matmul (softmax scale pre-folded into wfq/bfq).
    q_f = mm(f_u, wfq_ref[...]) + bfq_ref[...]                        # (N*D, C2)
    k_f = mm(xg, wfk_ref[...]) + bfk_ref[...]                         # (D, C2)
    v_f = mm(xg, wfv_ref[...]) + bfv_ref[...]                         # (D, C)
    d_f = mm_nt(q_f, k_f)                                             # (N*D, D)
    d_f = d_f - jnp.max(d_f, axis=-1, keepdims=True)
    p_f = jnp.exp(d_f)
    attn_f = p_f * pl.reciprocal(jnp.sum(p_f, axis=-1, keepdims=True),
                                 approx=True)
    feat = mm(attn_f, v_f)                                            # (N*D, C)

    # 4) GEM.ARM, fully batched over all N*N (i, j) edges.
    #    Scores are built TRANSPOSED (rows = key tokens, cols = query tokens)
    #    so per-class extractions are aligned sublane slices.
    q_a = mm(feat, waq_ref[...]) + baq_ref[...]                       # (N*D, C2)
    k_a = mm(feat, wak_ref[...]) + bak_ref[...]                       # (N*D, C2)
    va_scr[...] = mm(feat, wav_ref[...]) + bav_ref[...]               # (N*D, C) edge_proj folded

    dots_t = mm_nt(k_a, q_a)                                          # (keys N*D, queries N*D)
    # Shift by the per-query global key-max: mathematically identical to the
    # per-segment softmax (shift invariance) and overflow-safe; seg_sum is
    # floored so a fully-underflowed segment yields 0 instead of NaN.
    cmax = jnp.max(dots_t, axis=0, keepdims=True)                     # (1, N*D)
    p = jnp.exp(dots_t - cmax)                                        # lane-dense exp
    seg_sum = mm(segT_ref[...], p)                                    # (N, N*D) sum over keys per class i
    inv = pl.reciprocal(jnp.maximum(seg_sum, 1e-30), approx=True)     # (N, N*D)
    attn_t = p * mm(seg_ref[...], inv)                                # (N*D, N*D) segmented softmax
    # Mean over query tokens per query-class j (reassociated ahead of values).
    art_scr[...] = mm(attn_t, seg_ref[...]) * _INV_D                  # (N*D keys, N classes j)

    # Per key-class i: contract the D key tokens against the (folded) values,
    # apply eval-BN2d affine, write one aligned (N, C) tile of f_e.
    @pl.loop(0, N)
    def _(i):
        off = pl.multiple_of(i * D, D)
        a_i = art_scr[pl.ds(off, D), :]                               # (D, N)
        v_i = va_scr[pl.ds(off, D), :]                                # (D, C)
        e_i = lax.dot_general(a_i, v_i, (((0,), (0,)), ((), ())),
                              preferred_element_type=f32)             # (N, C)
        fe_ref[i] = e_i * bns_ref[i] + bnt_ref[i]


# =============================================================================
# Wrapper: fold params (bias+BN into weights, edge_proj into ARM value proj,
# softmax scale into query weights) and launch the fused kernel.
# =============================================================================
def mefarg_forward(x_tokens, p):
    scale = float(C2) ** -0.5

    # --- global LinearBlock: fold eval-BN affine into fc ---------------------
    wg = p["gw"] * p["gs"][None, :]                                   # (C_IN, C)
    bg = (p["gb"] * p["gs"] + p["gt"])[None, :]                       # (1, C)

    # --- 27 class LinearBlocks: fold BN, concat along the output dim ---------
    cwf = p["cw"] * p["cs"][:, None, :]                               # (N, C, C)
    cbf = p["cb"] * p["cs"] + p["ct"]                                 # (N, C)
    wc = jnp.transpose(cwf, (1, 0, 2)).reshape(C, N * C)              # (C, N*C)
    bc = cbf.reshape(1, N * C)

    # --- FAM: softmax scale folded into the query projection -----------------
    wfq = p["fam_wq"] * scale
    bfq = p["fam_bq"] * scale
    wfk, bfk = p["fam_wk"], p["fam_bk"]
    wfv, bfv = p["fam_wv"], p["fam_bv"]

    # --- ARM: scale into query proj; edge_proj folded into the value proj ----
    waq = p["arm_wq"] * scale
    baq = p["arm_bq"] * scale
    wak, bak = p["arm_wk"], p["arm_bk"]
    wav = p["arm_wv"] @ p["ew"]                                       # Wv @ We
    bav = p["arm_bv"] @ p["ew"] + p["eb"]                             # bv@We + be

    # block-selector (segment) maps: row r belongs to class r // D
    seg = jnp.repeat(jnp.eye(N, dtype=jnp.float32), D, axis=0)        # (N*D, N)
    segT = seg.T                                                      # (N, N*D)

    # eval-BN2d affine over the N*N edge channels, laid out (i, j, C)
    bns = jnp.broadcast_to(p["bn2_s"].reshape(N, N)[:, :, None],
                           (N, N, C)).astype(jnp.float32)
    bnt = jnp.broadcast_to(p["bn2_t"].reshape(N, N)[:, :, None],
                           (N, N, C)).astype(jnp.float32)

    def fixed(shape):
        nd = len(shape)
        return pl.BlockSpec(shape, lambda b, _n=nd: (0,) * _n)

    f_v, f_e4 = pl.pallas_call(
        _mefarg_kernel,
        out_shape=(jax.ShapeDtypeStruct((B, N, C), jnp.float32),
                   jax.ShapeDtypeStruct((B, N, N, C), jnp.float32)),
        grid=(B,),
        in_specs=[
            pl.BlockSpec((None, D, C_IN), lambda b: (b, 0, 0)),       # tokens
            fixed((C_IN, C)), fixed((1, C)),                          # global linear
            fixed((C, N * C)), fixed((1, N * C)),                     # class linears
            fixed((C, C2)), fixed((1, C2)),                           # FAM q (scaled)
            fixed((C, C2)), fixed((1, C2)),                           # FAM k
            fixed((C, C)), fixed((1, C)),                             # FAM v
            fixed((C, C2)), fixed((1, C2)),                           # ARM q (scaled)
            fixed((C, C2)), fixed((1, C2)),                           # ARM k
            fixed((C, C)), fixed((1, C)),                             # ARM v @ We
            fixed((N * D, N)), fixed((N, N * D)),                     # segment maps
            fixed((N, N, C)), fixed((N, N, C)),                       # BN2d affine
        ],
        out_specs=(
            pl.BlockSpec((None, N, C), lambda b: (b, 0, 0)),          # f_v
            pl.BlockSpec((None, N, N, C), lambda b: (b, 0, 0, 0)),    # f_e (i, j, C)
        ),
        scratch_shapes=[pltpu.VMEM((N * D, C), jnp.float32),          # f_u
                        pltpu.VMEM((N * D, C), jnp.float32),          # ARM values
                        pltpu.VMEM((N * D, N), jnp.float32)],         # query-reduced attn
        compiler_params=pltpu.CompilerParams(
            dimension_semantics=("parallel",)),
        cost_estimate=pl.CostEstimate(flops=24_000_000,
                                      transcendentals=100_000,
                                      bytes_accessed=600_000),
    )(x_tokens, wg, bg, wc, bc, wfq, bfq, wfk, bfk, wfv, bfv,
      waq, baq, wak, bak, wav, bav, seg, segT, bns, bnt)

    return f_v, f_e4.reshape(B, N * N, C)


# =============================================================================
# Deterministic synthetic parameters + pure-JAX reference (unfolded, matching
# the PyTorch module) for validation.
# =============================================================================
def _bn_affine(key, nchan):
    k1, k2, k3, k4 = jax.random.split(key, 4)
    gamma = 1.0 + 0.1 * jax.random.normal(k1, (nchan,), jnp.float32)
    beta = 0.1 * jax.random.normal(k2, (nchan,), jnp.float32)
    rmean = 0.1 * jax.random.normal(k3, (nchan,), jnp.float32)
    rvar = 1.0 + 0.2 * jax.random.uniform(k4, (nchan,), jnp.float32)
    s = gamma / jnp.sqrt(rvar + EPS)
    t = beta - rmean * s
    return s, t


def init_params(key):
    ks = jax.random.split(key, 12)
    p = {}
    p["gw"] = jax.random.normal(ks[0], (C_IN, C), jnp.float32) / math.sqrt(C_IN)
    p["gb"] = 0.1 * jax.random.normal(ks[1], (C,), jnp.float32)
    p["gs"], p["gt"] = _bn_affine(ks[2], C)
    p["cw"] = jax.random.normal(ks[3], (N, C, C), jnp.float32) / math.sqrt(C)
    p["cb"] = 0.1 * jax.random.normal(ks[4], (N, C), jnp.float32)
    cs, ct = _bn_affine(ks[5], N * C)
    p["cs"], p["ct"] = cs.reshape(N, C), ct.reshape(N, C)

    def attn_params(k, prefix):
        kk = jax.random.split(k, 6)
        p[prefix + "_wq"] = jax.random.normal(kk[0], (C, C2), jnp.float32) / math.sqrt(C)
        p[prefix + "_bq"] = 0.1 * jax.random.normal(kk[1], (1, C2), jnp.float32)
        p[prefix + "_wk"] = jax.random.normal(kk[2], (C, C2), jnp.float32) / math.sqrt(C)
        p[prefix + "_bk"] = 0.1 * jax.random.normal(kk[3], (1, C2), jnp.float32)
        p[prefix + "_wv"] = jax.random.normal(kk[4], (C, C), jnp.float32) / math.sqrt(C)
        p[prefix + "_bv"] = 0.1 * jax.random.normal(kk[5], (1, C), jnp.float32)

    attn_params(ks[6], "fam")
    attn_params(ks[7], "arm")
    p["ew"] = jax.random.normal(ks[8], (C, C), jnp.float32) / math.sqrt(C)
    p["eb"] = 0.1 * jax.random.normal(ks[9], (1, C), jnp.float32)
    p["bn2_s"], p["bn2_t"] = _bn_affine(ks[10], N * N)
    return p


def reference(x_tokens, p):
    def linblock(x, w, b, s, t):
        z = x @ w + b
        return jnp.maximum(z * s + t, 0.0)

    x = linblock(x_tokens, p["gw"], p["gb"], p["gs"], p["gt"])        # (B, D, C)
    f_u = jnp.stack(
        [linblock(x, p["cw"][i], p["cb"][i], p["cs"][i], p["ct"][i])
         for i in range(N)], axis=1)                                  # (B, N, D, C)
    f_v = f_u.mean(axis=-2)

    def cross(y, xg, pre):
        q = y @ p[pre + "_wq"] + p[pre + "_bq"]
        k = xg @ p[pre + "_wk"] + p[pre + "_bk"]
        v = xg @ p[pre + "_wv"] + p[pre + "_bv"]
        dots = (q @ jnp.swapaxes(k, -1, -2)) * (float(C2) ** -0.5)
        return jax.nn.softmax(dots, axis=-1) @ v

    g = jnp.broadcast_to(x[:, None], (B, N, D, C))
    feat = cross(f_u, g, "fam")                                       # (B, N, D, C)
    feat_end = jnp.broadcast_to(feat[:, :, None], (B, N, N, D, C)).reshape(B, N * N, D, C)
    feat_start = jnp.broadcast_to(feat[:, None], (B, N, N, D, C)).reshape(B, N * N, D, C)
    feat2 = cross(feat_start, feat_end, "arm")                        # (B, N*N, D, C)
    edge = feat2 @ p["ew"] + p["eb"]
    edge = edge * p["bn2_s"][None, :, None, None] + p["bn2_t"][None, :, None, None]
    f_e = edge.mean(axis=-2)
    return f_v, f_e


if __name__ == "__main__":
    key = jax.random.PRNGKey(0)
    kx, kp = jax.random.split(key)
    x_tokens = jax.random.normal(kx, (B, D, C_IN), jnp.float32)   # backbone tokens
    params = init_params(kp)

    fwd = jax.jit(mefarg_forward)
    f_v, f_e = fwd(x_tokens, params)
    jax.block_until_ready((f_v, f_e))

    rv, re_ = reference(x_tokens, params)
    assert f_v.shape == (B, N, C) and f_e.shape == (B, N * N, C)
    assert bool(jnp.allclose(f_v, rv, atol=3e-3, rtol=3e-3)), "f_v mismatch"
    assert bool(jnp.allclose(f_e, re_, atol=3e-3, rtol=3e-3)), "f_e mismatch"
    print("KERNEL_OK")
</pallas_src>

<mosaic_0001>
module attributes {stable_mosaic.version = 11 : i64} {
  func.func @_mefarg_kernel(%arg0: i32, %arg1: memref<1x8x64xf32, #tpu.memory_space<vmem>>, %arg2: memref<64x32xf32, #tpu.memory_space<vmem>>, %arg3: memref<1x32xf32, #tpu.memory_space<vmem>>, %arg4: memref<32x864xf32, #tpu.memory_space<vmem>>, %arg5: memref<1x864xf32, #tpu.memory_space<vmem>>, %arg6: memref<32x16xf32, #tpu.memory_space<vmem>>, %arg7: memref<1x16xf32, #tpu.memory_space<vmem>>, %arg8: memref<32x16xf32, #tpu.memory_space<vmem>>, %arg9: memref<1x16xf32, #tpu.memory_space<vmem>>, %arg10: memref<32x32xf32, #tpu.memory_space<vmem>>, %arg11: memref<1x32xf32, #tpu.memory_space<vmem>>, %arg12: memref<32x16xf32, #tpu.memory_space<vmem>>, %arg13: memref<1x16xf32, #tpu.memory_space<vmem>>, %arg14: memref<32x16xf32, #tpu.memory_space<vmem>>, %arg15: memref<1x16xf32, #tpu.memory_space<vmem>>, %arg16: memref<32x32xf32, #tpu.memory_space<vmem>>, %arg17: memref<1x32xf32, #tpu.memory_space<vmem>>, %arg18: memref<216x27xf32, #tpu.memory_space<vmem>>, %arg19: memref<27x216xf32, #tpu.memory_space<vmem>>, %arg20: memref<27x27x32xf32, #tpu.memory_space<vmem>>, %arg21: memref<27x27x32xf32, #tpu.memory_space<vmem>>, %arg22: memref<1x27x32xf32, #tpu.memory_space<vmem>>, %arg23: memref<1x27x27x32xf32, #tpu.memory_space<vmem>>, %arg24: memref<216x32xf32, #tpu.memory_space<vmem>>, %arg25: memref<216x32xf32, #tpu.memory_space<vmem>>, %arg26: memref<216x27xf32, #tpu.memory_space<vmem>>) attributes {dimension_semantics = [#tpu.dimension_semantics<parallel>], iteration_bounds = array<i64: 2>, scalar_prefetch = 0 : i64, scratch_operands = 3 : i64, tpu.core_type = #tpu.core_type<tc>, window_params = [{transform_indices = @transform_0, window_bounds = array<i64: 1, 8, 64>}, {pipeline_mode = #tpu.pipeline_mode<synchronous>, transform_indices = @transform_1, window_bounds = array<i64: 64, 32>}, {pipeline_mode = #tpu.pipeline_mode<synchronous>, transform_indices = @transform_2, window_bounds = array<i64: 1, 32>}, {pipeline_mode = #tpu.pipeline_mode<synchronous>, transform_indices = @transform_3, window_bounds = array<i64: 32, 864>}, {pipeline_mode = #tpu.pipeline_mode<synchronous>, transform_indices = @transform_4, window_bounds = array<i64: 1, 864>}, {pipeline_mode = #tpu.pipeline_mode<synchronous>, transform_indices = @transform_5, window_bounds = array<i64: 32, 16>}, {pipeline_mode = #tpu.pipeline_mode<synchronous>, transform_indices = @transform_6, window_bounds = array<i64: 1, 16>}, {pipeline_mode = #tpu.pipeline_mode<synchronous>, transform_indices = @transform_7, window_bounds = array<i64: 32, 16>}, {pipeline_mode = #tpu.pipeline_mode<synchronous>, transform_indices = @transform_8, window_bounds = array<i64: 1, 16>}, {pipeline_mode = #tpu.pipeline_mode<synchronous>, transform_indices = @transform_9, window_bounds = array<i64: 32, 32>}, {pipeline_mode = #tpu.pipeline_mode<synchronous>, transform_indices = @transform_10, window_bounds = array<i64: 1, 32>}, {pipeline_mode = #tpu.pipeline_mode<synchronous>, transform_indices = @transform_11, window_bounds = array<i64: 32, 16>}, {pipeline_mode = #tpu.pipeline_mode<synchronous>, transform_indices = @transform_12, window_bounds = array<i64: 1, 16>}, {pipeline_mode = #tpu.pipeline_mode<synchronous>, transform_indices = @transform_13, window_bounds = array<i64: 32, 16>}, {pipeline_mode = #tpu.pipeline_mode<synchronous>, transform_indices = @transform_14, window_bounds = array<i64: 1, 16>}, {pipeline_mode = #tpu.pipeline_mode<synchronous>, transform_indices = @transform_15, window_bounds = array<i64: 32, 32>}, {pipeline_mode = #tpu.pipeline_mode<synchronous>, transform_indices = @transform_16, window_bounds = array<i64: 1, 32>}, {pipeline_mode = #tpu.pipeline_mode<synchronous>, transform_indices = @transform_17, window_bounds = array<i64: 216, 27>}, {pipeline_mode = #tpu.pipeline_mode<synchronous>, transform_indices = @transform_18, window_bounds = array<i64: 27, 216>}, {pipeline_mode = #tpu.pipeline_mode<synchronous>, transform_indices = @transform_19, window_bounds = array<i64: 27, 27, 32>}, {pipeline_mode = #tpu.pipeline_mode<synchronous>, transform_indices = @transform_20, window_bounds = array<i64: 27, 27, 32>}, {transform_indices = @transform_21, window_bounds = array<i64: 1, 27, 32>}, {transform_indices = @transform_22, window_bounds = array<i64: 1, 27, 27, 32>}]} {
    %c0 = arith.constant 0 : index
    %c0_0 = arith.constant 0 : index
    %c0_1 = arith.constant 0 : index
    %0 = vector.load %arg1[%c0, %c0_0, %c0_1] : memref<1x8x64xf32, #tpu.memory_space<vmem>>, vector<1x8x64xf32>
    %1 = vector.shape_cast %0 : vector<1x8x64xf32> to vector<8x64xf32>
    %c0_2 = arith.constant 0 : index
    %c0_3 = arith.constant 0 : index
    %2 = vector.load %arg2[%c0_2, %c0_3] : memref<64x32xf32, #tpu.memory_space<vmem>>, vector<64x32xf32>
    %cst = arith.constant dense<0.000000e+00> : vector<8x32xf32>
    %3 = tpu.matmul %1, %2, %cst {dimension_numbers = #tpu.dot_dimension_numbers<[1], [0], [0], [1], [0, 0, 1, 1], [], []>} : vector<8x64xf32>, vector<64x32xf32>, vector<8x32xf32> -> vector<8x32xf32>
    %c0_4 = arith.constant 0 : index
    %c0_5 = arith.constant 0 : index
    %4 = vector.load %arg3[%c0_4, %c0_5] : memref<1x32xf32, #tpu.memory_space<vmem>>, vector<1x32xf32>
    %5 = vector.broadcast %4 : vector<1x32xf32> to vector<8x32xf32>
    %6 = arith.addf %3, %5 : vector<8x32xf32>
    %cst_6 = arith.constant 0.000000e+00 : f32
    %7 = vector.broadcast %cst_6 : f32 to vector<8x32xf32>
    %8 = arith.maximumf %6, %7 : vector<8x32xf32>
    %c0_7 = arith.constant 0 : index
    %c0_8 = arith.constant 0 : index
    %9 = vector.load %arg4[%c0_7, %c0_8] : memref<32x864xf32, #tpu.memory_space<vmem>>, vector<32x864xf32>
    %cst_9 = arith.constant dense<0.000000e+00> : vector<8x864xf32>
    %10 = tpu.matmul %8, %9, %cst_9 {dimension_numbers = #tpu.dot_dimension_numbers<[1], [0], [0], [1], [0, 0, 1, 1], [], []>} : vector<8x32xf32>, vector<32x864xf32>, vector<8x864xf32> -> vector<8x864xf32>
    %c0_10 = arith.constant 0 : index
    %c0_11 = arith.constant 0 : index
    %11 = vector.load %arg5[%c0_10, %c0_11] : memref<1x864xf32, #tpu.memory_space<vmem>>, vector<1x864xf32>
    %12 = vector.broadcast %11 : vector<1x864xf32> to vector<8x864xf32>
    %13 = arith.addf %10, %12 : vector<8x864xf32>
    %cst_12 = arith.constant 0.000000e+00 : f32
    %14 = vector.broadcast %cst_12 : f32 to vector<8x864xf32>
    %15 = arith.maximumf %13, %14 : vector<8x864xf32>
    %16 = vector.extract_strided_slice %15 {offsets = [0, 0], sizes = [8, 32], strides = [1, 1]} : vector<8x864xf32> to vector<8x32xf32>
    %c0_13 = arith.constant 0 : index
    %c0_14 = arith.constant 0 : index
    %17 = vector.load %arg24[%c0_13, %c0_14] : memref<216x32xf32, #tpu.memory_space<vmem>>, vector<8x32xf32>
    tpu.vector_store %arg24[%c0_13, %c0_14], %16 {strides = array<i32>} : memref<216x32xf32, #tpu.memory_space<vmem>>, vector<8x32xf32>,
    %18 = vector.extract_strided_slice %15 {offsets = [0, 32], sizes = [8, 32], strides = [1, 1]} : vector<8x864xf32> to vector<8x32xf32>
    %c8 = arith.constant 8 : index
    %c0_15 = arith.constant 0 : index
    %19 = vector.load %arg24[%c8, %c0_15] : memref<216x32xf32, #tpu.memory_space<vmem>>, vector<8x32xf32>
    tpu.vector_store %arg24[%c8, %c0_15], %18 {strides = array<i32>} : memref<216x32xf32, #tpu.memory_space<vmem>>, vector<8x32xf32>,
    %20 = vector.extract_strided_slice %15 {offsets = [0, 64], sizes = [8, 32], strides = [1, 1]} : vector<8x864xf32> to vector<8x32xf32>
    %c16 = arith.constant 16 : index
    %c0_16 = arith.constant 0 : index
    %21 = vector.load %arg24[%c16, %c0_16] : memref<216x32xf32, #tpu.memory_space<vmem>>, vector<8x32xf32>
    tpu.vector_store %arg24[%c16, %c0_16], %20 {strides = array<i32>} : memref<216x32xf32, #tpu.memory_space<vmem>>, vector<8x32xf32>,
    %22 = vector.extract_strided_slice %15 {offsets = [0, 96], sizes = [8, 32], strides = [1, 1]} : vector<8x864xf32> to vector<8x32xf32>
    %c24 = arith.constant 24 : index
    %c0_17 = arith.constant 0 : index
    %23 = vector.load %arg24[%c24, %c0_17] : memref<216x32xf32, #tpu.memory_space<vmem>>, vector<8x32xf32>
    tpu.vector_store %arg24[%c24, %c0_17], %22 {strides = array<i32>} : memref<216x32xf32, #tpu.memory_space<vmem>>, vector<8x32xf32>,
    %24 = vector.extract_strided_slice %15 {offsets = [0, 128], sizes = [8, 32], strides = [1, 1]} : vector<8x864xf32> to vector<8x32xf32>
    %c32 = arith.constant 32 : index
    %c0_18 = arith.constant 0 : index
    %25 = vector.load %arg24[%c32, %c0_18] : memref<216x32xf32, #tpu.memory_space<vmem>>, vector<8x32xf32>
    tpu.vector_store %arg24[%c32, %c0_18], %24 {strides = array<i32>} : memref<216x32xf32, #tpu.memory_space<vmem>>, vector<8x32xf32>,
    %26 = vector.extract_strided_slice %15 {offsets = [0, 160], sizes = [8, 32], strides = [1, 1]} : vector<8x864xf32> to vector<8x32xf32>
    %c40 = arith.constant 40 : index
    %c0_19 = arith.constant 0 : index
    %27 = vector.load %arg24[%c40, %c0_19] : memref<216x32xf32, #tpu.memory_space<vmem>>, vector<8x32xf32>
    tpu.vector_store %arg24[%c40, %c0_19], %26 {strides = array<i32>} : memref<216x32xf32, #tpu.memory_space<vmem>>, vector<8x32xf32>,
    %28 = vector.extract_strided_slice %15 {offsets = [0, 192], sizes = [8, 32], strides = [1, 1]} : vector<8x864xf32> to vector<8x32xf32>
    %c48 = arith.constant 48 : index
    %c0_20 = arith.constant 0 : index
    %29 = vector.load %arg24[%c48, %c0_20] : memref<216x32xf32, #tpu.memory_space<vmem>>, vector<8x32xf32>
    tpu.vector_store %arg24[%c48, %c0_20], %28 {strides = array<i32>} : memref<216x32xf32, #tpu.memory_space<vmem>>, vector<8x32xf32>,
    %30 = vector.extract_strided_slice %15 {offsets = [0, 224], sizes = [8, 32], strides = [1, 1]} : vector<8x864xf32> to vector<8x32xf32>
    %c56 = arith.constant 56 : index
    %c0_21 = arith.constant 0 : index
    %31 = vector.load %arg24[%c56, %c0_21] : memref<216x32xf32, #tpu.memory_space<vmem>>, vector<8x32xf32>
    tpu.vector_store %arg24[%c56, %c0_21], %30 {strides = array<i32>} : memref<216x32xf32, #tpu.memory_space<vmem>>, vector<8x32xf32>,
    %32 = vector.extract_strided_slice %15 {offsets = [0, 256], sizes = [8, 32], strides = [1, 1]} : vector<8x864xf32> to vector<8x32xf32>
    %c64 = arith.constant 64 : index
    %c0_22 = arith.constant 0 : index
    %33 = vector.load %arg24[%c64, %c0_22] : memref<216x32xf32, #tpu.memory_space<vmem>>, vector<8x32xf32>
    tpu.vector_store %arg24[%c64, %c0_22], %32 {strides = array<i32>} : memref<216x32xf32, #tpu.memory_space<vmem>>, vector<8x32xf32>,
    %34 = vector.extract_strided_slice %15 {offsets = [0, 288], sizes = [8, 32], strides = [1, 1]} : vector<8x864xf32> to vector<8x32xf32>
    %c72 = arith.constant 72 : index
    %c0_23 = arith.constant 0 : index
    %35 = vector.load %arg24[%c72, %c0_23] : memref<216x32xf32, #tpu.memory_space<vmem>>, vector<8x32xf32>
    tpu.vector_store %arg24[%c72, %c0_23], %34 {strides = array<i32>} : memref<216x32xf32, #tpu.memory_space<vmem>>, vector<8x32xf32>,
    %36 = vector.extract_strided_slice %15 {offsets = [0, 320], sizes = [8, 32], strides = [1, 1]} : vector<8x864xf32> to vector<8x32xf32>
    %c80 = arith.constant 80 : index
    %c0_24 = arith.constant 0 : index
    %37 = vector.load %arg24[%c80, %c0_24] : memref<216x32xf32, #tpu.memory_space<vmem>>, vector<8x32xf32>
    tpu.vector_store %arg24[%c80, %c0_24], %36 {strides = array<i32>} : memref<216x32xf32, #tpu.memory_space<vmem>>, vector<8x32xf32>,
    %38 = vector.extract_strided_slice %15 {offsets = [0, 352], sizes = [8, 32], strides = [1, 1]} : vector<8x864xf32> to vector<8x32xf32>
    %c88 = arith.constant 88 : index
    %c0_25 = arith.constant 0 : index
    %39 = vector.load %arg24[%c88, %c0_25] : memref<216x32xf32, #tpu.memory_space<vmem>>, vector<8x32xf32>
    tpu.vector_store %arg24[%c88, %c0_25], %38 {strides = array<i32>} : memref<216x32xf32, #tpu.memory_space<vmem>>, vector<8x32xf32>,
    %40 = vector.extract_strided_slice %15 {offsets = [0, 384], sizes = [8, 32], strides = [1, 1]} : vector<8x864xf32> to vector<8x32xf32>
    %c96 = arith.constant 96 : index
    %c0_26 = arith.constant 0 : index
    %41 = vector.load %arg24[%c96, %c0_26] : memref<216x32xf32, #tpu.memory_space<vmem>>, vector<8x32xf32>
    tpu.vector_store %arg24[%c96, %c0_26], %40 {strides = array<i32>} : memref<216x32xf32, #tpu.memory_space<vmem>>, vector<8x32xf32>,
    %42 = vector.extract_strided_slice %15 {offsets = [0, 416], sizes = [8, 32], strides = [1, 1]} : vector<8x864xf32> to vector<8x32xf32>
    %c104 = arith.constant 104 : index
    %c0_27 = arith.constant 0 : index
    %43 = vector.load %arg24[%c104, %c0_27] : memref<216x32xf32, #tpu.memory_space<vmem>>, vector<8x32xf32>
    tpu.vector_store %arg24[%c104, %c0_27], %42 {strides = array<i32>} : memref<216x32xf32, #tpu.memory_space<vmem>>, vector<8x32xf32>,
    %44 = vector.extract_strided_slice %15 {offsets = [0, 448], sizes = [8, 32], strides = [1, 1]} : vector<8x864xf32> to vector<8x32xf32>
    %c112 = arith.constant 112 : index
    %c0_28 = arith.constant 0 : index
    %45 = vector.load %arg24[%c112, %c0_28] : memref<216x32xf32, #tpu.memory_space<vmem>>, vector<8x32xf32>
    tpu.vector_store %arg24[%c112, %c0_28], %44 {strides = array<i32>} : memref<216x32xf32, #tpu.memory_space<vmem>>, vector<8x32xf32>,
    %46 = vector.extract_strided_slice %15 {offsets = [0, 480], sizes = [8, 32], strides = [1, 1]} : vector<8x864xf32> to vector<8x32xf32>
    %c120 = arith.constant 120 : index
    %c0_29 = arith.constant 0 : index
    %47 = vector.load %arg24[%c120, %c0_29] : memref<216x32xf32, #tpu.memory_space<vmem>>, vector<8x32xf32>
    tpu.vector_store %arg24[%c120, %c0_29], %46 {strides = array<i32>} : memref<216x32xf32, #tpu.memory_space<vmem>>, vector<8x32xf32>,
    %48 = vector.extract_strided_slice %15 {offsets = [0, 512], sizes = [8, 32], strides = [1, 1]} : vector<8x864xf32> to vector<8x32xf32>
    %c128 = arith.constant 128 : index
    %c0_30 = arith.constant 0 : index
    %49 = vector.load %arg24[%c128, %c0_30] : memref<216x32xf32, #tpu.memory_space<vmem>>, vector<8x32xf32>
    tpu.vector_store %arg24[%c128, %c0_30], %48 {strides = array<i32>} : memref<216x32xf32, #tpu.memory_space<vmem>>, vector<8x32xf32>,
    %50 = vector.extract_strided_slice %15 {offsets = [0, 544], sizes = [8, 32], strides = [1, 1]} : vector<8x864xf32> to vector<8x32xf32>
    %c136 = arith.constant 136 : index
    %c0_31 = arith.constant 0 : index
    %51 = vector.load %arg24[%c136, %c0_31] : memref<216x32xf32, #tpu.memory_space<vmem>>, vector<8x32xf32>
    tpu.vector_store %arg24[%c136, %c0_31], %50 {strides = array<i32>} : memref<216x32xf32, #tpu.memory_space<vmem>>, vector<8x32xf32>,
    %52 = vector.extract_strided_slice %15 {offsets = [0, 576], sizes = [8, 32], strides = [1, 1]} : vector<8x864xf32> to vector<8x32xf32>
    %c144 = arith.constant 144 : index
    %c0_32 = arith.constant 0 : index
    %53 = vector.load %arg24[%c144, %c0_32] : memref<216x32xf32, #tpu.memory_space<vmem>>, vector<8x32xf32>
    tpu.vector_store %arg24[%c144, %c0_32], %52 {strides = array<i32>} : memref<216x32xf32, #tpu.memory_space<vmem>>, vector<8x32xf32>,
    %54 = vector.extract_strided_slice %15 {offsets = [0, 608], sizes = [8, 32], strides = [1, 1]} : vector<8x864xf32> to vector<8x32xf32>
    %c152 = arith.constant 152 : index
    %c0_33 = arith.constant 0 : index
    %55 = vector.load %arg24[%c152, %c0_33] : memref<216x32xf32, #tpu.memory_space<vmem>>, vector<8x32xf32>
    tpu.vector_store %arg24[%c152, %c0_33], %54 {strides = array<i32>} : memref<216x32xf32, #tpu.memory_space<vmem>>, vector<8x32xf32>,
    %56 = vector.extract_strided_slice %15 {offsets = [0, 640], sizes = [8, 32], strides = [1, 1]} : vector<8x864xf32> to vector<8x32xf32>
    %c160 = arith.constant 160 : index
    %c0_34 = arith.constant 0 : index
    %57 = vector.load %arg24[%c160, %c0_34] : memref<216x32xf32, #tpu.memory_space<vmem>>, vector<8x32xf32>
    tpu.vector_store %arg24[%c160, %c0_34], %56 {strides = array<i32>} : memref<216x32xf32, #tpu.memory_space<vmem>>, vector<8x32xf32>,
    %58 = vector.extract_strided_slice %15 {offsets = [0, 672], sizes = [8, 32], strides = [1, 1]} : vector<8x864xf32> to vector<8x32xf32>
    %c168 = arith.constant 168 : index
    %c0_35 = arith.constant 0 : index
    %59 = vector.load %arg24[%c168, %c0_35] : memref<216x32xf32, #tpu.memory_space<vmem>>, vector<8x32xf32>
    tpu.vector_store %arg24[%c168, %c0_35], %58 {strides = array<i32>} : memref<216x32xf32, #tpu.memory_space<vmem>>, vector<8x32xf32>,
    %60 = vector.extract_strided_slice %15 {offsets = [0, 704], sizes = [8, 32], strides = [1, 1]} : vector<8x864xf32> to vector<8x32xf32>
    %c176 = arith.constant 176 : index
    %c0_36 = arith.constant 0 : index
    %61 = vector.load %arg24[%c176, %c0_36] : memref<216x32xf32, #tpu.memory_space<vmem>>, vector<8x32xf32>
    tpu.vector_store %arg24[%c176, %c0_36], %60 {strides = array<i32>} : memref<216x32xf32, #tpu.memory_space<vmem>>, vector<8x32xf32>,
    %62 = vector.extract_strided_slice %15 {offsets = [0, 736], sizes = [8, 32], strides = [1, 1]} : vector<8x864xf32> to vector<8x32xf32>
    %c184 = arith.constant 184 : index
    %c0_37 = arith.constant 0 : index
    %63 = vector.load %arg24[%c184, %c0_37] : memref<216x32xf32, #tpu.memory_space<vmem>>, vector<8x32xf32>
    tpu.vector_store %arg24[%c184, %c0_37], %62 {strides = array<i32>} : memref<216x32xf32, #tpu.memory_space<vmem>>, vector<8x32xf32>,
    %64 = vector.extract_strided_slice %15 {offsets = [0, 768], sizes = [8, 32], strides = [1, 1]} : vector<8x864xf32> to vector<8x32xf32>
    %c192 = arith.constant 192 : index
    %c0_38 = arith.constant 0 : index
    %65 = vector.load %arg24[%c192, %c0_38] : memref<216x32xf32, #tpu.memory_space<vmem>>, vector<8x32xf32>
    tpu.vector_store %arg24[%c192, %c0_38], %64 {strides = array<i32>} : memref<216x32xf32, #tpu.memory_space<vmem>>, vector<8x32xf32>,
    %66 = vector.extract_strided_slice %15 {offsets = [0, 800], sizes = [8, 32], strides = [1, 1]} : vector<8x864xf32> to vector<8x32xf32>
    %c200 = arith.constant 200 : index
    %c0_39 = arith.constant 0 : index
    %67 = vector.load %arg24[%c200, %c0_39] : memref<216x32xf32, #tpu.memory_space<vmem>>, vector<8x32xf32>
    tpu.vector_store %arg24[%c200, %c0_39], %66 {strides = array<i32>} : memref<216x32xf32, #tpu.memory_space<vmem>>, vector<8x32xf32>,
    %68 = vector.extract_strided_slice %15 {offsets = [0, 832], sizes = [8, 32], strides = [1, 1]} : vector<8x864xf32> to vector<8x32xf32>
    %c208 = arith.constant 208 : index
    %c0_40 = arith.constant 0 : index
    %69 = vector.load %arg24[%c208, %c0_40] : memref<216x32xf32, #tpu.memory_space<vmem>>, vector<8x32xf32>
    tpu.vector_store %arg24[%c208, %c0_40], %68 {strides = array<i32>} : memref<216x32xf32, #tpu.memory_space<vmem>>, vector<8x32xf32>,
    %c0_41 = arith.constant 0 : index
    %c0_42 = arith.constant 0 : index
    %70 = vector.load %arg24[%c0_41, %c0_42] : memref<216x32xf32, #tpu.memory_space<vmem>>, vector<216x32xf32>
    %c0_43 = arith.constant 0 : index
    %c0_44 = arith.constant 0 : index
    %71 = vector.load %arg19[%c0_43, %c0_44] : memref<27x216xf32, #tpu.memory_space<vmem>>, vector<27x216xf32>
    %cst_45 = arith.constant dense<0.000000e+00> : vector<27x32xf32>
    %72 = tpu.matmul %71, %70, %cst_45 {dimension_numbers = #tpu.dot_dimension_numbers<[1], [0], [0], [1], [0, 0, 1, 1], [], []>} : vector<27x216xf32>, vector<216x32xf32>, vector<27x32xf32> -> vector<27x32xf32>
    %cst_46 = arith.constant 1.250000e-01 : f32
    %73 = vector.broadcast %cst_46 : f32 to vector<27x32xf32>
    %74 = arith.mulf %72, %73 : vector<27x32xf32>
    %c0_47 = arith.constant 0 : index
    %c0_48 = arith.constant 0 : index
    %c0_49 = arith.constant 0 : index
    %75 = vector.load %arg22[%c0_47, %c0_48, %c0_49] : memref<1x27x32xf32, #tpu.memory_space<vmem>>, vector<1x27x32xf32>
    %76 = vector.shape_cast %75 : vector<1x27x32xf32> to vector<27x32xf32>
    %77 = vector.shape_cast %74 : vector<27x32xf32> to vector<1x27x32xf32>
    tpu.vector_store %arg22[%c0_47, %c0_48, %c0_49], %77 {strides = array<i32>} : memref<1x27x32xf32, #tpu.memory_space<vmem>>, vector<1x27x32xf32>,
    %c0_50 = arith.constant 0 : index
    %c0_51 = arith.constant 0 : index
    %78 = vector.load %arg6[%c0_50, %c0_51] : memref<32x16xf32, #tpu.memory_space<vmem>>, vector<32x16xf32>
    %cst_52 = arith.constant dense<0.000000e+00> : vector<216x16xf32>
    %79 = tpu.matmul %70, %78, %cst_52 {dimension_numbers = #tpu.dot_dimension_numbers<[1], [0], [0], [1], [0, 0, 1, 1], [], []>} : vector<216x32xf32>, vector<32x16xf32>, vector<216x16xf32> -> vector<216x16xf32>
    %c0_53 = arith.constant 0 : index
    %c0_54 = arith.constant 0 : index
    %80 = vector.load %arg7[%c0_53, %c0_54] : memref<1x16xf32, #tpu.memory_space<vmem>>, vector<1x16xf32>
    %81 = vector.broadcast %80 : vector<1x16xf32> to vector<216x16xf32>
    %82 = arith.addf %79, %81 : vector<216x16xf32>
    %c0_55 = arith.constant 0 : index
    %c0_56 = arith.constant 0 : index
    %83 = vector.load %arg8[%c0_55, %c0_56] : memref<32x16xf32, #tpu.memory_space<vmem>>, vector<32x16xf32>
    %cst_57 = arith.constant dense<0.000000e+00> : vector<8x16xf32>
    %84 = tpu.matmul %8, %83, %cst_57 {dimension_numbers = #tpu.dot_dimension_numbers<[1], [0], [0], [1], [0, 0, 1, 1], [], []>} : vector<8x32xf32>, vector<32x16xf32>, vector<8x16xf32> -> vector<8x16xf32>
    %c0_58 = arith.constant 0 : index
    %c0_59 = arith.constant 0 : index
    %85 = vector.load %arg9[%c0_58, %c0_59] : memref<1x16xf32, #tpu.memory_space<vmem>>, vector<1x16xf32>
    %86 = vector.broadcast %85 : vector<1x16xf32> to vector<8x16xf32>
    %87 = arith.addf %84, %86 : vector<8x16xf32>
    %c0_60 = arith.constant 0 : index
    %c0_61 = arith.constant 0 : index
    %88 = vector.load %arg10[%c0_60, %c0_61] : memref<32x32xf32, #tpu.memory_space<vmem>>, vector<32x32xf32>
    %cst_62 = arith.constant dense<0.000000e+00> : vector<8x32xf32>
    %89 = tpu.matmul %8, %88, %cst_62 {dimension_numbers = #tpu.dot_dimension_numbers<[1], [0], [0], [1], [0, 0, 1, 1], [], []>} : vector<8x32xf32>, vector<32x32xf32>, vector<8x32xf32> -> vector<8x32xf32>
    %c0_63 = arith.constant 0 : index
    %c0_64 = arith.constant 0 : index
    %90 = vector.load %arg11[%c0_63, %c0_64] : memref<1x32xf32, #tpu.memory_space<vmem>>, vector<1x32xf32>
    %91 = vector.broadcast %90 : vector<1x32xf32> to vector<8x32xf32>
    %92 = arith.addf %89, %91 : vector<8x32xf32>
    %cst_65 = arith.constant dense<0.000000e+00> : vector<216x8xf32>
    %93 = tpu.matmul %82, %87, %cst_65 {dimension_numbers = #tpu.dot_dimension_numbers<[1], [1], [0], [0], [0, 0, 1, 0], [], []>} : vector<216x16xf32>, vector<8x16xf32>, vector<216x8xf32> -> vector<216x8xf32>
    %cst_66 = arith.constant dense<0xFF800000> : vector<216xf32>
    %94 = vector.multi_reduction <maximumf>, %93, %cst_66 [1] : vector<216x8xf32> to vector<216xf32>
    %95 = vector.shape_cast %94 : vector<216xf32> to vector<216x1xf32>
    %96 = vector.broadcast %95 : vector<216x1xf32> to vector<216x8xf32>
    %97 = arith.subf %93, %96 : vector<216x8xf32>
    %98 = math.exp %97 : vector<216x8xf32>
    %cst_67 = arith.constant dense<0.000000e+00> : vector<216xf32>
    %99 = vector.multi_reduction <add>, %98, %cst_67 [1] : vector<216x8xf32> to vector<216xf32>
    %100 = vector.shape_cast %99 : vector<216xf32> to vector<216x1xf32>
    %101 = tpu.reciprocal %100 {approx = true} : vector<216x1xf32> -> vector<216x1xf32>
    %102 = vector.broadcast %101 : vector<216x1xf32> to vector<216x8xf32>
    %103 = arith.mulf %98, %102 : vector<216x8xf32>
    %cst_68 = arith.constant dense<0.000000e+00> : vector<216x32xf32>
    %104 = tpu.matmul %103, %92, %cst_68 {dimension_numbers = #tpu.dot_dimension_numbers<[1], [0], [0], [1], [0, 0, 1, 1], [], []>} : vector<216x8xf32>, vector<8x32xf32>, vector<216x32xf32> -> vector<216x32xf32>
    %c0_69 = arith.constant 0 : index
    %c0_70 = arith.constant 0 : index
    %105 = vector.load %arg12[%c0_69, %c0_70] : memref<32x16xf32, #tpu.memory_space<vmem>>, vector<32x16xf32>
    %cst_71 = arith.constant dense<0.000000e+00> : vector<216x16xf32>
    %106 = tpu.matmul %104, %105, %cst_71 {dimension_numbers = #tpu.dot_dimension_numbers<[1], [0], [0], [1], [0, 0, 1, 1], [], []>} : vector<216x32xf32>, vector<32x16xf32>, vector<216x16xf32> -> vector<216x16xf32>
    %c0_72 = arith.constant 0 : index
    %c0_73 = arith.constant 0 : index
    %107 = vector.load %arg13[%c0_72, %c0_73] : memref<1x16xf32, #tpu.memory_space<vmem>>, vector<1x16xf32>
    %108 = vector.broadcast %107 : vector<1x16xf32> to vector<216x16xf32>
    %109 = arith.addf %106, %108 : vector<216x16xf32>
    %c0_74 = arith.constant 0 : index
    %c0_75 = arith.constant 0 : index
    %110 = vector.load %arg14[%c0_74, %c0_75] : memref<32x16xf32, #tpu.memory_space<vmem>>, vector<32x16xf32>
    %cst_76 = arith.constant dense<0.000000e+00> : vector<216x16xf32>
    %111 = tpu.matmul %104, %110, %cst_76 {dimension_numbers = #tpu.dot_dimension_numbers<[1], [0], [0], [1], [0, 0, 1, 1], [], []>} : vector<216x32xf32>, vector<32x16xf32>, vector<216x16xf32> -> vector<216x16xf32>
    %c0_77 = arith.constant 0 : index
    %c0_78 = arith.constant 0 : index
    %112 = vector.load %arg15[%c0_77, %c0_78] : memref<1x16xf32, #tpu.memory_space<vmem>>, vector<1x16xf32>
    %113 = vector.broadcast %112 : vector<1x16xf32> to vector<216x16xf32>
    %114 = arith.addf %111, %113 : vector<216x16xf32>
    %c0_79 = arith.constant 0 : index
    %c0_80 = arith.constant 0 : index
    %115 = vector.load %arg16[%c0_79, %c0_80] : memref<32x32xf32, #tpu.memory_space<vmem>>, vector<32x32xf32>
    %cst_81 = arith.constant dense<0.000000e+00> : vector<216x32xf32>
    %116 = tpu.matmul %104, %115, %cst_81 {dimension_numbers = #tpu.dot_dimension_numbers<[1], [0], [0], [1], [0, 0, 1, 1], [], []>} : vector<216x32xf32>, vector<32x32xf32>, vector<216x32xf32> -> vector<216x32xf32>
    %c0_82 = arith.constant 0 : index
    %c0_83 = arith.constant 0 : index
    %117 = vector.load %arg17[%c0_82, %c0_83] : memref<1x32xf32, #tpu.memory_space<vmem>>, vector<1x32xf32>
    %118 = vector.broadcast %117 : vector<1x32xf32> to vector<216x32xf32>
    %119 = arith.addf %116, %118 : vector<216x32xf32>
    %c0_84 = arith.constant 0 : index
    %c0_85 = arith.constant 0 : index
    %120 = vector.load %arg25[%c0_84, %c0_85] : memref<216x32xf32, #tpu.memory_space<vmem>>, vector<216x32xf32>
    tpu.vector_store %arg25[%c0_84, %c0_85], %119 {strides = array<i32>} : memref<216x32xf32, #tpu.memory_space<vmem>>, vector<216x32xf32>,
    %cst_86 = arith.constant dense<0.000000e+00> : vector<216x216xf32>
    %121 = tpu.matmul %114, %109, %cst_86 {dimension_numbers = #tpu.dot_dimension_numbers<[1], [1], [0], [0], [0, 0, 1, 0], [], []>} : vector<216x16xf32>, vector<216x16xf32>, vector<216x216xf32> -> vector<216x216xf32>
    %cst_87 = arith.constant dense<0xFF800000> : vector<216xf32>
    %122 = vector.multi_reduction <maximumf>, %121, %cst_87 [0] : vector<216x216xf32> to vector<216xf32>
    %123 = vector.shape_cast %122 : vector<216xf32> to vector<1x216xf32>
    %124 = vector.broadcast %123 : vector<1x216xf32> to vector<216x216xf32>
    %125 = arith.subf %121, %124 : vector<216x216xf32>
    %126 = math.exp %125 : vector<216x216xf32>
    %c0_88 = arith.constant 0 : index
    %c0_89 = arith.constant 0 : index
    %127 = vector.load %arg19[%c0_88, %c0_89] : memref<27x216xf32, #tpu.memory_space<vmem>>, vector<27x216xf32>
    %cst_90 = arith.constant dense<0.000000e+00> : vector<27x216xf32>
    %128 = tpu.matmul %127, %126, %cst_90 {dimension_numbers = #tpu.dot_dimension_numbers<[1], [0], [0], [1], [0, 0, 1, 1], [], []>} : vector<27x216xf32>, vector<216x216xf32>, vector<27x216xf32> -> vector<27x216xf32>
    %cst_91 = arith.constant 1.000000e-30 : f32
    %129 = vector.broadcast %cst_91 : f32 to vector<27x216xf32>
    %130 = arith.maximumf %128, %129 : vector<27x216xf32>
    %131 = tpu.reciprocal %130 {approx = true} : vector<27x216xf32> -> vector<27x216xf32>
    %c0_92 = arith.constant 0 : index
    %c0_93 = arith.constant 0 : index
    %132 = vector.load %arg18[%c0_92, %c0_93] : memref<216x27xf32, #tpu.memory_space<vmem>>, vector<216x27xf32>
    %cst_94 = arith.constant dense<0.000000e+00> : vector<216x216xf32>
    %133 = tpu.matmul %132, %131, %cst_94 {dimension_numbers = #tpu.dot_dimension_numbers<[1], [0], [0], [1], [0, 0, 1, 1], [], []>} : vector<216x27xf32>, vector<27x216xf32>, vector<216x216xf32> -> vector<216x216xf32>
    %134 = arith.mulf %126, %133 : vector<216x216xf32>
    %c0_95 = arith.constant 0 : index
    %c0_96 = arith.constant 0 : index
    %135 = vector.load %arg18[%c0_95, %c0_96] : memref<216x27xf32, #tpu.memory_space<vmem>>, vector<216x27xf32>
    %cst_97 = arith.constant dense<0.000000e+00> : vector<216x27xf32>
    %136 = tpu.matmul %134, %135, %cst_97 {dimension_numbers = #tpu.dot_dimension_numbers<[1], [0], [0], [1], [0, 0, 1, 1], [], []>} : vector<216x216xf32>, vector<216x27xf32>, vector<216x27xf32> -> vector<216x27xf32>
    %cst_98 = arith.constant 1.250000e-01 : f32
    %137 = vector.broadcast %cst_98 : f32 to vector<216x27xf32>
    %138 = arith.mulf %136, %137 : vector<216x27xf32>
    %c0_99 = arith.constant 0 : index
    %c0_100 = arith.constant 0 : index
    %139 = vector.load %arg26[%c0_99, %c0_100] : memref<216x27xf32, #tpu.memory_space<vmem>>, vector<216x27xf32>
    tpu.vector_store %arg26[%c0_99, %c0_100], %138 {strides = array<i32>} : memref<216x27xf32, #tpu.memory_space<vmem>>, vector<216x27xf32>,
    %c0_i32 = arith.constant 0 : i32
    %c27_i32 = arith.constant 27 : i32
    %140 = arith.addi %c0_i32, %c27_i32 : i32
    %c1_i32 = arith.constant 1 : i32
    scf.for %arg27 = %c0_i32 to %140 step %c1_i32  : i32 {
      %c1_i32_102 = arith.constant 1 : i32
      %141 = arith.muli %arg27, %c1_i32_102 : i32
      %c0_i32_103 = arith.constant 0 : i32
      %142 = arith.addi %c0_i32_103, %141 : i32
      %c8_i32 = arith.constant 8 : i32
      %143 = arith.muli %142, %c8_i32 : i32
      %144 = tpu.assume_multiple %143, 8 : i32
      %145 = arith.index_cast %144 : i32 to index
      %c0_104 = arith.constant 0 : index
      %146 = vector.load %arg26[%145, %c0_104] : memref<216x27xf32, #tpu.memory_space<vmem>>, vector<8x27xf32>
      %147 = arith.index_cast %144 : i32 to index
      %c0_105 = arith.constant 0 : index
      %148 = vector.load %arg25[%147, %c0_105] : memref<216x32xf32, #tpu.memory_space<vmem>>, vector<8x32xf32>
      %cst_106 = arith.constant dense<0.000000e+00> : vector<27x32xf32>
      %149 = tpu.matmul %146, %148, %cst_106 {dimension_numbers = #tpu.dot_dimension_numbers<[0], [0], [1], [1], [0, 1, 1, 1], [], []>} : vector<8x27xf32>, vector<8x32xf32>, vector<27x32xf32> -> vector<27x32xf32>
      %150 = arith.index_cast %142 : i32 to index
      %c0_107 = arith.constant 0 : index
      %c0_108 = arith.constant 0 : index
      %151 = vector.load %arg20[%150, %c0_107, %c0_108] : memref<27x27x32xf32, #tpu.memory_space<vmem>>, vector<1x27x32xf32>
      %152 = vector.shape_cast %151 : vector<1x27x32xf32> to vector<27x32xf32>
      %153 = arith.mulf %149, %152 : vector<27x32xf32>
      %154 = arith.index_cast %142 : i32 to index
      %c0_109 = arith.constant 0 : index
      %c0_110 = arith.constant 0 : index
      %155 = vector.load %arg21[%154, %c0_109, %c0_110] : memref<27x27x32xf32, #tpu.memory_space<vmem>>, vector<1x27x32xf32>
      %156 = vector.shape_cast %155 : vector<1x27x32xf32> to vector<27x32xf32>
      %157 = arith.addf %153, %156 : vector<27x32xf32>
      %c0_111 = arith.constant 0 : index
      %158 = arith.index_cast %142 : i32 to index
      %c0_112 = arith.constant 0 : index
      %c0_113 = arith.constant 0 : index
      %159 = vector.load %arg23[%c0_111, %158, %c0_112, %c0_113] : memref<1x27x27x32xf32, #tpu.memory_space<vmem>>, vector<1x1x27x32xf32>
      %160 = vector.shape_cast %159 : vector<1x1x27x32xf32> to vector<27x32xf32>
      %161 = vector.shape_cast %157 : vector<27x32xf32> to vector<1x1x27x32xf32>
      tpu.vector_store %arg23[%c0_111, %158, %c0_112, %c0_113], %161 {strides = array<i32>} : memref<1x27x27x32xf32, #tpu.memory_space<vmem>>, vector<1x1x27x32xf32>,
    }
    %c27_i32_101 = arith.constant 27 : i32
    return
  }
  func.func @transform_0(%arg0: i32) -> (i32, i32, i32) {
    %c0_i32 = arith.constant 0 : i32
    %c0_i32_0 = arith.constant 0 : i32
    %c0_i32_1 = arith.constant 0 : i32
    return %arg0, %c0_i32, %c0_i32_0 : i32, i32, i32
  }
  func.func @transform_1(%arg0: i32) -> (i32, i32) {
    %c0_i32 = arith.constant 0 : i32
    %c0_i32_0 = arith.constant 0 : i32
    %c0_i32_1 = arith.constant 0 : i32
    return %c0_i32, %c0_i32_0 : i32, i32
  }
  func.func @transform_2(%arg0: i32) -> (i32, i32) {
    %c0_i32 = arith.constant 0 : i32
    %c0_i32_0 = arith.constant 0 : i32
    %c0_i32_1 = arith.constant 0 : i32
    return %c0_i32, %c0_i32_0 : i32, i32
  }
  func.func @transform_3(%arg0: i32) -> (i32, i32) {
    %c0_i32 = arith.constant 0 : i32
    %c0_i32_0 = arith.constant 0 : i32
    %c0_i32_1 = arith.constant 0 : i32
    return %c0_i32, %c0_i32_0 : i32, i32
  }
  func.func @transform_4(%arg0: i32) -> (i32, i32) {
    %c0_i32 = arith.constant 0 : i32
    %c0_i32_0 = arith.constant 0 : i32
    %c0_i32_1 = arith.constant 0 : i32
    return %c0_i32, %c0_i32_0 : i32, i32
  }
  func.func @transform_5(%arg0: i32) -> (i32, i32) {
    %c0_i32 = arith.constant 0 : i32
    %c0_i32_0 = arith.constant 0 : i32
    %c0_i32_1 = arith.constant 0 : i32
    return %c0_i32, %c0_i32_0 : i32, i32
  }
  func.func @transform_6(%arg0: i32) -> (i32, i32) {
    %c0_i32 = arith.constant 0 : i32
    %c0_i32_0 = arith.constant 0 : i32
    %c0_i32_1 = arith.constant 0 : i32
    return %c0_i32, %c0_i32_0 : i32, i32
  }
  func.func @transform_7(%arg0: i32) -> (i32, i32) {
    %c0_i32 = arith.constant 0 : i32
    %c0_i32_0 = arith.constant 0 : i32
    %c0_i32_1 = arith.constant 0 : i32
    return %c0_i32, %c0_i32_0 : i32, i32
  }
  func.func @transform_8(%arg0: i32) -> (i32, i32) {
    %c0_i32 = arith.constant 0 : i32
    %c0_i32_0 = arith.constant 0 : i32
    %c0_i32_1 = arith.constant 0 : i32
    return %c0_i32, %c0_i32_0 : i32, i32
  }
  func.func @transform_9(%arg0: i32) -> (i32, i32) {
    %c0_i32 = arith.constant 0 : i32
    %c0_i32_0 = arith.constant 0 : i32
    %c0_i32_1 = arith.constant 0 : i32
    return %c0_i32, %c0_i32_0 : i32, i32
  }
  func.func @transform_10(%arg0: i32) -> (i32, i32) {
    %c0_i32 = arith.constant 0 : i32
    %c0_i32_0 = arith.constant 0 : i32
    %c0_i32_1 = arith.constant 0 : i32
    return %c0_i32, %c0_i32_0 : i32, i32
  }
  func.func @transform_11(%arg0: i32) -> (i32, i32) {
    %c0_i32 = arith.constant 0 : i32
    %c0_i32_0 = arith.constant 0 : i32
    %c0_i32_1 = arith.constant 0 : i32
    return %c0_i32, %c0_i32_0 : i32, i32
  }
  func.func @transform_12(%arg0: i32) -> (i32, i32) {
    %c0_i32 = arith.constant 0 : i32
    %c0_i32_0 = arith.constant 0 : i32
    %c0_i32_1 = arith.constant 0 : i32
    return %c0_i32, %c0_i32_0 : i32, i32
  }
  func.func @transform_13(%arg0: i32) -> (i32, i32) {
    %c0_i32 = arith.constant 0 : i32
    %c0_i32_0 = arith.constant 0 : i32
    %c0_i32_1 = arith.constant 0 : i32
    return %c0_i32, %c0_i32_0 : i32, i32
  }
  func.func @transform_14(%arg0: i32) -> (i32, i32) {
    %c0_i32 = arith.constant 0 : i32
    %c0_i32_0 = arith.constant 0 : i32
    %c0_i32_1 = arith.constant 0 : i32
    return %c0_i32, %c0_i32_0 : i32, i32
  }
  func.func @transform_15(%arg0: i32) -> (i32, i32) {
    %c0_i32 = arith.constant 0 : i32
    %c0_i32_0 = arith.constant 0 : i32
    %c0_i32_1 = arith.constant 0 : i32
    return %c0_i32, %c0_i32_0 : i32, i32
  }
  func.func @transform_16(%arg0: i32) -> (i32, i32) {
    %c0_i32 = arith.constant 0 : i32
    %c0_i32_0 = arith.constant 0 : i32
    %c0_i32_1 = arith.constant 0 : i32
    return %c0_i32, %c0_i32_0 : i32, i32
  }
  func.func @transform_17(%arg0: i32) -> (i32, i32) {
    %c0_i32 = arith.constant 0 : i32
    %c0_i32_0 = arith.constant 0 : i32
    %c0_i32_1 = arith.constant 0 : i32
    return %c0_i32, %c0_i32_0 : i32, i32
  }
  func.func @transform_18(%arg0: i32) -> (i32, i32) {
    %c0_i32 = arith.constant 0 : i32
    %c0_i32_0 = arith.constant 0 : i32
    %c0_i32_1 = arith.constant 0 : i32
    return %c0_i32, %c0_i32_0 : i32, i32
  }
  func.func @transform_19(%arg0: i32) -> (i32, i32, i32) {
    %c0_i32 = arith.constant 0 : i32
    %c0_i32_0 = arith.constant 0 : i32
    %c0_i32_1 = arith.constant 0 : i32
    %c0_i32_2 = arith.constant 0 : i32
    return %c0_i32, %c0_i32_0, %c0_i32_1 : i32, i32, i32
  }
  func.func @transform_20(%arg0: i32) -> (i32, i32, i32) {
    %c0_i32 = arith.constant 0 : i32
    %c0_i32_0 = arith.constant 0 : i32
    %c0_i32_1 = arith.constant 0 : i32
    %c0_i32_2 = arith.constant 0 : i32
    return %c0_i32, %c0_i32_0, %c0_i32_1 : i32, i32, i32
  }
  func.func @transform_21(%arg0: i32) -> (i32, i32, i32) {
    %c0_i32 = arith.constant 0 : i32
    %c0_i32_0 = arith.constant 0 : i32
    %c0_i32_1 = arith.constant 0 : i32
    return %arg0, %c0_i32, %c0_i32_0 : i32, i32, i32
  }
  func.func @transform_22(%arg0: i32) -> (i32, i32, i32, i32) {
    %c0_i32 = arith.constant 0 : i32
    %c0_i32_0 = arith.constant 0 : i32
    %c0_i32_1 = arith.constant 0 : i32
    %c0_i32_2 = arith.constant 0 : i32
    return %arg0, %c0_i32, %c0_i32_0, %c0_i32_1 : i32, i32, i32, i32
  }
}

</mosaic_0001>

<llo_original>
// kernel: mefarg_forward.1
$region0: #{mefarg_forward.1}
  #allocation0 [shape = 'u32[]', space=smem, size = 0x4, offset = 0x4, fixed_abs, tag = 'smem constant byte address 0x4 - core index']
  #allocation1 [shape = 'u32[144,128]{1,0:T(1,128)}', space=vmem, size = 0x12000, scoped, tag = 'internal scratch']
  #allocation2 [shape = 'f32[216,32]{1,0:T(8,128)}', space=vmem, size = 0x1b000, scoped, tag = 'scratch operand']
  #allocation3 [shape = 'f32[216,32]{1,0:T(8,128)}', space=vmem, size = 0x1b000, scoped, tag = 'scratch operand']
  #allocation4 [shape = 'f32[216,27]{1,0:T(8,128)}', space=vmem, size = 0x1b000, scoped, tag = 'scratch operand']
  %s0 = inlined_call_operand.vmem [shape: f32[2,8,64], index: 0, kind: input, shape index: {}]
  %s1 = inlined_call_operand.vmem [shape: f32[64,32], index: 1, kind: input, shape index: {}]
  %s2 = inlined_call_operand.vmem [shape: f32[1,32], index: 2, kind: input, shape index: {}]
  %s3 = inlined_call_operand.vmem [shape: f32[32,864], index: 3, kind: input, shape index: {}]
  %s4 = inlined_call_operand.vmem [shape: f32[1,864], index: 4, kind: input, shape index: {}]
  %s5 = inlined_call_operand.vmem [shape: f32[32,16], index: 5, kind: input, shape index: {}]
  %s6 = inlined_call_operand.vmem [shape: f32[1,16], index: 6, kind: input, shape index: {}]
  %s7 = inlined_call_operand.vmem [shape: f32[32,16], index: 7, kind: input, shape index: {}]
  %s8 = inlined_call_operand.vmem [shape: f32[1,16], index: 8, kind: input, shape index: {}]
  %s9 = inlined_call_operand.vmem [shape: f32[32,32], index: 9, kind: input, shape index: {}]
  %s10 = inlined_call_operand.vmem [shape: f32[1,32], index: 10, kind: input, shape index: {}]
  %s11 = inlined_call_operand.vmem [shape: f32[32,16], index: 11, kind: input, shape index: {}]
  %s12 = inlined_call_operand.vmem [shape: f32[1,16], index: 12, kind: input, shape index: {}]
  %s13 = inlined_call_operand.vmem [shape: f32[32,16], index: 13, kind: input, shape index: {}]
  %s14 = inlined_call_operand.vmem [shape: f32[1,16], index: 14, kind: input, shape index: {}]
  %s15 = inlined_call_operand.vmem [shape: f32[32,32], index: 15, kind: input, shape index: {}]
  %s16 = inlined_call_operand.vmem [shape: f32[1,32], index: 16, kind: input, shape index: {}]
  %s17 = inlined_call_operand.vmem [shape: f32[216,27], index: 17, kind: input, shape index: {}]
  %s18 = inlined_call_operand.vmem [shape: f32[27,216], index: 18, kind: input, shape index: {}]
  %s19 = inlined_call_operand.vmem [shape: f32[27,27,32], index: 19, kind: input, shape index: {}]
  %s20 = inlined_call_operand.vmem [shape: f32[27,27,32], index: 20, kind: input, shape index: {}]
  %s21 = inlined_call_operand.vmem [shape: f32[2,27,32], index: 21, kind: output, shape index: {0}]
  %s22 = inlined_call_operand.vmem [shape: f32[2,27,27,32], index: 22, kind: output, shape index: {1}]
  %23 = xla_tuple %s21, %s22
  %s24 = sld [smem:[#allocation0]]
  $region132: #{mefarg_forward.1} parent=0
    _
  %s26 = ssub.s32 1, %s24
  %s27 = scalar_select 0, %s26, %s24
  loop: start=0, step=1, limit=4
  $region2: #{mefarg_forward.1} parent=0 // loop_pre_header
    _
  $region3: #{mefarg_forward.1} parent=0 // loop_header
    %s29 = sphi 0, %s33
    %p30 = scmp.ge.s32.totalorder %s29, 4
    %s39 = sphi 0, %s41
    %s42 = sphi 0, %s39
    %s43 = sphi 0, %s42
    %s59 = sphi 0, %s43
    %s63 = sphi 0, %s63
    %s65 = sphi 0, %s63
    %s66 = sphi 0, %s65
    %s80 = sphi 0, %s66
    %s84 = sphi 0, %s84
    %s86 = sphi 0, %s84
    %s87 = sphi 0, %s86
    %s101 = sphi 0, %s87
    %s105 = sphi 0, %s105
    %s107 = sphi 0, %s105
    %s108 = sphi 0, %s107
    %s122 = sphi 0, %s108
    %s126 = sphi 0, %s126
    %s128 = sphi 0, %s126
    %s129 = sphi 0, %s128
    %s143 = sphi 0, %s129
    %s147 = sphi 0, %s147
    %s149 = sphi 0, %s147
    %s150 = sphi 0, %s149
    %s164 = sphi 0, %s150
    %s168 = sphi 0, %s168
    %s170 = sphi 0, %s168
    %s171 = sphi 0, %s170
    %s185 = sphi 0, %s171
    %s189 = sphi 0, %s189
    %s191 = sphi 0, %s189
    %s192 = sphi 0, %s191
    %s206 = sphi 0, %s192
    %s210 = sphi 0, %s210
    %s212 = sphi 0, %s210
    %s213 = sphi 0, %s212
    %s227 = sphi 0, %s213
    %s231 = sphi 0, %s231
    %s233 = sphi 0, %s231
    %s234 = sphi 0, %s233
    %s248 = sphi 0, %s234
    %s252 = sphi 0, %s252
    %s254 = sphi 0, %s252
    %s255 = sphi 0, %s254
    %s269 = sphi 0, %s255
    %s273 = sphi 0, %s273
    %s275 = sphi 0, %s273
    %s276 = sphi 0, %s275
    %s290 = sphi 0, %s276
    %s294 = sphi 0, %s294
    %s296 = sphi 0, %s294
    %s297 = sphi 0, %s296
    %s311 = sphi 0, %s297
    %s315 = sphi 0, %s315
    %s317 = sphi 0, %s315
    %s318 = sphi 0, %s317
    %s332 = sphi 0, %s318
    %s336 = sphi 0, %s336
    %s338 = sphi 0, %s336
    %s339 = sphi 0, %s338
    %s353 = sphi 0, %s339
    %s357 = sphi 0, %s357
    %s359 = sphi 0, %s357
    %s360 = sphi 0, %s359
    %s374 = sphi 0, %s360
    %s378 = sphi 0, %s378
    %s380 = sphi 0, %s378
    %s381 = sphi 0, %s380
    %s395 = sphi 0, %s381
    %s399 = sphi 0, %s399
    %s401 = sphi 0, %s399
    %s402 = sphi 0, %s401
    %s416 = sphi 0, %s402
    %s420 = sphi 0, %s420
    %s422 = sphi 0, %s420
    %s423 = sphi 0, %s422
    %s437 = sphi 0, %s423
    %s441 = sphi 0, %s441
    %s443 = sphi 0, %s441
    %s444 = sphi 0, %s443
    %s458 = sphi 0, %s444
    %s462 = sphi 0, %s462
    %s464 = sphi 0, %s462
    %s465 = sphi 0, %s464
    %s479 = sphi 0, %s465
    %s485 = sphi 0, %s487
    %s488 = sphi 0, %s485
    %s489 = sphi 0, %s488
    %s505 = sphi 0, %s489
    %s511 = sphi 0, %s513
    %s514 = sphi 0, %s511
    %s515 = sphi 0, %s514
    %s531 = sphi 0, %s515
  $region4: #{mefarg_forward.1} parent=0 // loop_header_branch
    %32 = sbr.rel (%p30) target = $region8
  $region5: #{mefarg_forward.1} parent=0 // loop_body
    %s34 = ssub.s32 %s29, 1
    %s35 = ssub.s32 %s29, 2
    %s36 = sadd.s32 %s29, 1
    %s37 = ssub.s32 %s29, %s36
    %p38 = scmp.eq.s32.totalorder %s37, 0
    %s40 = sadd.s32 %s39, 1
    %s41 = scalar_select %p38, %s39, %s40
    %p44 = pneg %p38
    %p45 = scmp.eq.s32.totalorder %s29, 1
    %p46 = por %p44, %p45
    %p47 = scmp.ne.s32.totalorder %s39, %s42
    %p48 = scmp.eq.s32.totalorder %s29, 0
    %p49 = por %p47, %p48
    %p50 = scmp.ne.s32.totalorder %s39, %s42
    %p51 = scmp.eq.s32.totalorder %s34, 1
    %p52 = por %p50, %p51
    %p53 = scmp.ne.s32.totalorder %s42, %s43
    %p54 = scmp.eq.s32.totalorder %s34, 0
    %p55 = por %p53, %p54
    %p56 = scmp.ne.s32.totalorder %s42, %s43
    %p57 = scmp.eq.s32.totalorder %s35, 1
    %p58 = por %p56, %p57
    %p60 = scmp.ne.s32.totalorder %s43, %s59
    %p61 = scmp.eq.s32.totalorder %s35, 0
    %p62 = por %p60, %p61
    %s64 = sadd.s32 %s63, 1
    %p67 = scmp.eq.s32.totalorder %s29, 1
    %p68 = scmp.ne.s32.totalorder %s63, %s65
    %p69 = scmp.eq.s32.totalorder %s29, 0
    %p70 = por %p68, %p69
    %p71 = scmp.ne.s32.totalorder %s63, %s65
    %p72 = scmp.eq.s32.totalorder %s34, 1
    %p73 = por %p71, %p72
    %p74 = scmp.ne.s32.totalorder %s65, %s66
    %p75 = scmp.eq.s32.totalorder %s34, 0
    %p76 = por %p74, %p75
    %p77 = scmp.ne.s32.totalorder %s65, %s66
    %p78 = scmp.eq.s32.totalorder %s35, 1
    %p79 = por %p77, %p78
    %p81 = scmp.ne.s32.totalorder %s66, %s80
    %p82 = scmp.eq.s32.totalorder %s35, 0
    %p83 = por %p81, %p82
    %s85 = sadd.s32 %s84, 1
    %p88 = scmp.eq.s32.totalorder %s29, 1
    %p89 = scmp.ne.s32.totalorder %s84, %s86
    %p90 = scmp.eq.s32.totalorder %s29, 0
    %p91 = por %p89, %p90
    %p92 = scmp.ne.s32.totalorder %s84, %s86
    %p93 = scmp.eq.s32.totalorder %s34, 1
    %p94 = por %p92, %p93
    %p95 = scmp.ne.s32.totalorder %s86, %s87
    %p96 = scmp.eq.s32.totalorder %s34, 0
    %p97 = por %p95, %p96
    %p98 = scmp.ne.s32.totalorder %s86, %s87
    %p99 = scmp.eq.s32.totalorder %s35, 1
    %p100 = por %p98, %p99
    %p102 = scmp.ne.s32.totalorder %s87, %s101
    %p103 = scmp.eq.s32.totalorder %s35, 0
    %p104 = por %p102, %p103
    %s106 = sadd.s32 %s105, 1
    %p109 = scmp.eq.s32.totalorder %s29, 1
    %p110 = scmp.ne.s32.totalorder %s105, %s107
    %p111 = scmp.eq.s32.totalorder %s29, 0
    %p112 = por %p110, %p111
    %p113 = scmp.ne.s32.totalorder %s105, %s107
    %p114 = scmp.eq.s32.totalorder %s34, 1
    %p115 = por %p113, %p114
    %p116 = scmp.ne.s32.totalorder %s107, %s108
    %p117 = scmp.eq.s32.totalorder %s34, 0
    %p118 = por %p116, %p117
    %p119 = scmp.ne.s32.totalorder %s107, %s108
    %p120 = scmp.eq.s32.totalorder %s35, 1
    %p121 = por %p119, %p120
    %p123 = scmp.ne.s32.totalorder %s108, %s122
    %p124 = scmp.eq.s32.totalorder %s35, 0
    %p125 = por %p123, %p124
    %s127 = sadd.s32 %s126, 1
    %p130 = scmp.eq.s32.totalorder %s29, 1
    %p131 = scmp.ne.s32.totalorder %s126, %s128
    %p132 = scmp.eq.s32.totalorder %s29, 0
    %p133 = por %p131, %p132
    %p134 = scmp.ne.s32.totalorder %s126, %s128
    %p135 = scmp.eq.s32.totalorder %s34, 1
    %p136 = por %p134, %p135
    %p137 = scmp.ne.s32.totalorder %s128, %s129
    %p138 = scmp.eq.s32.totalorder %s34, 0
    %p139 = por %p137, %p138
    %p140 = scmp.ne.s32.totalorder %s128, %s129
    %p141 = scmp.eq.s32.totalorder %s35, 1
    %p142 = por %p140, %p141
    %p144 = scmp.ne.s32.totalorder %s129, %s143
    %p145 = scmp.eq.s32.totalorder %s35, 0
    %p146 = por %p144, %p145
    %s148 = sadd.s32 %s147, 1
    %p151 = scmp.eq.s32.totalorder %s29, 1
    %p152 = scmp.ne.s32.totalorder %s147, %s149
    %p153 = scmp.eq.s32.totalorder %s29, 0
    %p154 = por %p152, %p153
    %p155 = scmp.ne.s32.totalorder %s147, %s149
    %p156 = scmp.eq.s32.totalorder %s34, 1
    %p157 = por %p155, %p156
    %p158 = scmp.ne.s32.totalorder %s149, %s150
    %p159 = scmp.eq.s32.totalorder %s34, 0
    %p160 = por %p158, %p159
    %p161 = scmp.ne.s32.totalorder %s149, %s150
    %p162 = scmp.eq.s32.totalorder %s35, 1
    %p163 = por %p161, %p162
    %p165 = scmp.ne.s32.totalorder %s150, %s164
    %p166 = scmp.eq.s32.totalorder %s35, 0
    %p167 = por %p165, %p166
    %s169 = sadd.s32 %s168, 1
    %p172 = scmp.eq.s32.totalorder %s29, 1
    %p173 = scmp.ne.s32.totalorder %s168, %s170
    %p174 = scmp.eq.s32.totalorder %s29, 0
    %p175 = por %p173, %p174
    %p176 = scmp.ne.s32.totalorder %s168, %s170
    %p177 = scmp.eq.s32.totalorder %s34, 1
    %p178 = por %p176, %p177
    %p179 = scmp.ne.s32.totalorder %s170, %s171
    %p180 = scmp.eq.s32.totalorder %s34, 0
    %p181 = por %p179, %p180
    %p182 = scmp.ne.s32.totalorder %s170, %s171
    %p183 = scmp.eq.s32.totalorder %s35, 1
    %p184 = por %p182, %p183
    %p186 = scmp.ne.s32.totalorder %s171, %s185
    %p187 = scmp.eq.s32.totalorder %s35, 0
    %p188 = por %p186, %p187
    %s190 = sadd.s32 %s189, 1
    %p193 = scmp.eq.s32.totalorder %s29, 1
    %p194 = scmp.ne.s32.totalorder %s189, %s191
    %p195 = scmp.eq.s32.totalorder %s29, 0
    %p196 = por %p194, %p195
    %p197 = scmp.ne.s32.totalorder %s189, %s191
    %p198 = scmp.eq.s32.totalorder %s34, 1
    %p199 = por %p197, %p198
    %p200 = scmp.ne.s32.totalorder %s191, %s192
    %p201 = scmp.eq.s32.totalorder %s34, 0
    %p202 = por %p200, %p201
    %p203 = scmp.ne.s32.totalorder %s191, %s192
    %p204 = scmp.eq.s32.totalorder %s35, 1
    %p205 = por %p203, %p204
    %p207 = scmp.ne.s32.totalorder %s192, %s206
    %p208 = scmp.eq.s32.totalorder %s35, 0
    %p209 = por %p207, %p208
    %s211 = sadd.s32 %s210, 1
    %p214 = scmp.eq.s32.totalorder %s29, 1
    %p215 = scmp.ne.s32.totalorder %s210, %s212
    %p216 = scmp.eq.s32.totalorder %s29, 0
    %p217 = por %p215, %p216
    %p218 = scmp.ne.s32.totalorder %s210, %s212
    %p219 = scmp.eq.s32.totalorder %s34, 1
    %p220 = por %p218, %p219
    %p221 = scmp.ne.s32.totalorder %s212, %s213
    %p222 = scmp.eq.s32.totalorder %s34, 0
    %p223 = por %p221, %p222
    %p224 = scmp.ne.s32.totalorder %s212, %s213
    %p225 = scmp.eq.s32.totalorder %s35, 1
    %p226 = por %p224, %p225
    %p228 = scmp.ne.s32.totalorder %s213, %s227
    %p229 = scmp.eq.s32.totalorder %s35, 0
    %p230 = por %p228, %p229
    %s232 = sadd.s32 %s231, 1
    %p235 = scmp.eq.s32.totalorder %s29, 1
    %p236 = scmp.ne.s32.totalorder %s231, %s233
    %p237 = scmp.eq.s32.totalorder %s29, 0
    %p238 = por %p236, %p237
    %p239 = scmp.ne.s32.totalorder %s231, %s233
    %p240 = scmp.eq.s32.totalorder %s34, 1
    %p241 = por %p239, %p240
    %p242 = scmp.ne.s32.totalorder %s233, %s234
    %p243 = scmp.eq.s32.totalorder %s34, 0
    %p244 = por %p242, %p243
    %p245 = scmp.ne.s32.totalorder %s233, %s234
    %p246 = scmp.eq.s32.totalorder %s35, 1
    %p247 = por %p245, %p246
    %p249 = scmp.ne.s32.totalorder %s234, %s248
    %p250 = scmp.eq.s32.totalorder %s35, 0
    %p251 = por %p249, %p250
    %s253 = sadd.s32 %s252, 1
    %p256 = scmp.eq.s32.totalorder %s29, 1
    %p257 = scmp.ne.s32.totalorder %s252, %s254
    %p258 = scmp.eq.s32.totalorder %s29, 0
    %p259 = por %p257, %p258
    %p260 = scmp.ne.s32.totalorder %s252, %s254
    %p261 = scmp.eq.s32.totalorder %s34, 1
    %p262 = por %p260, %p261
    %p263 = scmp.ne.s32.totalorder %s254, %s255
    %p264 = scmp.eq.s32.totalorder %s34, 0
    %p265 = por %p263, %p264
    %p266 = scmp.ne.s32.totalorder %s254, %s255
    %p267 = scmp.eq.s32.totalorder %s35, 1
    %p268 = por %p266, %p267
    %p270 = scmp.ne.s32.totalorder %s255, %s269
    %p271 = scmp.eq.s32.totalorder %s35, 0
    %p272 = por %p270, %p271
    %s274 = sadd.s32 %s273, 1
    %p277 = scmp.eq.s32.totalorder %s29, 1
    %p278 = scmp.ne.s32.totalorder %s273, %s275
    %p279 = scmp.eq.s32.totalorder %s29, 0
    %p280 = por %p278, %p279
    %p281 = scmp.ne.s32.totalorder %s273, %s275
    %p282 = scmp.eq.s32.totalorder %s34, 1
    %p283 = por %p281, %p282
    %p284 = scmp.ne.s32.totalorder %s275, %s276
    %p285 = scmp.eq.s32.totalorder %s34, 0
    %p286 = por %p284, %p285
    %p287 = scmp.ne.s32.totalorder %s275, %s276
    %p288 = scmp.eq.s32.totalorder %s35, 1
    %p289 = por %p287, %p288
    %p291 = scmp.ne.s32.totalorder %s276, %s290
    %p292 = scmp.eq.s32.totalorder %s35, 0
    %p293 = por %p291, %p292
    %s295 = sadd.s32 %s294, 1
    %p298 = scmp.eq.s32.totalorder %s29, 1
    %p299 = scmp.ne.s32.totalorder %s294, %s296
    %p300 = scmp.eq.s32.totalorder %s29, 0
    %p301 = por %p299, %p300
    %p302 = scmp.ne.s32.totalorder %s294, %s296
    %p303 = scmp.eq.s32.totalorder %s34, 1
    %p304 = por %p302, %p303
    %p305 = scmp.ne.s32.totalorder %s296, %s297
    %p306 = scmp.eq.s32.totalorder %s34, 0
    %p307 = por %p305, %p306
    %p308 = scmp.ne.s32.totalorder %s296, %s297
    %p309 = scmp.eq.s32.totalorder %s35, 1
    %p310 = por %p308, %p309
    %p312 = scmp.ne.s32.totalorder %s297, %s311
    %p313 = scmp.eq.s32.totalorder %s35, 0
    %p314 = por %p312, %p313
    %s316 = sadd.s32 %s315, 1
    %p319 = scmp.eq.s32.totalorder %s29, 1
    %p320 = scmp.ne.s32.totalorder %s315, %s317
    %p321 = scmp.eq.s32.totalorder %s29, 0
    %p322 = por %p320, %p321
    %p323 = scmp.ne.s32.totalorder %s315, %s317
    %p324 = scmp.eq.s32.totalorder %s34, 1
    %p325 = por %p323, %p324
    %p326 = scmp.ne.s32.totalorder %s317, %s318
    %p327 = scmp.eq.s32.totalorder %s34, 0
    %p328 = por %p326, %p327
    %p329 = scmp.ne.s32.totalorder %s317, %s318
    %p330 = scmp.eq.s32.totalorder %s35, 1
    %p331 = por %p329, %p330
    %p333 = scmp.ne.s32.totalorder %s318, %s332
    %p334 = scmp.eq.s32.totalorder %s35, 0
    %p335 = por %p333, %p334
    %s337 = sadd.s32 %s336, 1
    %p340 = scmp.eq.s32.totalorder %s29, 1
    %p341 = scmp.ne.s32.totalorder %s336, %s338
    %p342 = scmp.eq.s32.totalorder %s29, 0
    %p343 = por %p341, %p342
    %p344 = scmp.ne.s32.totalorder %s336, %s338
    %p345 = scmp.eq.s32.totalorder %s34, 1
    %p346 = por %p344, %p345
    %p347 = scmp.ne.s32.totalorder %s338, %s339
    %p348 = scmp.eq.s32.totalorder %s34, 0
    %p349 = por %p347, %p348
    %p350 = scmp.ne.s32.totalorder %s338, %s339
    %p351 = scmp.eq.s32.totalorder %s35, 1
    %p352 = por %p350, %p351
    %p354 = scmp.ne.s32.totalorder %s339, %s353
    %p355 = scmp.eq.s32.totalorder %s35, 0
    %p356 = por %p354, %p355
    %s358 = sadd.s32 %s357, 1
    %p361 = scmp.eq.s32.totalorder %s29, 1
    %p362 = scmp.ne.s32.totalorder %s357, %s359
    %p363 = scmp.eq.s32.totalorder %s29, 0
    %p364 = por %p362, %p363
    %p365 = scmp.ne.s32.totalorder %s357, %s359
    %p366 = scmp.eq.s32.totalorder %s34, 1
    %p367 = por %p365, %p366
    %p368 = scmp.ne.s32.totalorder %s359, %s360
    %p369 = scmp.eq.s32.totalorder %s34, 0
    %p370 = por %p368, %p369
    %p371 = scmp.ne.s32.totalorder %s359, %s360
    %p372 = scmp.eq.s32.totalorder %s35, 1
    %p373 = por %p371, %p372
    %p375 = scmp.ne.s32.totalorder %s360, %s374
    %p376 = scmp.eq.s32.totalorder %s35, 0
    %p377 = por %p375, %p376
    %s379 = sadd.s32 %s378, 1
    %p382 = scmp.eq.s32.totalorder %s29, 1
    %p383 = scmp.ne.s32.totalorder %s378, %s380
    %p384 = scmp.eq.s32.totalorder %s29, 0
    %p385 = por %p383, %p384
    %p386 = scmp.ne.s32.totalorder %s378, %s380
    %p387 = scmp.eq.s32.totalorder %s34, 1
    %p388 = por %p386, %p387
    %p389 = scmp.ne.s32.totalorder %s380, %s381
    %p390 = scmp.eq.s32.totalorder %s34, 0
    %p391 = por %p389, %p390
    %p392 = scmp.ne.s32.totalorder %s380, %s381
    %p393 = scmp.eq.s32.totalorder %s35, 1
    %p394 = por %p392, %p393
    %p396 = scmp.ne.s32.totalorder %s381, %s395
    %p397 = scmp.eq.s32.totalorder %s35, 0
    %p398 = por %p396, %p397
    %s400 = sadd.s32 %s399, 1
    %p403 = scmp.eq.s32.totalorder %s29, 1
    %p404 = scmp.ne.s32.totalorder %s399, %s401
    %p405 = scmp.eq.s32.totalorder %s29, 0
    %p406 = por %p404, %p405
    %p407 = scmp.ne.s32.totalorder %s399, %s401
    %p408 = scmp.eq.s32.totalorder %s34, 1
    %p409 = por %p407, %p408
    %p410 = scmp.ne.s32.totalorder %s401, %s402
    %p411 = scmp.eq.s32.totalorder %s34, 0
    %p412 = por %p410, %p411
    %p413 = scmp.ne.s32.totalorder %s401, %s402
    %p414 = scmp.eq.s32.totalorder %s35, 1
    %p415 = por %p413, %p414
    %p417 = scmp.ne.s32.totalorder %s402, %s416
    %p418 = scmp.eq.s32.totalorder %s35, 0
    %p419 = por %p417, %p418
    %s421 = sadd.s32 %s420, 1
    %p424 = scmp.eq.s32.totalorder %s29, 1
    %p425 = scmp.ne.s32.totalorder %s420, %s422
    %p426 = scmp.eq.s32.totalorder %s29, 0
    %p427 = por %p425, %p426
    %p428 = scmp.ne.s32.totalorder %s420, %s422
    %p429 = scmp.eq.s32.totalorder %s34, 1
    %p430 = por %p428, %p429
    %p431 = scmp.ne.s32.totalorder %s422, %s423
    %p432 = scmp.eq.s32.totalorder %s34, 0
    %p433 = por %p431, %p432
    %p434 = scmp.ne.s32.totalorder %s422, %s423
    %p435 = scmp.eq.s32.totalorder %s35, 1
    %p436 = por %p434, %p435
    %p438 = scmp.ne.s32.totalorder %s423, %s437
    %p439 = scmp.eq.s32.totalorder %s35, 0
    %p440 = por %p438, %p439
    %s442 = sadd.s32 %s441, 1
    %p445 = scmp.eq.s32.totalorder %s29, 1
    %p446 = scmp.ne.s32.totalorder %s441, %s443
    %p447 = scmp.eq.s32.totalorder %s29, 0
    %p448 = por %p446, %p447
    %p449 = scmp.ne.s32.totalorder %s441, %s443
    %p450 = scmp.eq.s32.totalorder %s34, 1
    %p451 = por %p449, %p450
    %p452 = scmp.ne.s32.totalorder %s443, %s444
    %p453 = scmp.eq.s32.totalorder %s34, 0
    %p454 = por %p452, %p453
    %p455 = scmp.ne.s32.totalorder %s443, %s444
    %p456 = scmp.eq.s32.totalorder %s35, 1
    %p457 = por %p455, %p456
    %p459 = scmp.ne.s32.totalorder %s444, %s458
    %p460 = scmp.eq.s32.totalorder %s35, 0
    %p461 = por %p459, %p460
    %s463 = sadd.s32 %s462, 1
    %p466 = scmp.eq.s32.totalorder %s29, 1
    %p467 = scmp.ne.s32.totalorder %s462, %s464
    %p468 = scmp.eq.s32.totalorder %s29, 0
    %p469 = por %p467, %p468
    %p470 = scmp.ne.s32.totalorder %s462, %s464
    %p471 = scmp.eq.s32.totalorder %s34, 1
    %p472 = por %p470, %p471
    %p473 = scmp.ne.s32.totalorder %s464, %s465
    %p474 = scmp.eq.s32.totalorder %s34, 0
    %p475 = por %p473, %p474
    %p476 = scmp.ne.s32.totalorder %s464, %s465
    %p477 = scmp.eq.s32.totalorder %s35, 1
    %p478 = por %p476, %p477
    %p480 = scmp.ne.s32.totalorder %s465, %s479
    %p481 = scmp.eq.s32.totalorder %s35, 0
    %p482 = por %p480, %p481
    %s483 = ssub.s32 %s29, %s36
    %p484 = scmp.eq.s32.totalorder %s483, 0
    %s486 = sadd.s32 %s485, 1
    %s487 = scalar_select %p484, %s485, %s486
    %p490 = pneg %p484
    %p491 = scmp.eq.s32.totalorder %s29, 1
    %p492 = por %p490, %p491
    %p493 = scmp.ne.s32.totalorder %s485, %s488
    %p494 = scmp.eq.s32.totalorder %s29, 0
    %p495 = por %p493, %p494
    %p496 = scmp.ne.s32.totalorder %s485, %s488
    %p497 = scmp.eq.s32.totalorder %s34, 1
    %p498 = por %p496, %p497
    %p499 = scmp.ne.s32.totalorder %s488, %s489
    %p500 = scmp.eq.s32.totalorder %s34, 0
    %p501 = por %p499, %p500
    %p502 = scmp.ne.s32.totalorder %s488, %s489
    %p503 = scmp.eq.s32.totalorder %s35, 1
    %p504 = por %p502, %p503
    %p506 = scmp.ne.s32.totalorder %s489, %s505
    %p507 = scmp.eq.s32.totalorder %s35, 0
    %p508 = por %p506, %p507
    %s509 = ssub.s32 %s29, %s36
    %p510 = scmp.eq.s32.totalorder %s509, 0
    %s512 = sadd.s32 %s511, 1
    %s513 = scalar_select %p510, %s511, %s512
    %p516 = pneg %p510
    %p517 = scmp.eq.s32.totalorder %s29, 1
    %p518 = por %p516, %p517
    %p519 = scmp.ne.s32.totalorder %s511, %s514
    %p520 = scmp.eq.s32.totalorder %s29, 0
    %p521 = por %p519, %p520
    %p522 = scmp.ne.s32.totalorder %s511, %s514
    %p523 = scmp.eq.s32.totalorder %s34, 1
    %p524 = por %p522, %p523
    %p525 = scmp.ne.s32.totalorder %s514, %s515
    %p526 = scmp.eq.s32.totalorder %s34, 0
    %p527 = por %p525, %p526
    %p528 = scmp.ne.s32.totalorder %s514, %s515
    %p529 = scmp.eq.s32.totalorder %s35, 1
    %p530 = por %p528, %p529
    %p532 = scmp.ne.s32.totalorder %s515, %s531
    %p533 = scmp.eq.s32.totalorder %s35, 0
    %p534 = por %p532, %p533
    %p535 = scmp.le.s32.totalorder 1, %s29
    %p536 = scmp.lt.s32.totalorder %s29, 3
    %p537 = pnand %p535, %p536
    %p538 = pneg %p537
    // Predicated region
    $region9: #{mefarg_forward.1} parent=5 // pred_check
      _
    $region10: #{mefarg_forward.1} parent=5 // pred_check_branch
      %540 = sbr.rel (%p537) target = $region12
    $region11: #{mefarg_forward.1} parent=5 // pred_region
      %s541 = ssub.s32 %s29, 1
      // Predicated region
      $region13: #{mefarg_forward.1} parent=11 // pred_check
        %p542 = pneg %p76
      $region14: #{mefarg_forward.1} parent=11 // pred_check_branch
        %544 = sbr.rel (%p542) target = $region16
      $region15: #{mefarg_forward.1} parent=11 // pred_region
        _
      $region16: #{mefarg_forward.1} parent=11 // pred_fallthru
        _
      // Predicated region
      $region17: #{mefarg_forward.1} parent=11 // pred_check
        %p545 = pneg %p97
      $region18: #{mefarg_forward.1} parent=11 // pred_check_branch
        %547 = sbr.rel (%p545) target = $region20
      $region19: #{mefarg_forward.1} parent=11 // pred_region
        _
      $region20: #{mefarg_forward.1} parent=11 // pred_fallthru
        _
      // Predicated region
      $region21: #{mefarg_forward.1} parent=11 // pred_check
        %p548 = pneg %p118
      $region22: #{mefarg_forward.1} parent=11 // pred_check_branch
        %550 = sbr.rel (%p548) target = $region24
      $region23: #{mefarg_forward.1} parent=11 // pred_region
        _
      $region24: #{mefarg_forward.1} parent=11 // pred_fallthru
        _
      // Predicated region
      $region25: #{mefarg_forward.1} parent=11 // pred_check
        %p551 = pneg %p139
      $region26: #{mefarg_forward.1} parent=11 // pred_check_branch
        %553 = sbr.rel (%p551) target = $region28
      $region27: #{mefarg_forward.1} parent=11 // pred_region
        _
      $region28: #{mefarg_forward.1} parent=11 // pred_fallthru
        _
      // Predicated region
      $region29: #{mefarg_forward.1} parent=11 // pred_check
        %p554 = pneg %p160
      $region30: #{mefarg_forward.1} parent=11 // pred_check_branch
        %556 = sbr.rel (%p554) target = $region32
      $region31: #{mefarg_forward.1} parent=11 // pred_region
        _
      $region32: #{mefarg_forward.1} parent=11 // pred_fallthru
        _
      // Predicated region
      $region33: #{mefarg_forward.1} parent=11 // pred_check
        %p557 = pneg %p181
      $region34: #{mefarg_forward.1} parent=11 // pred_check_branch
        %559 = sbr.rel (%p557) target = $region36
      $region35: #{mefarg_forward.1} parent=11 // pred_region
        _
      $region36: #{mefarg_forward.1} parent=11 // pred_fallthru
        _
      // Predicated region
      $region37: #{mefarg_forward.1} parent=11 // pred_check
        %p560 = pneg %p202
      $region38: #{mefarg_forward.1} parent=11 // pred_check_branch
        %562 = sbr.rel (%p560) target = $region40
      $region39: #{mefarg_forward.1} parent=11 // pred_region
        _
      $region40: #{mefarg_forward.1} parent=11 // pred_fallthru
        _
      // Predicated region
      $region41: #{mefarg_forward.1} parent=11 // pred_check
        %p563 = pneg %p223
      $region42: #{mefarg_forward.1} parent=11 // pred_check_branch
        %565 = sbr.rel (%p563) target = $region44
      $region43: #{mefarg_forward.1} parent=11 // pred_region
        _
      $region44: #{mefarg_forward.1} parent=11 // pred_fallthru
        _
      // Predicated region
      $region45: #{mefarg_forward.1} parent=11 // pred_check
        %p566 = pneg %p244
      $region46: #{mefarg_forward.1} parent=11 // pred_check_branch
        %568 = sbr.rel (%p566) target = $region48
      $region47: #{mefarg_forward.1} parent=11 // pred_region
        _
      $region48: #{mefarg_forward.1} parent=11 // pred_fallthru
        _
      // Predicated region
      $region49: #{mefarg_forward.1} parent=11 // pred_check
        %p569 = pneg %p265
      $region50: #{mefarg_forward.1} parent=11 // pred_check_branch
        %571 = sbr.rel (%p569) target = $region52
      $region51: #{mefarg_forward.1} parent=11 // pred_region
        _
      $region52: #{mefarg_forward.1} parent=11 // pred_fallthru
        _
      // Predicated region
      $region53: #{mefarg_forward.1} parent=11 // pred_check
        %p572 = pneg %p286
      $region54: #{mefarg_forward.1} parent=11 // pred_check_branch
        %574 = sbr.rel (%p572) target = $region56
      $region55: #{mefarg_forward.1} parent=11 // pred_region
        _
      $region56: #{mefarg_forward.1} parent=11 // pred_fallthru
        _
      // Predicated region
      $region57: #{mefarg_forward.1} parent=11 // pred_check
        %p575 = pneg %p307
      $region58: #{mefarg_forward.1} parent=11 // pred_check_branch
        %577 = sbr.rel (%p575) target = $region60
      $region59: #{mefarg_forward.1} parent=11 // pred_region
        _
      $region60: #{mefarg_forward.1} parent=11 // pred_fallthru
        _
      // Predicated region
      $region61: #{mefarg_forward.1} parent=11 // pred_check
        %p578 = pneg %p328
      $region62: #{mefarg_forward.1} parent=11 // pred_check_branch
        %580 = sbr.rel (%p578) target = $region64
      $region63: #{mefarg_forward.1} parent=11 // pred_region
        _
      $region64: #{mefarg_forward.1} parent=11 // pred_fallthru
        _
      // Predicated region
      $region65: #{mefarg_forward.1} parent=11 // pred_check
        %p581 = pneg %p349
      $region66: #{mefarg_forward.1} parent=11 // pred_check_branch
        %583 = sbr.rel (%p581) target = $region68
      $region67: #{mefarg_forward.1} parent=11 // pred_region
        _
      $region68: #{mefarg_forward.1} parent=11 // pred_fallthru
        _
      // Predicated region
      $region69: #{mefarg_forward.1} parent=11 // pred_check
        %p584 = pneg %p370
      $region70: #{mefarg_forward.1} parent=11 // pred_check_branch
        %586 = sbr.rel (%p584) target = $region72
      $region71: #{mefarg_forward.1} parent=11 // pred_region
        _
      $region72: #{mefarg_forward.1} parent=11 // pred_fallthru
        _
      // Predicated region
      $region73: #{mefarg_forward.1} parent=11 // pred_check
        %p587 = pneg %p391
      $region74: #{mefarg_forward.1} parent=11 // pred_check_branch
        %589 = sbr.rel (%p587) target = $region76
      $region75: #{mefarg_forward.1} parent=11 // pred_region
        _
      $region76: #{mefarg_forward.1} parent=11 // pred_fallthru
        _
      // Predicated region
      $region77: #{mefarg_forward.1} parent=11 // pred_check
        %p590 = pneg %p412
      $region78: #{mefarg_forward.1} parent=11 // pred_check_branch
        %592 = sbr.rel (%p590) target = $region80
      $region79: #{mefarg_forward.1} parent=11 // pred_region
        _
      $region80: #{mefarg_forward.1} parent=11 // pred_fallthru
        _
      // Predicated region
      $region81: #{mefarg_forward.1} parent=11 // pred_check
        %p593 = pneg %p433
      $region82: #{mefarg_forward.1} parent=11 // pred_check_branch
        %595 = sbr.rel (%p593) target = $region84
      $region83: #{mefarg_forward.1} parent=11 // pred_region
        _
      $region84: #{mefarg_forward.1} parent=11 // pred_fallthru
        _
      // Predicated region
      $region85: #{mefarg_forward.1} parent=11 // pred_check
        %p596 = pneg %p454
      $region86: #{mefarg_forward.1} parent=11 // pred_check_branch
        %598 = sbr.rel (%p596) target = $region88
      $region87: #{mefarg_forward.1} parent=11 // pred_region
        _
      $region88: #{mefarg_forward.1} parent=11 // pred_fallthru
        _
      // Predicated region
      $region89: #{mefarg_forward.1} parent=11 // pred_check
        %p599 = pneg %p475
      $region90: #{mefarg_forward.1} parent=11 // pred_check_branch
        %601 = sbr.rel (%p599) target = $region92
      $region91: #{mefarg_forward.1} parent=11 // pred_region
        _
      $region92: #{mefarg_forward.1} parent=11 // pred_fallthru
        _
    $region12: #{mefarg_forward.1} parent=5 // pred_fallthru
      _
    %p602 = scmp.lt.s32.totalorder %s29, 2
    // Predicated region
    $region93: #{mefarg_forward.1} parent=5 // pred_check
      %p603 = pneg %p602
    $region94: #{mefarg_forward.1} parent=5 // pred_check_branch
      %605 = sbr.rel (%p603) target = $region96
    $region95: #{mefarg_forward.1} parent=5 // pred_region
      // Predicated region
      $region97: #{mefarg_forward.1} parent=95 // pred_check
        %p606 = pneg %p49
      $region98: #{mefarg_forward.1} parent=95 // pred_check_branch
        %608 = sbr.rel (%p606) target = $region100
      $region99: #{mefarg_forward.1} parent=95 // pred_region
        %p609 = scmp.lt.s32.totalorder %s29, 1
        %s610 = scalar_select %p609, %s29, 1
        %s611 = smul.addr %s610, 8
        %s612 = scalar_lea.vmem %s0, %s611
      $region100: #{mefarg_forward.1} parent=95 // pred_fallthru
        _
    $region96: #{mefarg_forward.1} parent=5 // pred_fallthru
      _
    %p613 = scmp.le.s32.totalorder 1, %s29
    %p614 = scmp.lt.s32.totalorder %s29, 3
    %p615 = pnand %p613, %p614
    %p616 = pneg %p615
    // Predicated region
    $region101: #{mefarg_forward.1} parent=5 // pred_check
      _
    $region102: #{mefarg_forward.1} parent=5 // pred_check_branch
      %618 = sbr.rel (%p615) target = $region104
    $region103: #{mefarg_forward.1} parent=5 // pred_region
      %s619 = ssub.s32 %s29, 1
      %p620 = scmp.lt.s32.totalorder %s34, 1
      %s621 = scalar_select %p620, %s34, 1
      %s622 = smul.addr %s621, 8
      %s623 = scalar_lea.vmem %s0, %s622
      %p624 = pneg %p55
      %p625 = pneg %p52
      %p626 = pneg %p76
      %p627 = pneg %p73
      %p628 = pneg %p97
      %p629 = pneg %p94
      %p630 = pneg %p118
      %p631 = pneg %p115
      %p632 = pneg %p139
      %p633 = pneg %p136
      %p634 = pneg %p160
      %p635 = pneg %p157
      %p636 = pneg %p181
      %p637 = pneg %p178
      %p638 = pneg %p202
      %p639 = pneg %p199
      %p640 = pneg %p223
      %p641 = pneg %p220
      %p642 = pneg %p244
      %p643 = pneg %p241
      %p644 = pneg %p265
      %p645 = pneg %p262
      %p646 = pneg %p286
      %p647 = pneg %p283
      %p648 = pneg %p307
      %p649 = pneg %p304
      %p650 = pneg %p328
      %p651 = pneg %p325
      %p652 = pneg %p349
      %p653 = pneg %p346
      %p654 = pneg %p370
      %p655 = pneg %p367
      %p656 = pneg %p391
      %p657 = pneg %p388
      %p658 = pneg %p412
      %p659 = pneg %p409
      %p660 = pneg %p433
      %p661 = pneg %p430
      %p662 = pneg %p454
      %p663 = pneg %p451
      %p664 = pneg %p475
      %p665 = pneg %p472
      %p666 = pneg %p501
      %p667 = pneg %p498
      %p668 = scmp.lt.s32.totalorder %s34, 1
      %s669 = scalar_select %p668, %s34, 1
      %s670 = smul.addr %s669, 4
      %s671 = smul.addr %s670, 8
      %s672 = scalar_lea.vmem %s21, %s671
      %p673 = pneg %p527
      %p674 = pneg %p524
      %p675 = scmp.lt.s32.totalorder %s34, 1
      %s676 = scalar_select %p675, %s34, 1
      %s677 = smul.addr %s676, 108
      %s678 = smul.addr %s677, 8
      %s679 = scalar_lea.vmem %s22, %s678
      %p680 = scmp.lt.s32.totalorder %s34, 1
      %s681 = scalar_select %p680, %s34, 1
      %s682 = smul.addr %s681, 8
      %s683 = scalar_lea.vmem %s0, %s682
      %p684 = scmp.lt.s32.totalorder %s34, 1
      %s685 = scalar_select %p684, %s34, 1
      %s686 = smul.addr %s685, 4
      %s687 = smul.addr %s686, 8
      %s688 = scalar_lea.vmem %s21, %s687
      %p689 = scmp.lt.s32.totalorder %s34, 1
      %s690 = scalar_select %p689, %s34, 1
      %s691 = smul.addr %s690, 108
      %s692 = smul.addr %s691, 8
      %s693 = scalar_lea.vmem %s22, %s692
      %v694 = vld [vmem:[%s683] sm:$0xff]
      %v695 = vld [vmem:[%s1] sm:$0xff]
      %v696 = vld [vmem:[%s1 + $0x8] sm:$0xff]
      %v697 = vld [vmem:[%s1 + $0x10] sm:$0xff]
      %v698 = vld [vmem:[%s1 + $0x18] sm:$0xff]
      %v699 = vld [vmem:[%s1 + $0x20] sm:$0xff]
      %v700 = vld [vmem:[%s1 + $0x28] sm:$0xff]
      %v701 = vld [vmem:[%s1 + $0x30] sm:$0xff]
      %v702 = vld [vmem:[%s1 + $0x38] sm:$0xff]
      %v703 = vld [vmem:[%s2] sm:$0x1]
      %v705 = vlaneseq
      %v706 = vshrl.u32 %v705, 7
      %v707 = vsub.s32 0, %v706
      %v708 = vrot.slane %v703, %v707
      %vm710 = vcmask 523264
      %v712 = vsel %vm710, %v694, 0
      %714 = vmatprep.subr.mxu0 0.0
      %715 = vmatpush1.msra.mxu0 %v695
      %716 = vmatprep.subr.mxu0 0.0
      %717 = vmatpush1.msra.mxu0 %v696
      %718 = vmatprep.subr.mxu0 0.0
      %719 = vmatpush1.msra.mxu0 %v697
      %720 = vmatprep.subr.mxu0 0.0
      %721 = vmatpush1.msra.mxu0 %v698
      %722 = vmatprep.subr.mxu0 0.0
      %723 = vmatpush1.msra.mxu0 %v699
      %724 = vmatprep.subr.mxu0 0.0
      %725 = vmatpush1.msra.mxu0 %v700
      %726 = vmatprep.subr.mxu0 0.0
      %727 = vmatpush1.msra.mxu0 %v701
      %728 = vmatprep.subr.mxu0 0.0
      %729 = vmatpush1.msra.mxu0 %v702
      %730 = vmatprep.subr.mxu0 0.0
      %731 = vmatpush1.msra.mxu0 0.0
      %732 = vmatprep.subr.mxu0 0.0
      %733 = vmatpush1.msra.mxu0 0.0
      %734 = vmatprep.subr.mxu0 0.0
      %735 = vmatpush1.msra.mxu0 0.0
      %736 = vmatprep.subr.mxu0 0.0
      %737 = vmatpush1.msra.mxu0 0.0
      %738 = vmatprep.subr.mxu0 0.0
      %739 = vmatpush1.msra.mxu0 0.0
      %740 = vmatprep.subr.mxu0 0.0
      %741 = vmatpush1.msra.mxu0 0.0
      %742 = vmatprep.subr.mxu0 0.0
      %743 = vmatpush1.msra.mxu0 0.0
      %744 = vmatprep.subr.mxu0 0.0
      %745 = vmatpush1.msra.mxu0 0.0
      %746 = vmatprep.subr.mxu0 0.0
      %747 = vmatpush1.msra.mxu0 0.0
      %748 = vmatprep.subr.mxu0 0.0
      %749 = vmatpush1.msra.mxu0 0.0
      %750 = vmatprep.subr.mxu0 0.0
      %751 = vmatpush1.msra.mxu0 0.0
      %752 = vmatprep.subr.mxu0 0.0
      %753 = vmatpush1.msra.mxu0 0.0
      %754 = vmatprep.subr.mxu0 0.0
      %755 = vmatpush1.msra.mxu0 0.0
      %756 = vmatprep.subr.mxu0 0.0
      %757 = vmatpush1.msra.mxu0 0.0
      %758 = vmatprep.subr.mxu0 0.0
      %759 = vmatpush1.msra.mxu0 0.0
      %760 = vmatprep.subr.mxu0 0.0
      %761 = vmatpush1.msra.mxu0 0.0
      %762 = vmatprep.subr.mxu0 0.0
      %763 = vmatpush1.msra.mxu0 0.0
      %764 = vmatprep.subr.mxu0 0.0
      %765 = vmatpush1.msra.mxu0 0.0
      %766 = vmatprep.subr.mxu0 0.0
      %767 = vmatpush1.msra.mxu0 0.0
      %768 = vmatprep.subr.mxu0 0.0
      %769 = vmatpush1.msra.mxu0 0.0
      %770 = vmatprep.subr.mxu0 0.0
      %771 = vmatpush1.msra.mxu0 0.0
      %772 = vmatprep.subr.mxu0 0.0
      %773 = vmatpush1.msra.mxu0 0.0
      %774 = vmatprep.subr.mxu0 0.0
      %775 = vmatpush1.msra.mxu0 0.0
      %776 = vmatprep.subr.mxu0 0.0
      %777 = vmatpush1.msra.mxu0 0.0
      %778 = vmatprep.mubr.f32.mxu0 0.0
      %779 = vmatmul.mubr.f32.gmra.mrb[0].mxu0 %v712
      %v780 = vpop.f32.mrb[0].mxu0
      %v781 = vadd.f32 %v708, %v780
      %v782 = vpop.f32.mrb[0].mxu0
      %783 = vdwg.mxu0
      %v784 = vmax.f32 %v781, 0.0
      %v785 = vld [vmem:[%s3] sm:$0xff]
      %v786 = vld [vmem:[%s3 + $0x8] sm:$0xff]
      %v787 = vld [vmem:[%s3 + $0x10] sm:$0xff]
      %v788 = vld [vmem:[%s3 + $0x18] sm:$0xff]
      %v789 = vld [vmem:[%s3 + $0x20] sm:$0xff]
      %v790 = vld [vmem:[%s3 + $0x28] sm:$0xff]
      %v791 = vld [vmem:[%s3 + $0x30] sm:$0xff]
      %v792 = vld [vmem:[%s3 + $0x38] sm:$0xff]
      %v793 = vld [vmem:[%s3 + $0x40] sm:$0xff]
      %v794 = vld [vmem:[%s3 + $0x48] sm:$0xff]
      %v795 = vld [vmem:[%s3 + $0x50] sm:$0xff]
      %v796 = vld [vmem:[%s3 + $0x58] sm:$0xff]
      %v797 = vld [vmem:[%s3 + $0x60] sm:$0xff]
      %v798 = vld [vmem:[%s3 + $0x68] sm:$0xff]
      %v799 = vld [vmem:[%s3 + $0x70] sm:$0xff]
      %v800 = vld [vmem:[%s3 + $0x78] sm:$0xff]
      %v801 = vld [vmem:[%s3 + $0x80] sm:$0xff]
      %v802 = vld [vmem:[%s3 + $0x88] sm:$0xff]
      %v803 = vld [vmem:[%s3 + $0x90] sm:$0xff]
      %v804 = vld [vmem:[%s3 + $0x98] sm:$0xff]
      %v805 = vld [vmem:[%s3 + $0xa0] sm:$0xff]
      %v806 = vld [vmem:[%s3 + $0xa8] sm:$0xff]
      %v807 = vld [vmem:[%s3 + $0xb0] sm:$0xff]
      %v808 = vld [vmem:[%s3 + $0xb8] sm:$0xff]
      %v809 = vld [vmem:[%s3 + $0xc0] sm:$0xff]
      %v810 = vld [vmem:[%s3 + $0xc8] sm:$0xff]
      %v811 = vld [vmem:[%s3 + $0xd0] sm:$0xff]
      %v812 = vld [vmem:[%s3 + $0xd8] sm:$0xff]
      %v813 = vld [vmem:[%s4] sm:$0x7f]
      %v815 = vlaneseq
      %v816 = vshrl.u32 %v815, 7
      %v817 = vsub.s32 0, %v816
      %v818 = vrot.slane %v813, %v817
      %v819 = vlaneseq
      %v820 = vshrl.u32 %v819, 7
      %v821 = vsub.s32 1, %v820
      %v822 = vrot.slane %v813, %v821
      %v823 = vlaneseq
      %v824 = vshrl.u32 %v823, 7
      %v825 = vsub.s32 2, %v824
      %v826 = vrot.slane %v813, %v825
      %v827 = vlaneseq
      %v828 = vshrl.u32 %v827, 7
      %v829 = vsub.s32 3, %v828
      %v830 = vrot.slane %v813, %v829
      %v831 = vlaneseq
      %v832 = vshrl.u32 %v831, 7
      %v833 = vsub.s32 4, %v832
      %v834 = vrot.slane %v813, %v833
      %v835 = vlaneseq
      %v836 = vshrl.u32 %v835, 7
      %v837 = vsub.s32 5, %v836
      %v838 = vrot.slane %v813, %v837
      %v839 = vlaneseq
      %v840 = vshrl.u32 %v839, 7
      %v841 = vsub.s32 6, %v840
      %v842 = vrot.slane %v813, %v841
      %vm850 = vcmask 261120
      %v852 = vsel %vm850, %v784, 0
      %854 = vmatprep.subr.mxu0 %v786
      %855 = vmatpush1.msra.mxu0 %v785
      %856 = vmatprep.subr.mxu0 %v793
      %857 = vmatpush1.msra.mxu0 %v792
      %858 = vmatprep.subr.mxu0 %v800
      %859 = vmatpush1.msra.mxu0 %v799
      %860 = vmatprep.subr.mxu0 %v807
      %861 = vmatpush1.msra.mxu0 %v806
      %862 = vmatprep.subr.mxu0 0.0
      %863 = vmatpush1.msra.mxu0 0.0
      %864 = vmatprep.subr.mxu0 0.0
      %865 = vmatpush1.msra.mxu0 0.0
      %866 = vmatprep.subr.mxu0 0.0
      %867 = vmatpush1.msra.mxu0 0.0
      %868 = vmatprep.subr.mxu0 0.0
      %869 = vmatpush1.msra.mxu0 0.0
      %870 = vmatprep.subr.mxu0 0.0
      %871 = vmatpush1.msra.mxu0 0.0
      %872 = vmatprep.subr.mxu0 0.0
      %873 = vmatpush1.msra.mxu0 0.0
      %874 = vmatprep.subr.mxu0 0.0
      %875 = vmatpush1.msra.mxu0 0.0
      %876 = vmatprep.subr.mxu0 0.0
      %877 = vmatpush1.msra.mxu0 0.0
      %878 = vmatprep.subr.mxu0 0.0
      %879 = vmatpush1.msra.mxu0 0.0
      %880 = vmatprep.subr.mxu0 0.0
      %881 = vmatpush1.msra.mxu0 0.0
      %882 = vmatprep.subr.mxu0 0.0
      %883 = vmatpush1.msra.mxu0 0.0
      %884 = vmatprep.subr.mxu0 0.0
      %885 = vmatpush1.msra.mxu0 0.0
      %886 = vmatprep.subr.mxu0 0.0
      %887 = vmatpush1.msra.mxu0 0.0
      %888 = vmatprep.subr.mxu0 0.0
      %889 = vmatpush1.msra.mxu0 0.0
      %890 = vmatprep.subr.mxu0 0.0
      %891 = vmatpush1.msra.mxu0 0.0
      %892 = vmatprep.subr.mxu0 0.0
      %893 = vmatpush1.msra.mxu0 0.0
      %894 = vmatprep.subr.mxu0 0.0
      %895 = vmatpush1.msra.mxu0 0.0
      %896 = vmatprep.subr.mxu0 0.0
      %897 = vmatpush1.msra.mxu0 0.0
      %898 = vmatprep.subr.mxu0 0.0
      %899 = vmatpush1.msra.mxu0 0.0
      %900 = vmatprep.subr.mxu0 0.0
      %901 = vmatpush1.msra.mxu0 0.0
      %902 = vmatprep.subr.mxu0 0.0
      %903 = vmatpush1.msra.mxu0 0.0
      %904 = vmatprep.subr.mxu0 0.0
      %905 = vmatpush1.msra.mxu0 0.0
      %906 = vmatprep.subr.mxu0 0.0
      %907 = vmatpush1.msra.mxu0 0.0
      %908 = vmatprep.subr.mxu0 0.0
      %909 = vmatpush1.msra.mxu0 0.0
      %910 = vmatprep.subr.mxu0 0.0
      %911 = vmatpush1.msra.mxu0 0.0
      %912 = vmatprep.subr.mxu0 0.0
      %913 = vmatpush1.msra.mxu0 0.0
      %914 = vmatprep.subr.mxu0 0.0
      %915 = vmatpush1.msra.mxu0 0.0
      %916 = vmatprep.subr.mxu0 0.0
      %917 = vmatpush1.msra.mxu0 0.0
      %918 = vmatprep.mubr.f32.mxu0 0.0
      %919 = vmatmul.mubr.f32.gmra.mrb[0].mxu0 %v852
      %v920 = vpop.f32.mrb[0].mxu0
      %v921 = vadd.f32 %v818, %v920
      %v922 = vpop.f32.mrb[0].mxu0
      %v923 = vadd.f32 %v822, %v922
      %924 = vdwg.mxu0
      %925 = vmatprep.subr.mxu0 %v788
      %926 = vmatpush1.msra.mxu0 %v787
      %927 = vmatprep.subr.mxu0 %v795
      %928 = vmatpush1.msra.mxu0 %v794
      %929 = vmatprep.subr.mxu0 %v802
      %930 = vmatpush1.msra.mxu0 %v801
      %931 = vmatprep.subr.mxu0 %v809
      %932 = vmatpush1.msra.mxu0 %v808
      %933 = vmatprep.subr.mxu0 0.0
      %934 = vmatpush1.msra.mxu0 0.0
      %935 = vmatprep.subr.mxu0 0.0
      %936 = vmatpush1.msra.mxu0 0.0
      %937 = vmatprep.subr.mxu0 0.0
      %938 = vmatpush1.msra.mxu0 0.0
      %939 = vmatprep.subr.mxu0 0.0
      %940 = vmatpush1.msra.mxu0 0.0
      %941 = vmatprep.subr.mxu0 0.0
      %942 = vmatpush1.msra.mxu0 0.0
      %943 = vmatprep.subr.mxu0 0.0
      %944 = vmatpush1.msra.mxu0 0.0
      %945 = vmatprep.subr.mxu0 0.0
      %946 = vmatpush1.msra.mxu0 0.0
      %947 = vmatprep.subr.mxu0 0.0
      %948 = vmatpush1.msra.mxu0 0.0
      %949 = vmatprep.subr.mxu0 0.0
      %950 = vmatpush1.msra.mxu0 0.0
      %951 = vmatprep.subr.mxu0 0.0
      %952 = vmatpush1.msra.mxu0 0.0
      %953 = vmatprep.subr.mxu0 0.0
      %954 = vmatpush1.msra.mxu0 0.0
      %955 = vmatprep.subr.mxu0 0.0
      %956 = vmatpush1.msra.mxu0 0.0
      %957 = vmatprep.subr.mxu0 0.0
      %958 = vmatpush1.msra.mxu0 0.0
      %959 = vmatprep.subr.mxu0 0.0
      %960 = vmatpush1.msra.mxu0 0.0
      %961 = vmatprep.subr.mxu0 0.0
      %962 = vmatpush1.msra.mxu0 0.0
      %963 = vmatprep.subr.mxu0 0.0
      %964 = vmatpush1.msra.mxu0 0.0
      %965 = vmatprep.subr.mxu0 0.0
      %966 = vmatpush1.msra.mxu0 0.0
      %967 = vmatprep.subr.mxu0 0.0
      %968 = vmatpush1.msra.mxu0 0.0
      %969 = vmatprep.subr.mxu0 0.0
      %970 = vmatpush1.msra.mxu0 0.0
      %971 = vmatprep.subr.mxu0 0.0
      %972 = vmatpush1.msra.mxu0 0.0
      %973 = vmatprep.subr.mxu0 0.0
      %974 = vmatpush1.msra.mxu0 0.0
      %975 = vmatprep.subr.mxu0 0.0
      %976 = vmatpush1.msra.mxu0 0.0
      %977 = vmatprep.subr.mxu0 0.0
      %978 = vmatpush1.msra.mxu0 0.0
      %979 = vmatprep.subr.mxu0 0.0
      %980 = vmatpush1.msra.mxu0 0.0
      %981 = vmatprep.subr.mxu0 0.0
      %982 = vmatpush1.msra.mxu0 0.0
      %983 = vmatprep.subr.mxu0 0.0
      %984 = vmatpush1.msra.mxu0 0.0
      %985 = vmatprep.subr.mxu0 0.0
      %986 = vmatpush1.msra.mxu0 0.0
      %987 = vmatprep.subr.mxu0 0.0
      %988 = vmatpush1.msra.mxu0 0.0
      %989 = vmatprep.mubr.f32.mxu0 0.0
      %990 = vmatmul.mubr.f32.gmra.mrb[0].mxu0 %v852
      %v991 = vpop.f32.mrb[0].mxu0
      %v992 = vadd.f32 %v826, %v991
      %v993 = vpop.f32.mrb[0].mxu0
      %v994 = vadd.f32 %v830, %v993
      %995 = vdwg.mxu0
      %996 = vmatprep.subr.mxu0 %v790
      %997 = vmatpush1.msra.mxu0 %v789
      %998 = vmatprep.subr.mxu0 %v797
      %999 = vmatpush1.msra.mxu0 %v796
      %1000 = vmatprep.subr.mxu0 %v804
      %1001 = vmatpush1.msra.mxu0 %v803
      %1002 = vmatprep.subr.mxu0 %v811
      %1003 = vmatpush1.msra.mxu0 %v810
      %1004 = vmatprep.subr.mxu0 0.0
      %1005 = vmatpush1.msra.mxu0 0.0
      %1006 = vmatprep.subr.mxu0 0.0
      %1007 = vmatpush1.msra.mxu0 0.0
      %1008 = vmatprep.subr.mxu0 0.0
      %1009 = vmatpush1.msra.mxu0 0.0
      %1010 = vmatprep.subr.mxu0 0.0
      %1011 = vmatpush1.msra.mxu0 0.0
      %1012 = vmatprep.subr.mxu0 0.0
      %1013 = vmatpush1.msra.mxu0 0.0
      %1014 = vmatprep.subr.mxu0 0.0
      %1015 = vmatpush1.msra.mxu0 0.0
      %1016 = vmatprep.subr.mxu0 0.0
      %1017 = vmatpush1.msra.mxu0 0.0
      %1018 = vmatprep.subr.mxu0 0.0
      %1019 = vmatpush1.msra.mxu0 0.0
      %1020 = vmatprep.subr.mxu0 0.0
      %1021 = vmatpush1.msra.mxu0 0.0
      %1022 = vmatprep.subr.mxu0 0.0
      %1023 = vmatpush1.msra.mxu0 0.0
      %1024 = vmatprep.subr.mxu0 0.0
      %1025 = vmatpush1.msra.mxu0 0.0
      %1026 = vmatprep.subr.mxu0 0.0
      %1027 = vmatpush1.msra.mxu0 0.0
      %1028 = vmatprep.subr.mxu0 0.0
      %1029 = vmatpush1.msra.mxu0 0.0
      %1030 = vmatprep.subr.mxu0 0.0
      %1031 = vmatpush1.msra.mxu0 0.0
      %1032 = vmatprep.subr.mxu0 0.0
      %1033 = vmatpush1.msra.mxu0 0.0
      %1034 = vmatprep.subr.mxu0 0.0
      %1035 = vmatpush1.msra.mxu0 0.0
      %1036 = vmatprep.subr.mxu0 0.0
      %1037 = vmatpush1.msra.mxu0 0.0
      %1038 = vmatprep.subr.mxu0 0.0
      %1039 = vmatpush1.msra.mxu0 0.0
      %1040 = vmatprep.subr.mxu0 0.0
      %1041 = vmatpush1.msra.mxu0 0.0
      %1042 = vmatprep.subr.mxu0 0.0
      %1043 = vmatpush1.msra.mxu0 0.0
      %1044 = vmatprep.subr.mxu0 0.0
      %1045 = vmatpush1.msra.mxu0 0.0
      %1046 = vmatprep.subr.mxu0 0.0
      %1047 = vmatpush1.msra.mxu0 0.0
      %1048 = vmatprep.subr.mxu0 0.0
      %1049 = vmatpush1.msra.mxu0 0.0
      %1050 = vmatprep.subr.mxu0 0.0
      %1051 = vmatpush1.msra.mxu0 0.0
      %1052 = vmatprep.subr.mxu0 0.0
      %1053 = vmatpush1.msra.mxu0 0.0
      %1054 = vmatprep.subr.mxu0 0.0
      %1055 = vmatpush1.msra.mxu0 0.0
      %1056 = vmatprep.subr.mxu0 0.0
      %1057 = vmatpush1.msra.mxu0 0.0
      %1058 = vmatprep.subr.mxu0 0.0
      %1059 = vmatpush1.msra.mxu0 0.0
      %1060 = vmatprep.mubr.f32.mxu0 0.0
      %1061 = vmatmul.mubr.f32.gmra.mrb[0].mxu0 %v852
      %v1062 = vpop.f32.mrb[0].mxu0
      %v1063 = vadd.f32 %v834, %v1062
      %v1064 = vpop.f32.mrb[0].mxu0
      %v1065 = vadd.f32 %v838, %v1064
      %1066 = vdwg.mxu0
      %1067 = vmatprep.subr.mxu0 0.0
      %1068 = vmatpush1.msra.mxu0 %v791
      %1069 = vmatprep.subr.mxu0 0.0
      %1070 = vmatpush1.msra.mxu0 %v798
      %1071 = vmatprep.subr.mxu0 0.0
      %1072 = vmatpush1.msra.mxu0 %v805
      %1073 = vmatprep.subr.mxu0 0.0
      %1074 = vmatpush1.msra.mxu0 %v812
      %1075 = vmatprep.subr.mxu0 0.0
      %1076 = vmatpush1.msra.mxu0 0.0
      %1077 = vmatprep.subr.mxu0 0.0
      %1078 = vmatpush1.msra.mxu0 0.0
      %1079 = vmatprep.subr.mxu0 0.0
      %1080 = vmatpush1.msra.mxu0 0.0
      %1081 = vmatprep.subr.mxu0 0.0
      %1082 = vmatpush1.msra.mxu0 0.0
      %1083 = vmatprep.subr.mxu0 0.0
      %1084 = vmatpush1.msra.mxu0 0.0
      %1085 = vmatprep.subr.mxu0 0.0
      %1086 = vmatpush1.msra.mxu0 0.0
      %1087 = vmatprep.subr.mxu0 0.0
      %1088 = vmatpush1.msra.mxu0 0.0
      %1089 = vmatprep.subr.mxu0 0.0
      %1090 = vmatpush1.msra.mxu0 0.0
      %1091 = vmatprep.subr.mxu0 0.0
      %1092 = vmatpush1.msra.mxu0 0.0
      %1093 = vmatprep.subr.mxu0 0.0
      %1094 = vmatpush1.msra.mxu0 0.0
      %1095 = vmatprep.subr.mxu0 0.0
      %1096 = vmatpush1.msra.mxu0 0.0
      %1097 = vmatprep.subr.mxu0 0.0
      %1098 = vmatpush1.msra.mxu0 0.0
      %1099 = vmatprep.subr.mxu0 0.0
      %1100 = vmatpush1.msra.mxu0 0.0
      %1101 = vmatprep.subr.mxu0 0.0
      %1102 = vmatpush1.msra.mxu0 0.0
      %1103 = vmatprep.subr.mxu0 0.0
      %1104 = vmatpush1.msra.mxu0 0.0
      %1105 = vmatprep.subr.mxu0 0.0
      %1106 = vmatpush1.msra.mxu0 0.0
      %1107 = vmatprep.subr.mxu0 0.0
      %1108 = vmatpush1.msra.mxu0 0.0
      %1109 = vmatprep.subr.mxu0 0.0
      %1110 = vmatpush1.msra.mxu0 0.0
      %1111 = vmatprep.subr.mxu0 0.0
      %1112 = vmatpush1.msra.mxu0 0.0
      %1113 = vmatprep.subr.mxu0 0.0
      %1114 = vmatpush1.msra.mxu0 0.0
      %1115 = vmatprep.subr.mxu0 0.0
      %1116 = vmatpush1.msra.mxu0 0.0
      %1117 = vmatprep.subr.mxu0 0.0
      %1118 = vmatpush1.msra.mxu0 0.0
      %1119 = vmatprep.subr.mxu0 0.0
      %1120 = vmatpush1.msra.mxu0 0.0
      %1121 = vmatprep.subr.mxu0 0.0
      %1122 = vmatpush1.msra.mxu0 0.0
      %1123 = vmatprep.subr.mxu0 0.0
      %1124 = vmatpush1.msra.mxu0 0.0
      %1125 = vmatprep.subr.mxu0 0.0
      %1126 = vmatpush1.msra.mxu0 0.0
      %1127 = vmatprep.subr.mxu0 0.0
      %1128 = vmatpush1.msra.mxu0 0.0
      %1129 = vmatprep.subr.mxu0 0.0
      %1130 = vmatpush1.msra.mxu0 0.0
      %1131 = vmatprep.mubr.f32.mxu0 0.0
      %1132 = vmatmul.mubr.f32.gmra.mrb[0].mxu0 %v852
      %v1133 = vpop.f32.mrb[0].mxu0
      %v1134 = vadd.f32 %v842, %v1133
      %v1135 = vpop.f32.mrb[0].mxu0
      %1136 = vdwg.mxu0
      %v1137 = vmax.f32 %v921, 0.0
      %v1138 = vmax.f32 %v923, 0.0
      %v1139 = vmax.f32 %v992, 0.0
      %v1140 = vmax.f32 %v994, 0.0
      %v1141 = vmax.f32 %v1063, 0.0
      %v1142 = vmax.f32 %v1065, 0.0
      %v1143 = vmax.f32 %v1134, 0.0
      %1144 = vst.msk [vmem:[#allocation2] sm:$0xff] %vm850, %v1137
      %1146 = vrot.lane.b32.xlu0 %v1137, 96
      %v1147 = vpop.permute.xlu0 %1146
      %1149 = vst.msk [vmem:[#allocation2 + $0x8] sm:$0xff] %vm850, %v1147
      %1150 = vrot.lane.b32.xlu0 %v1137, 64
      %v1151 = vpop.permute.xlu0 %1150
      %1153 = vst.msk [vmem:[#allocation2 + $0x10] sm:$0xff] %vm850, %v1151
      %1154 = vrot.lane.b32.xlu0 %v1137, 32
      %v1155 = vpop.permute.xlu0 %1154
      %1157 = vst.msk [vmem:[#allocation2 + $0x18] sm:$0xff] %vm850, %v1155
      %1158 = vst.msk [vmem:[#allocation2 + $0x20] sm:$0xff] %vm850, %v1138
      %1160 = vrot.lane.b32.xlu0 %v1138, 96
      %v1161 = vpop.permute.xlu0 %1160
      %1163 = vst.msk [vmem:[#allocation2 + $0x28] sm:$0xff] %vm850, %v1161
      %1164 = vrot.lane.b32.xlu0 %v1138, 64
      %v1165 = vpop.permute.xlu0 %1164
      %1167 = vst.msk [vmem:[#allocation2 + $0x30] sm:$0xff] %vm850, %v1165
      %1168 = vrot.lane.b32.xlu0 %v1138, 32
      %v1169 = vpop.permute.xlu0 %1168
      %1171 = vst.msk [vmem:[#allocation2 + $0x38] sm:$0xff] %vm850, %v1169
      %1172 = vst.msk [vmem:[#allocation2 + $0x40] sm:$0xff] %vm850, %v1139
      %1174 = vrot.lane.b32.xlu0 %v1139, 96
      %v1175 = vpop.permute.xlu0 %1174
      %1177 = vst.msk [vmem:[#allocation2 + $0x48] sm:$0xff] %vm850, %v1175
      %1178 = vrot.lane.b32.xlu0 %v1139, 64
      %v1179 = vpop.permute.xlu0 %1178
      %1181 = vst.msk [vmem:[#allocation2 + $0x50] sm:$0xff] %vm850, %v1179
      %1182 = vrot.lane.b32.xlu0 %v1139, 32
      %v1183 = vpop.permute.xlu0 %1182
      %1185 = vst.msk [vmem:[#allocation2 + $0x58] sm:$0xff] %vm850, %v1183
      %1186 = vst.msk [vmem:[#allocation2 + $0x60] sm:$0xff] %vm850, %v1140
      %1188 = vrot.lane.b32.xlu0 %v1140, 96
      %v1189 = vpop.permute.xlu0 %1188
      %1191 = vst.msk [vmem:[#allocation2 + $0x68] sm:$0xff] %vm850, %v1189
      %1192 = vrot.lane.b32.xlu0 %v1140, 64
      %v1193 = vpop.permute.xlu0 %1192
      %1195 = vst.msk [vmem:[#allocation2 + $0x70] sm:$0xff] %vm850, %v1193
      %1196 = vrot.lane.b32.xlu0 %v1140, 32
      %v1197 = vpop.permute.xlu0 %1196
      %1199 = vst.msk [vmem:[#allocation2 + $0x78] sm:$0xff] %vm850, %v1197
      %1200 = vst.msk [vmem:[#allocation2 + $0x80] sm:$0xff] %vm850, %v1141
      %1202 = vrot.lane.b32.xlu0 %v1141, 96
      %v1203 = vpop.permute.xlu0 %1202
      %1205 = vst.msk [vmem:[#allocation2 + $0x88] sm:$0xff] %vm850, %v1203
      %1206 = vrot.lane.b32.xlu0 %v1141, 64
      %v1207 = vpop.permute.xlu0 %1206
      %1209 = vst.msk [vmem:[#allocation2 + $0x90] sm:$0xff] %vm850, %v1207
      %1210 = vrot.lane.b32.xlu0 %v1141, 32
      %v1211 = vpop.permute.xlu0 %1210
      %1213 = vst.msk [vmem:[#allocation2 + $0x98] sm:$0xff] %vm850, %v1211
      %1214 = vst.msk [vmem:[#allocation2 + $0xa0] sm:$0xff] %vm850, %v1142
      %1216 = vrot.lane.b32.xlu0 %v1142, 96
      %v1217 = vpop.permute.xlu0 %1216
      %1219 = vst.msk [vmem:[#allocation2 + $0xa8] sm:$0xff] %vm850, %v1217
      %1220 = vrot.lane.b32.xlu0 %v1142, 64
      %v1221 = vpop.permute.xlu0 %1220
      %1223 = vst.msk [vmem:[#allocation2 + $0xb0] sm:$0xff] %vm850, %v1221
      %1224 = vrot.lane.b32.xlu0 %v1142, 32
      %v1225 = vpop.permute.xlu0 %1224
      %1227 = vst.msk [vmem:[#allocation2 + $0xb8] sm:$0xff] %vm850, %v1225
      %1228 = vst.msk [vmem:[#allocation2 + $0xc0] sm:$0xff] %vm850, %v1143
      %1230 = vrot.lane.b32.xlu0 %v1143, 96
      %v1231 = vpop.permute.xlu0 %1230
      %1233 = vst.msk [vmem:[#allocation2 + $0xc8] sm:$0xff] %vm850, %v1231
      %1234 = vrot.lane.b32.xlu0 %v1143, 64
      %v1235 = vpop.permute.xlu0 %1234
      %1237 = vst.msk [vmem:[#allocation2 + $0xd0] sm:$0xff] %vm850, %v1235
      %v1238 = vld [vmem:[#allocation2] sm:$0xff]
      %v1239 = vld [vmem:[#allocation2 + $0x8] sm:$0xff]
      %v1240 = vld [vmem:[#allocation2 + $0x10] sm:$0xff]
      %v1241 = vld [vmem:[#allocation2 + $0x18] sm:$0xff]
      %v1242 = vld [vmem:[#allocation2 + $0x20] sm:$0xff]
      %v1243 = vld [vmem:[#allocation2 + $0x28] sm:$0xff]
      %v1244 = vld [vmem:[#allocation2 + $0x30] sm:$0xff]
      %v1245 = vld [vmem:[#allocation2 + $0x38] sm:$0xff]
      %v1246 = vld [vmem:[#allocation2 + $0x40] sm:$0xff]
      %v1247 = vld [vmem:[#allocation2 + $0x48] sm:$0xff]
      %v1248 = vld [vmem:[#allocation2 + $0x50] sm:$0xff]
      %v1249 = vld [vmem:[#allocation2 + $0x58] sm:$0xff]
      %v1250 = vld [vmem:[#allocation2 + $0x60] sm:$0xff]
      %v1251 = vld [vmem:[#allocation2 + $0x68] sm:$0xff]
      %v1252 = vld [vmem:[#allocation2 + $0x70] sm:$0xff]
      %v1253 = vld [vmem:[#allocation2 + $0x78] sm:$0xff]
      %v1254 = vld [vmem:[#allocation2 + $0x80] sm:$0xff]
      %v1255 = vld [vmem:[#allocation2 + $0x88] sm:$0xff]
      %v1256 = vld [vmem:[#allocation2 + $0x90] sm:$0xff]
      %v1257 = vld [vmem:[#allocation2 + $0x98] sm:$0xff]
      %v1258 = vld [vmem:[#allocation2 + $0xa0] sm:$0xff]
      %v1259 = vld [vmem:[#allocation2 + $0xa8] sm:$0xff]
      %v1260 = vld [vmem:[#allocation2 + $0xb0] sm:$0xff]
      %v1261 = vld [vmem:[#allocation2 + $0xb8] sm:$0xff]
      %v1262 = vld [vmem:[#allocation2 + $0xc0] sm:$0xff]
      %v1263 = vld [vmem:[#allocation2 + $0xc8] sm:$0xff]
      %v1264 = vld [vmem:[#allocation2 + $0xd0] sm:$0xff]
      %v1265 = vld [vmem:[%s18] sm:$0xff]
      %v1266 = vld [vmem:[%s18 + $0x8] sm:$0xff]
      %v1267 = vld [vmem:[%s18 + $0x10] sm:$0xff]
      %v1268 = vld [vmem:[%s18 + $0x18] sm:$0xff]
      %v1269 = vld [vmem:[%s18 + $0x20] sm:$0xff]
      %v1270 = vld [vmem:[%s18 + $0x28] sm:$0xff]
      %v1271 = vld [vmem:[%s18 + $0x30] sm:$0x7]
      %v1272 = vld [vmem:[%s18 + $0x38] sm:$0x7]
      %vm1273 = vcmask 719872
      %v1275 = vsel %vm1273, %v1266, 0
      %v1278 = vsel %vm1273, %v1268, 0
      %v1281 = vsel %vm1273, %v1270, 0
      %v1284 = vsel %vm1273, %v1272, 0
      %1286 = vmatprep.subr.mxu0 0.0
      %1287 = vmatpush1.msra.mxu0 %v1238
      %1288 = vmatprep.subr.mxu0 0.0
      %1289 = vmatpush1.msra.mxu0 %v1239
      %1290 = vmatprep.subr.mxu0 0.0
      %1291 = vmatpush1.msra.mxu0 %v1240
      %1292 = vmatprep.subr.mxu0 0.0
      %1293 = vmatpush1.msra.mxu0 %v1241
      %1294 = vmatprep.subr.mxu0 0.0
      %1295 = vmatpush1.msra.mxu0 %v1242
      %1296 = vmatprep.subr.mxu0 0.0
      %1297 = vmatpush1.msra.mxu0 %v1243
      %1298 = vmatprep.subr.mxu0 0.0
      %1299 = vmatpush1.msra.mxu0 %v1244
      %1300 = vmatprep.subr.mxu0 0.0
      %1301 = vmatpush1.msra.mxu0 %v1245
      %1302 = vmatprep.subr.mxu0 0.0
      %1303 = vmatpush1.msra.mxu0 %v1246
      %1304 = vmatprep.subr.mxu0 0.0
      %1305 = vmatpush1.msra.mxu0 %v1247
      %1306 = vmatprep.subr.mxu0 0.0
      %1307 = vmatpush1.msra.mxu0 %v1248
      %1308 = vmatprep.subr.mxu0 0.0
      %1309 = vmatpush1.msra.mxu0 %v1249
      %1310 = vmatprep.subr.mxu0 0.0
      %1311 = vmatpush1.msra.mxu0 %v1250
      %1312 = vmatprep.subr.mxu0 0.0
      %1313 = vmatpush1.msra.mxu0 %v1251
      %1314 = vmatprep.subr.mxu0 0.0
      %1315 = vmatpush1.msra.mxu0 %v1252
      %1316 = vmatprep.subr.mxu0 0.0
      %1317 = vmatpush1.msra.mxu0 %v1253
      %1318 = vmatprep.subr.mxu0 0.0
      %1319 = vmatpush1.msra.mxu0 %v1254
      %1320 = vmatprep.subr.mxu0 0.0
      %1321 = vmatpush1.msra.mxu0 %v1255
      %1322 = vmatprep.subr.mxu0 0.0
      %1323 = vmatpush1.msra.mxu0 %v1256
      %1324 = vmatprep.subr.mxu0 0.0
      %1325 = vmatpush1.msra.mxu0 %v1257
      %1326 = vmatprep.subr.mxu0 0.0
      %1327 = vmatpush1.msra.mxu0 %v1258
      %1328 = vmatprep.subr.mxu0 0.0
      %1329 = vmatpush1.msra.mxu0 %v1259
      %1330 = vmatprep.subr.mxu0 0.0
      %1331 = vmatpush1.msra.mxu0 %v1260
      %1332 = vmatprep.subr.mxu0 0.0
      %1333 = vmatpush1.msra.mxu0 %v1261
      %1334 = vmatprep.subr.mxu0 0.0
      %1335 = vmatpush1.msra.mxu0 %v1262
      %1336 = vmatprep.subr.mxu0 0.0
      %1337 = vmatpush1.msra.mxu0 %v1263
      %1338 = vmatprep.subr.mxu0 0.0
      %1339 = vmatpush1.msra.mxu0 %v1264
      %1340 = vmatprep.subr.mxu0 0.0
      %1341 = vmatpush1.msra.mxu0 0.0
      %1342 = vmatprep.subr.mxu0 0.0
      %1343 = vmatpush1.msra.mxu0 0.0
      %1344 = vmatprep.subr.mxu0 0.0
      %1345 = vmatpush1.msra.mxu0 0.0
      %1346 = vmatprep.subr.mxu0 0.0
      %1347 = vmatpush1.msra.mxu0 0.0
      %1348 = vmatprep.subr.mxu0 0.0
      %1349 = vmatpush1.msra.mxu0 0.0
      %1350 = vmatprep.mubr.f32.mxu0 %v1275
      %1351 = vmatmul.mubr.f32.gmra.mrb[0].mxu0 %v1265
      %v1352 = vpop.f32.mrb[0].mxu0
      %v1353 = vadd.f32 0.0, %v1352
      %v1354 = vpop.f32.mrb[0].mxu0
      %1355 = vmatprep.mubr.f32.mxu0 %v1278
      %1356 = vmatmul.mubr.f32.gmra.mrb[0].mxu0 %v1267
      %v1357 = vpop.f32.mrb[0].mxu0
      %v1358 = vadd.f32 0.0, %v1357
      %v1359 = vpop.f32.mrb[0].mxu0
      %1360 = vmatprep.mubr.f32.mxu0 %v1281
      %1361 = vmatmul.mubr.f32.gmra.mrb[0].mxu0 %v1269
      %v1362 = vpop.f32.mrb[0].mxu0
      %v1363 = vadd.f32 0.0, %v1362
      %v1364 = vpop.f32.mrb[0].mxu0
      %1365 = vmatprep.mubr.f32.mxu0 %v1284
      %1366 = vmatmul.mubr.f32.gmra.mrb[0].mxu0 %v1271
      %v1367 = vpop.f32.mrb[0].mxu0
      %v1368 = vadd.f32 0.0, %v1367
      %v1369 = vpop.f32.mrb[0].mxu0
      %1370 = vdwg.mxu0
      %v1371 = vmul.f32 %v1353, 0.125
      %v1372 = vmul.f32 %v1358, 0.125
      %v1373 = vmul.f32 %v1363, 0.125
      %v1374 = vmul.f32 %v1368, 0.125
      %1375 = vst.msk [vmem:[%s688] sm:$0xff] %vm850, %v1371
      %1376 = vst.msk [vmem:[%s688 + $0x8] sm:$0xff] %vm850, %v1372
      %1377 = vst.msk [vmem:[%s688 + $0x10] sm:$0xff] %vm850, %v1373
      %vm1378 = vcmask 256000
      %1379 = vst.msk [vmem:[%s688 + $0x18] sm:$0x7] %vm1378, %v1374
      %v1380 = vld [vmem:[%s5] sm:$0xff]
      %v1381 = vld [vmem:[%s5 + $0x8] sm:$0xff]
      %v1382 = vld [vmem:[%s5 + $0x10] sm:$0xff]
      %v1383 = vld [vmem:[%s5 + $0x18] sm:$0xff]
      %v1384 = vld [vmem:[%s6] sm:$0x1]
      %v1386 = vlaneseq
      %v1387 = vshrl.u32 %v1386, 7
      %v1388 = vsub.s32 0, %v1387
      %v1389 = vrot.slane %v1384, %v1388
      %v1392 = vsel %vm850, %v1238, 0
      %v1395 = vsel %vm850, %v1239, 0
      %v1398 = vsel %vm850, %v1240, 0
      %v1401 = vsel %vm850, %v1241, 0
      %v1404 = vsel %vm850, %v1242, 0
      %v1407 = vsel %vm850, %v1243, 0
      %v1410 = vsel %vm850, %v1244, 0
      %v1413 = vsel %vm850, %v1245, 0
      %v1416 = vsel %vm850, %v1246, 0
      %v1419 = vsel %vm850, %v1247, 0
      %v1422 = vsel %vm850, %v1248, 0
      %v1425 = vsel %vm850, %v1249, 0
      %v1428 = vsel %vm850, %v1250, 0
      %v1431 = vsel %vm850, %v1251, 0
      %v1434 = vsel %vm850, %v1252, 0
      %v1437 = vsel %vm850, %v1253, 0
      %v1440 = vsel %vm850, %v1254, 0
      %v1443 = vsel %vm850, %v1255, 0
      %v1446 = vsel %vm850, %v1256, 0
      %v1449 = vsel %vm850, %v1257, 0
      %v1452 = vsel %vm850, %v1258, 0
      %v1455 = vsel %vm850, %v1259, 0
      %v1458 = vsel %vm850, %v1260, 0
      %v1461 = vsel %vm850, %v1261, 0
      %v1464 = vsel %vm850, %v1262, 0
      %v1467 = vsel %vm850, %v1263, 0
      %v1470 = vsel %vm850, %v1264, 0
      %1472 = vmatprep.subr.mxu0 0.0
      %1473 = vmatpush1.msra.mxu0 %v1380
      %1474 = vmatprep.subr.mxu0 0.0
      %1475 = vmatpush1.msra.mxu0 %v1381
      %1476 = vmatprep.subr.mxu0 0.0
      %1477 = vmatpush1.msra.mxu0 %v1382
      %1478 = vmatprep.subr.mxu0 0.0
      %1479 = vmatpush1.msra.mxu0 %v1383
      %1480 = vmatprep.subr.mxu0 0.0
      %1481 = vmatpush1.msra.mxu0 0.0
      %1482 = vmatprep.subr.mxu0 0.0
      %1483 = vmatpush1.msra.mxu0 0.0
      %1484 = vmatprep.subr.mxu0 0.0
      %1485 = vmatpush1.msra.mxu0 0.0
      %1486 = vmatprep.subr.mxu0 0.0
      %1487 = vmatpush1.msra.mxu0 0.0
      %1488 = vmatprep.subr.mxu0 0.0
      %1489 = vmatpush1.msra.mxu0 0.0
      %1490 = vmatprep.subr.mxu0 0.0
      %1491 = vmatpush1.msra.mxu0 0.0
      %1492 = vmatprep.subr.mxu0 0.0
      %1493 = vmatpush1.msra.mxu0 0.0
      %1494 = vmatprep.subr.mxu0 0.0
      %1495 = vmatpush1.msra.mxu0 0.0
      %1496 = vmatprep.subr.mxu0 0.0
      %1497 = vmatpush1.msra.mxu0 0.0
      %1498 = vmatprep.subr.mxu0 0.0
      %1499 = vmatpush1.msra.mxu0 0.0
      %1500 = vmatprep.subr.mxu0 0.0
      %1501 = vmatpush1.msra.mxu0 0.0
      %1502 = vmatprep.subr.mxu0 0.0
      %1503 = vmatpush1.msra.mxu0 0.0
      %1504 = vmatprep.subr.mxu0 0.0
      %1505 = vmatpush1.msra.mxu0 0.0
      %1506 = vmatprep.subr.mxu0 0.0
      %1507 = vmatpush1.msra.mxu0 0.0
      %1508 = vmatprep.subr.mxu0 0.0
      %1509 = vmatpush1.msra.mxu0 0.0
      %1510 = vmatprep.subr.mxu0 0.0
      %1511 = vmatpush1.msra.mxu0 0.0
      %1512 = vmatprep.subr.mxu0 0.0
      %1513 = vmatpush1.msra.mxu0 0.0
      %1514 = vmatprep.subr.mxu0 0.0
      %1515 = vmatpush1.msra.mxu0 0.0
      %1516 = vmatprep.subr.mxu0 0.0
      %1517 = vmatpush1.msra.mxu0 0.0
      %1518 = vmatprep.subr.mxu0 0.0
      %1519 = vmatpush1.msra.mxu0 0.0
      %1520 = vmatprep.subr.mxu0 0.0
      %1521 = vmatpush1.msra.mxu0 0.0
      %1522 = vmatprep.subr.mxu0 0.0
      %1523 = vmatpush1.msra.mxu0 0.0
      %1524 = vmatprep.subr.mxu0 0.0
      %1525 = vmatpush1.msra.mxu0 0.0
      %1526 = vmatprep.subr.mxu0 0.0
      %1527 = vmatpush1.msra.mxu0 0.0
      %1528 = vmatprep.subr.mxu0 0.0
      %1529 = vmatpush1.msra.mxu0 0.0
      %1530 = vmatprep.subr.mxu0 0.0
      %1531 = vmatpush1.msra.mxu0 0.0
      %1532 = vmatprep.subr.mxu0 0.0
      %1533 = vmatpush1.msra.mxu0 0.0
      %1534 = vmatprep.subr.mxu0 0.0
      %1535 = vmatpush1.msra.mxu0 0.0
      %1536 = vmatprep.mubr.f32.mxu0 0.0
      %1537 = vmatmul.mubr.f32.gmra.mrb[0].mxu0 %v1392
      %v1538 = vpop.f32.mrb[0].mxu0
      %v1539 = vadd.f32 %v1389, %v1538
      %v1540 = vpop.f32.mrb[0].mxu0
      %1541 = vmatprep.mubr.f32.mxu0 0.0
      %1542 = vmatmul.mubr.f32.gmra.mrb[0].mxu0 %v1395
      %v1543 = vpop.f32.mrb[0].mxu0
      %v1544 = vadd.f32 %v1389, %v1543
      %v1545 = vpop.f32.mrb[0].mxu0
      %1546 = vmatprep.mubr.f32.mxu0 0.0
      %1547 = vmatmul.mubr.f32.gmra.mrb[0].mxu0 %v1398
      %v1548 = vpop.f32.mrb[0].mxu0
      %v1549 = vadd.f32 %v1389, %v1548
      %v1550 = vpop.f32.mrb[0].mxu0
      %1551 = vmatprep.mubr.f32.mxu0 0.0
      %1552 = vmatmul.mubr.f32.gmra.mrb[0].mxu0 %v1401
      %v1553 = vpop.f32.mrb[0].mxu0
      %v1554 = vadd.f32 %v1389, %v1553
      %v1555 = vpop.f32.mrb[0].mxu0
      %1556 = vmatprep.mubr.f32.mxu0 0.0
      %1557 = vmatmul.mubr.f32.gmra.mrb[0].mxu0 %v1404
      %v1558 = vpop.f32.mrb[0].mxu0
      %v1559 = vadd.f32 %v1389, %v1558
      %v1560 = vpop.f32.mrb[0].mxu0
      %1561 = vmatprep.mubr.f32.mxu0 0.0
      %1562 = vmatmul.mubr.f32.gmra.mrb[0].mxu0 %v1407
      %v1563 = vpop.f32.mrb[0].mxu0
      %v1564 = vadd.f32 %v1389, %v1563
      %v1565 = vpop.f32.mrb[0].mxu0
      %1566 = vmatprep.mubr.f32.mxu0 0.0
      %1567 = vmatmul.mubr.f32.gmra.mrb[0].mxu0 %v1410
      %v1568 = vpop.f32.mrb[0].mxu0
      %v1569 = vadd.f32 %v1389, %v1568
      %v1570 = vpop.f32.mrb[0].mxu0
      %1571 = vmatprep.mubr.f32.mxu0 0.0
      %1572 = vmatmul.mubr.f32.gmra.mrb[0].mxu0 %v1413
      %v1573 = vpop.f32.mrb[0].mxu0
      %v1574 = vadd.f32 %v1389, %v1573
      %v1575 = vpop.f32.mrb[0].mxu0
      %1576 = vmatprep.mubr.f32.mxu0 0.0
      %1577 = vmatmul.mubr.f32.gmra.mrb[0].mxu0 %v1416
      %v1578 = vpop.f32.mrb[0].mxu0
      %v1579 = vadd.f32 %v1389, %v1578
      %v1580 = vpop.f32.mrb[0].mxu0
      %1581 = vmatprep.mubr.f32.mxu0 0.0
      %1582 = vmatmul.mubr.f32.gmra.mrb[0].mxu0 %v1419
      %v1583 = vpop.f32.mrb[0].mxu0
      %v1584 = vadd.f32 %v1389, %v1583
      %v1585 = vpop.f32.mrb[0].mxu0
      %1586 = vmatprep.mubr.f32.mxu0 0.0
      %1587 = vmatmul.mubr.f32.gmra.mrb[0].mxu0 %v1422
      %v1588 = vpop.f32.mrb[0].mxu0
      %v1589 = vadd.f32 %v1389, %v1588
      %v1590 = vpop.f32.mrb[0].mxu0
      %1591 = vmatprep.mubr.f32.mxu0 0.0
      %1592 = vmatmul.mubr.f32.gmra.mrb[0].mxu0 %v1425
      %v1593 = vpop.f32.mrb[0].mxu0
      %v1594 = vadd.f32 %v1389, %v1593
      %v1595 = vpop.f32.mrb[0].mxu0
      %1596 = vmatprep.mubr.f32.mxu0 0.0
      %1597 = vmatmul.mubr.f32.gmra.mrb[0].mxu0 %v1428
      %v1598 = vpop.f32.mrb[0].mxu0
      %v1599 = vadd.f32 %v1389, %v1598
      %v1600 = vpop.f32.mrb[0].mxu0
      %1601 = vmatprep.mubr.f32.mxu0 0.0
      %1602 = vmatmul.mubr.f32.gmra.mrb[0].mxu0 %v1431
      %v1603 = vpop.f32.mrb[0].mxu0
      %v1604 = vadd.f32 %v1389, %v1603
      %v1605 = vpop.f32.mrb[0].mxu0
      %1606 = vmatprep.mubr.f32.mxu0 0.0
      %1607 = vmatmul.mubr.f32.gmra.mrb[0].mxu0 %v1434
      %v1608 = vpop.f32.mrb[0].mxu0
      %v1609 = vadd.f32 %v1389, %v1608
      %v1610 = vpop.f32.mrb[0].mxu0
      %1611 = vmatprep.mubr.f32.mxu0 0.0
      %1612 = vmatmul.mubr.f32.gmra.mrb[0].mxu0 %v1437
      %v1613 = vpop.f32.mrb[0].mxu0
      %v1614 = vadd.f32 %v1389, %v1613
      %v1615 = vpop.f32.mrb[0].mxu0
      %1616 = vmatprep.mubr.f32.mxu0 0.0
      %1617 = vmatmul.mubr.f32.gmra.mrb[0].mxu0 %v1440
      %v1618 = vpop.f32.mrb[0].mxu0
      %v1619 = vadd.f32 %v1389, %v1618
      %v1620 = vpop.f32.mrb[0].mxu0
      %1621 = vmatprep.mubr.f32.mxu0 0.0
      %1622 = vmatmul.mubr.f32.gmra.mrb[0].mxu0 %v1443
      %v1623 = vpop.f32.mrb[0].mxu0
      %v1624 = vadd.f32 %v1389, %v1623
      %v1625 = vpop.f32.mrb[0].mxu0
      %1626 = vmatprep.mubr.f32.mxu0 0.0
      %1627 = vmatmul.mubr.f32.gmra.mrb[0].mxu0 %v1446
      %v1628 = vpop.f32.mrb[0].mxu0
      %v1629 = vadd.f32 %v1389, %v1628
      %v1630 = vpop.f32.mrb[0].mxu0
      %1631 = vmatprep.mubr.f32.mxu0 0.0
      %1632 = vmatmul.mubr.f32.gmra.mrb[0].mxu0 %v1449
      %v1633 = vpop.f32.mrb[0].mxu0
      %v1634 = vadd.f32 %v1389, %v1633
      %v1635 = vpop.f32.mrb[0].mxu0
      %1636 = vmatprep.mubr.f32.mxu0 0.0
      %1637 = vmatmul.mubr.f32.gmra.mrb[0].mxu0 %v1452
      %v1638 = vpop.f32.mrb[0].mxu0
      %v1639 = vadd.f32 %v1389, %v1638
      %v1640 = vpop.f32.mrb[0].mxu0
      %1641 = vmatprep.mubr.f32.mxu0 0.0
      %1642 = vmatmul.mubr.f32.gmra.mrb[0].mxu0 %v1455
      %v1643 = vpop.f32.mrb[0].mxu0
      %v1644 = vadd.f32 %v1389, %v1643
      %v1645 = vpop.f32.mrb[0].mxu0
      %1646 = vmatprep.mubr.f32.mxu0 0.0
      %1647 = vmatmul.mubr.f32.gmra.mrb[0].mxu0 %v1458
      %v1648 = vpop.f32.mrb[0].mxu0
      %v1649 = vadd.f32 %v1389, %v1648
      %v1650 = vpop.f32.mrb[0].mxu0
      %1651 = vmatprep.mubr.f32.mxu0 0.0
      %1652 = vmatmul.mubr.f32.gmra.mrb[0].mxu0 %v1461
      %v1653 = vpop.f32.mrb[0].mxu0
      %v1654 = vadd.f32 %v1389, %v1653
      %v1655 = vpop.f32.mrb[0].mxu0
      %1656 = vmatprep.mubr.f32.mxu0 0.0
      %1657 = vmatmul.mubr.f32.gmra.mrb[0].mxu0 %v1464
      %v1658 = vpop.f32.mrb[0].mxu0
      %v1659 = vadd.f32 %v1389, %v1658
      %v1660 = vpop.f32.mrb[0].mxu0
      %1661 = vmatprep.mubr.f32.mxu0 0.0
      %1662 = vmatmul.mubr.f32.gmra.mrb[0].mxu0 %v1467
      %v1663 = vpop.f32.mrb[0].mxu0
      %v1664 = vadd.f32 %v1389, %v1663
      %v1665 = vpop.f32.mrb[0].mxu0
      %1666 = vmatprep.mubr.f32.mxu0 0.0
      %1667 = vmatmul.mubr.f32.gmra.mrb[0].mxu0 %v1470
      %v1668 = vpop.f32.mrb[0].mxu0
      %v1669 = vadd.f32 %v1389, %v1668
      %v1670 = vpop.f32.mrb[0].mxu0
      %1671 = vdwg.mxu0
      %v1672 = vld [vmem:[%s7] sm:$0xff]
      %v1673 = vld [vmem:[%s7 + $0x8] sm:$0xff]
      %v1674 = vld [vmem:[%s7 + $0x10] sm:$0xff]
      %v1675 = vld [vmem:[%s7 + $0x18] sm:$0xff]
      %v1676 = vld [vmem:[%s8] sm:$0x1]
      %v1678 = vlaneseq
      %v1679 = vshrl.u32 %v1678, 7
      %v1680 = vsub.s32 0, %v1679
      %v1681 = vrot.slane %v1676, %v1680
      %1683 = vmatprep.subr.mxu0 0.0
      %1684 = vmatpush1.msra.mxu0 %v1672
      %1685 = vmatprep.subr.mxu0 0.0
      %1686 = vmatpush1.msra.mxu0 %v1673
      %1687 = vmatprep.subr.mxu0 0.0
      %1688 = vmatpush1.msra.mxu0 %v1674
      %1689 = vmatprep.subr.mxu0 0.0
      %1690 = vmatpush1.msra.mxu0 %v1675
      %1691 = vmatprep.subr.mxu0 0.0
      %1692 = vmatpush1.msra.mxu0 0.0
      %1693 = vmatprep.subr.mxu0 0.0
      %1694 = vmatpush1.msra.mxu0 0.0
      %1695 = vmatprep.subr.mxu0 0.0
      %1696 = vmatpush1.msra.mxu0 0.0
      %1697 = vmatprep.subr.mxu0 0.0
      %1698 = vmatpush1.msra.mxu0 0.0
      %1699 = vmatprep.subr.mxu0 0.0
      %1700 = vmatpush1.msra.mxu0 0.0
      %1701 = vmatprep.subr.mxu0 0.0
      %1702 = vmatpush1.msra.mxu0 0.0
      %1703 = vmatprep.subr.mxu0 0.0
      %1704 = vmatpush1.msra.mxu0 0.0
      %1705 = vmatprep.subr.mxu0 0.0
      %1706 = vmatpush1.msra.mxu0 0.0
      %1707 = vmatprep.subr.mxu0 0.0
      %1708 = vmatpush1.msra.mxu0 0.0
      %1709 = vmatprep.subr.mxu0 0.0
      %1710 = vmatpush1.msra.mxu0 0.0
      %1711 = vmatprep.subr.mxu0 0.0
      %1712 = vmatpush1.msra.mxu0 0.0
      %1713 = vmatprep.subr.mxu0 0.0
      %1714 = vmatpush1.msra.mxu0 0.0
      %1715 = vmatprep.subr.mxu0 0.0
      %1716 = vmatpush1.msra.mxu0 0.0
      %1717 = vmatprep.subr.mxu0 0.0
      %1718 = vmatpush1.msra.mxu0 0.0
      %1719 = vmatprep.subr.mxu0 0.0
      %1720 = vmatpush1.msra.mxu0 0.0
      %1721 = vmatprep.subr.mxu0 0.0
      %1722 = vmatpush1.msra.mxu0 0.0
      %1723 = vmatprep.subr.mxu0 0.0
      %1724 = vmatpush1.msra.mxu0 0.0
      %1725 = vmatprep.subr.mxu0 0.0
      %1726 = vmatpush1.msra.mxu0 0.0
      %1727 = vmatprep.subr.mxu0 0.0
      %1728 = vmatpush1.msra.mxu0 0.0
      %1729 = vmatprep.subr.mxu0 0.0
      %1730 = vmatpush1.msra.mxu0 0.0
      %1731 = vmatprep.subr.mxu0 0.0
      %1732 = vmatpush1.msra.mxu0 0.0
      %1733 = vmatprep.subr.mxu0 0.0
      %1734 = vmatpush1.msra.mxu0 0.0
      %1735 = vmatprep.subr.mxu0 0.0
      %1736 = vmatpush1.msra.mxu0 0.0
      %1737 = vmatprep.subr.mxu0 0.0
      %1738 = vmatpush1.msra.mxu0 0.0
      %1739 = vmatprep.subr.mxu0 0.0
      %1740 = vmatpush1.msra.mxu0 0.0
      %1741 = vmatprep.subr.mxu0 0.0
      %1742 = vmatpush1.msra.mxu0 0.0
      %1743 = vmatprep.subr.mxu0 0.0
      %1744 = vmatpush1.msra.mxu0 0.0
      %1745 = vmatprep.subr.mxu0 0.0
      %1746 = vmatpush1.msra.mxu0 0.0
      %1747 = vmatprep.mubr.f32.mxu0 0.0
      %1748 = vmatmul.mubr.f32.gmra.mrb[0].mxu0 %v852
      %v1749 = vpop.f32.mrb[0].mxu0
      %v1750 = vadd.f32 %v1681, %v1749
      %v1751 = vpop.f32.mrb[0].mxu0
      %1752 = vdwg.mxu0
      %v1753 = vld [vmem:[%s9] sm:$0xff]
      %v1754 = vld [vmem:[%s9 + $0x8] sm:$0xff]
      %v1755 = vld [vmem:[%s9 + $0x10] sm:$0xff]
      %v1756 = vld [vmem:[%s9 + $0x18] sm:$0xff]
      %v1757 = vld [vmem:[%s10] sm:$0x1]
      %v1759 = vlaneseq
      %v1760 = vshrl.u32 %v1759, 7
      %v1761 = vsub.s32 0, %v1760
      %v1762 = vrot.slane %v1757, %v1761
      %1764 = vmatprep.subr.mxu0 0.0
      %1765 = vmatpush1.msra.mxu0 %v1753
      %1766 = vmatprep.subr.mxu0 0.0
      %1767 = vmatpush1.msra.mxu0 %v1754
      %1768 = vmatprep.subr.mxu0 0.0
      %1769 = vmatpush1.msra.mxu0 %v1755
      %1770 = vmatprep.subr.mxu0 0.0
      %1771 = vmatpush1.msra.mxu0 %v1756
      %1772 = vmatprep.subr.mxu0 0.0
      %1773 = vmatpush1.msra.mxu0 0.0
      %1774 = vmatprep.subr.mxu0 0.0
      %1775 = vmatpush1.msra.mxu0 0.0
      %1776 = vmatprep.subr.mxu0 0.0
      %1777 = vmatpush1.msra.mxu0 0.0
      %1778 = vmatprep.subr.mxu0 0.0
      %1779 = vmatpush1.msra.mxu0 0.0
      %1780 = vmatprep.subr.mxu0 0.0
      %1781 = vmatpush1.msra.mxu0 0.0
      %1782 = vmatprep.subr.mxu0 0.0
      %1783 = vmatpush1.msra.mxu0 0.0
      %1784 = vmatprep.subr.mxu0 0.0
      %1785 = vmatpush1.msra.mxu0 0.0
      %1786 = vmatprep.subr.mxu0 0.0
      %1787 = vmatpush1.msra.mxu0 0.0
      %1788 = vmatprep.subr.mxu0 0.0
      %1789 = vmatpush1.msra.mxu0 0.0
      %1790 = vmatprep.subr.mxu0 0.0
      %1791 = vmatpush1.msra.mxu0 0.0
      %1792 = vmatprep.subr.mxu0 0.0
      %1793 = vmatpush1.msra.mxu0 0.0
      %1794 = vmatprep.subr.mxu0 0.0
      %1795 = vmatpush1.msra.mxu0 0.0
      %1796 = vmatprep.subr.mxu0 0.0
      %1797 = vmatpush1.msra.mxu0 0.0
      %1798 = vmatprep.subr.mxu0 0.0
      %1799 = vmatpush1.msra.mxu0 0.0
      %1800 = vmatprep.subr.mxu0 0.0
      %1801 = vmatpush1.msra.mxu0 0.0
      %1802 = vmatprep.subr.mxu0 0.0
      %1803 = vmatpush1.msra.mxu0 0.0
      %1804 = vmatprep.subr.mxu0 0.0
      %1805 = vmatpush1.msra.mxu0 0.0
      %1806 = vmatprep.subr.mxu0 0.0
      %1807 = vmatpush1.msra.mxu0 0.0
      %1808 = vmatprep.subr.mxu0 0.0
      %1809 = vmatpush1.msra.mxu0 0.0
      %1810 = vmatprep.subr.mxu0 0.0
      %1811 = vmatpush1.msra.mxu0 0.0
      %1812 = vmatprep.subr.mxu0 0.0
      %1813 = vmatpush1.msra.mxu0 0.0
      %1814 = vmatprep.subr.mxu0 0.0
      %1815 = vmatpush1.msra.mxu0 0.0
      %1816 = vmatprep.subr.mxu0 0.0
      %1817 = vmatpush1.msra.mxu0 0.0
      %1818 = vmatprep.subr.mxu0 0.0
      %1819 = vmatpush1.msra.mxu0 0.0
      %1820 = vmatprep.subr.mxu0 0.0
      %1821 = vmatpush1.msra.mxu0 0.0
      %1822 = vmatprep.subr.mxu0 0.0
      %1823 = vmatpush1.msra.mxu0 0.0
      %1824 = vmatprep.subr.mxu0 0.0
      %1825 = vmatpush1.msra.mxu0 0.0
      %1826 = vmatprep.subr.mxu0 0.0
      %1827 = vmatpush1.msra.mxu0 0.0
      %1828 = vmatprep.mubr.f32.mxu0 0.0
      %1829 = vmatmul.mubr.f32.gmra.mrb[0].mxu0 %v852
      %v1830 = vpop.f32.mrb[0].mxu0
      %v1831 = vadd.f32 %v1762, %v1830
      %v1832 = vpop.f32.mrb[0].mxu0
      %1833 = vdwg.mxu0
      %vm1834 = vcmask 130048
      %v1836 = vsel %vm1834, %v1539, 0
      %v1839 = vsel %vm1834, %v1544, 0
      %v1842 = vsel %vm1834, %v1549, 0
      %v1845 = vsel %vm1834, %v1554, 0
      %v1848 = vsel %vm1834, %v1559, 0
      %v1851 = vsel %vm1834, %v1564, 0
      %v1854 = vsel %vm1834, %v1569, 0
      %v1857 = vsel %vm1834, %v1574, 0
      %v1860 = vsel %vm1834, %v1579, 0
      %v1863 = vsel %vm1834, %v1584, 0
      %v1866 = vsel %vm1834, %v1589, 0
      %v1869 = vsel %vm1834, %v1594, 0
      %v1872 = vsel %vm1834, %v1599, 0
      %v1875 = vsel %vm1834, %v1604, 0
      %v1878 = vsel %vm1834, %v1609, 0
      %v1881 = vsel %vm1834, %v1614, 0
      %v1884 = vsel %vm1834, %v1619, 0
      %v1887 = vsel %vm1834, %v1624, 0
      %v1890 = vsel %vm1834, %v1629, 0
      %v1893 = vsel %vm1834, %v1634, 0
      %v1896 = vsel %vm1834, %v1639, 0
      %v1899 = vsel %vm1834, %v1644, 0
      %v1902 = vsel %vm1834, %v1649, 0
      %v1905 = vsel %vm1834, %v1654, 0
      %v1908 = vsel %vm1834, %v1659, 0
      %v1911 = vsel %vm1834, %v1664, 0
      %v1914 = vsel %vm1834, %v1669, 0
      %v1917 = vsel %vm1834, %v1750, 0
      %1919 = vmatprep.subr.mxu0 0.0
      %1920 = vmatpush1.xpose.msra.mxu0 %v1917
      %1921 = vmatprep.subr.mxu0 0.0
      %1922 = vmatpush1.xpose.msra.mxu0 0.0
      %1923 = vmatprep.subr.mxu0 0.0
      %1924 = vmatpush1.xpose.msra.mxu0 0.0
      %1925 = vmatprep.subr.mxu0 0.0
      %1926 = vmatpush1.xpose.msra.mxu0 0.0
      %1927 = vmatprep.subr.mxu0 0.0
      %1928 = vmatpush1.xpose.msra.mxu0 0.0
      %1929 = vmatprep.subr.mxu0 0.0
      %1930 = vmatpush1.xpose.msra.mxu0 0.0
      %1931 = vmatprep.subr.mxu0 0.0
      %1932 = vmatpush1.xpose.msra.mxu0 0.0
      %1933 = vmatprep.subr.mxu0 0.0
      %1934 = vmatpush1.xpose.msra.mxu0 0.0
      %1935 = vmatprep.subr.mxu0 0.0
      %1936 = vmatpush1.xpose.msra.mxu0 0.0
      %1937 = vmatprep.subr.mxu0 0.0
      %1938 = vmatpush1.xpose.msra.mxu0 0.0
      %1939 = vmatprep.subr.mxu0 0.0
      %1940 = vmatpush1.xpose.msra.mxu0 0.0
      %1941 = vmatprep.subr.mxu0 0.0
      %1942 = vmatpush1.xpose.msra.mxu0 0.0
      %1943 = vmatprep.subr.mxu0 0.0
      %1944 = vmatpush1.xpose.msra.mxu0 0.0
      %1945 = vmatprep.subr.mxu0 0.0
      %1946 = vmatpush1.xpose.msra.mxu0 0.0
      %1947 = vmatprep.subr.mxu0 0.0
      %1948 = vmatpush1.xpose.msra.mxu0 0.0
      %1949 = vmatprep.subr.mxu0 0.0
      %1950 = vmatpush1.xpose.msra.mxu0 0.0
      %1951 = vmatprep.subr.mxu0 0.0
      %1952 = vmatpush1.xpose.msra.mxu0 0.0
      %1953 = vmatprep.subr.mxu0 0.0
      %1954 = vmatpush1.xpose.msra.mxu0 0.0
      %1955 = vmatprep.subr.mxu0 0.0
      %1956 = vmatpush1.xpose.msra.mxu0 0.0
      %1957 = vmatprep.subr.mxu0 0.0
      %1958 = vmatpush1.xpose.msra.mxu0 0.0
      %1959 = vmatprep.subr.mxu0 0.0
      %1960 = vmatpush1.xpose.msra.mxu0 0.0
      %1961 = vmatprep.subr.mxu0 0.0
      %1962 = vmatpush1.xpose.msra.mxu0 0.0
      %1963 = vmatprep.subr.mxu0 0.0
      %1964 = vmatpush1.xpose.msra.mxu0 0.0
      %1965 = vmatprep.subr.mxu0 0.0
      %1966 = vmatpush1.xpose.msra.mxu0 0.0
      %1967 = vmatprep.subr.mxu0 0.0
      %1968 = vmatpush1.xpose.msra.mxu0 0.0
      %1969 = vmatprep.subr.mxu0 0.0
      %1970 = vmatpush1.xpose.msra.mxu0 0.0
      %1971 = vmatprep.subr.mxu0 0.0
      %1972 = vmatpush1.xpose.msra.mxu0 0.0
      %1973 = vmatprep.subr.mxu0 0.0
      %1974 = vmatpush1.xpose.msra.mxu0 0.0
      %1975 = vmatprep.subr.mxu0 0.0
      %1976 = vmatpush1.xpose.msra.mxu0 0.0
      %1977 = vmatprep.subr.mxu0 0.0
      %1978 = vmatpush1.xpose.msra.mxu0 0.0
      %1979 = vmatprep.subr.mxu0 0.0
      %1980 = vmatpush1.xpose.msra.mxu0 0.0
      %1981 = vmatprep.subr.mxu0 0.0
      %1982 = vmatpush1.xpose.msra.mxu0 0.0
      %1983 = vmatprep.mubr.f32.mxu0 0.0
      %1984 = vmatmul.mubr.f32.gmra.mrb[0].mxu0 %v1836
      %v1985 = vpop.f32.mrb[0].mxu0
      %v1986 = vadd.f32 0.0, %v1985
      %v1987 = vpop.f32.mrb[0].mxu0
      %1988 = vmatprep.mubr.f32.mxu0 0.0
      %1989 = vmatmul.mubr.f32.gmra.mrb[0].mxu0 %v1839
      %v1990 = vpop.f32.mrb[0].mxu0
      %v1991 = vadd.f32 0.0, %v1990
      %v1992 = vpop.f32.mrb[0].mxu0
      %1993 = vmatprep.mubr.f32.mxu0 0.0
      %1994 = vmatmul.mubr.f32.gmra.mrb[0].mxu0 %v1842
      %v1995 = vpop.f32.mrb[0].mxu0
      %v1996 = vadd.f32 0.0, %v1995
      %v1997 = vpop.f32.mrb[0].mxu0
      %1998 = vmatprep.mubr.f32.mxu0 0.0
      %1999 = vmatmul.mubr.f32.gmra.mrb[0].mxu0 %v1845
      %v2000 = vpop.f32.mrb[0].mxu0
      %v2001 = vadd.f32 0.0, %v2000
      %v2002 = vpop.f32.mrb[0].mxu0
      %2003 = vmatprep.mubr.f32.mxu0 0.0
      %2004 = vmatmul.mubr.f32.gmra.mrb[0].mxu0 %v1848
      %v2005 = vpop.f32.mrb[0].mxu0
      %v2006 = vadd.f32 0.0, %v2005
      %v2007 = vpop.f32.mrb[0].mxu0
      %2008 = vmatprep.mubr.f32.mxu0 0.0
      %2009 = vmatmul.mubr.f32.gmra.mrb[0].mxu0 %v1851
      %v2010 = vpop.f32.mrb[0].mxu0
      %v2011 = vadd.f32 0.0, %v2010
      %v2012 = vpop.f32.mrb[0].mxu0
      %2013 = vmatprep.mubr.f32.mxu0 0.0
      %2014 = vmatmul.mubr.f32.gmra.mrb[0].mxu0 %v1854
      %v2015 = vpop.f32.mrb[0].mxu0
      %v2016 = vadd.f32 0.0, %v2015
      %v2017 = vpop.f32.mrb[0].mxu0
      %2018 = vmatprep.mubr.f32.mxu0 0.0
      %2019 = vmatmul.mubr.f32.gmra.mrb[0].mxu0 %v1857
      %v2020 = vpop.f32.mrb[0].mxu0
      %v2021 = vadd.f32 0.0, %v2020
      %v2022 = vpop.f32.mrb[0].mxu0
      %2023 = vmatprep.mubr.f32.mxu0 0.0
      %2024 = vmatmul.mubr.f32.gmra.mrb[0].mxu0 %v1860
      %v2025 = vpop.f32.mrb[0].mxu0
      %v2026 = vadd.f32 0.0, %v2025
      %v2027 = vpop.f32.mrb[0].mxu0
      %2028 = vmatprep.mubr.f32.mxu0 0.0
      %2029 = vmatmul.mubr.f32.gmra.mrb[0].mxu0 %v1863
      %v2030 = vpop.f32.mrb[0].mxu0
      %v2031 = vadd.f32 0.0, %v2030
      %v2032 = vpop.f32.mrb[0].mxu0
      %2033 = vmatprep.mubr.f32.mxu0 0.0
      %2034 = vmatmul.mubr.f32.gmra.mrb[0].mxu0 %v1866
      %v2035 = vpop.f32.mrb[0].mxu0
      %v2036 = vadd.f32 0.0, %v2035
      %v2037 = vpop.f32.mrb[0].mxu0
      %2038 = vmatprep.mubr.f32.mxu0 0.0
      %2039 = vmatmul.mubr.f32.gmra.mrb[0].mxu0 %v1869
      %v2040 = vpop.f32.mrb[0].mxu0
      %v2041 = vadd.f32 0.0, %v2040
      %v2042 = vpop.f32.mrb[0].mxu0
      %2043 = vmatprep.mubr.f32.mxu0 0.0
      %2044 = vmatmul.mubr.f32.gmra.mrb[0].mxu0 %v1872
      %v2045 = vpop.f32.mrb[0].mxu0
      %v2046 = vadd.f32 0.0, %v2045
      %v2047 = vpop.f32.mrb[0].mxu0
      %2048 = vmatprep.mubr.f32.mxu0 0.0
      %2049 = vmatmul.mubr.f32.gmra.mrb[0].mxu0 %v1875
      %v2050 = vpop.f32.mrb[0].mxu0
      %v2051 = vadd.f32 0.0, %v2050
      %v2052 = vpop.f32.mrb[0].mxu0
      %2053 = vmatprep.mubr.f32.mxu0 0.0
      %2054 = vmatmul.mubr.f32.gmra.mrb[0].mxu0 %v1878
      %v2055 = vpop.f32.mrb[0].mxu0
      %v2056 = vadd.f32 0.0, %v2055
      %v2057 = vpop.f32.mrb[0].mxu0
      %2058 = vmatprep.mubr.f32.mxu0 0.0
      %2059 = vmatmul.mubr.f32.gmra.mrb[0].mxu0 %v1881
      %v2060 = vpop.f32.mrb[0].mxu0
      %v2061 = vadd.f32 0.0, %v2060
      %v2062 = vpop.f32.mrb[0].mxu0
      %2063 = vmatprep.mubr.f32.mxu0 0.0
      %2064 = vmatmul.mubr.f32.gmra.mrb[0].mxu0 %v1884
      %v2065 = vpop.f32.mrb[0].mxu0
      %v2066 = vadd.f32 0.0, %v2065
      %v2067 = vpop.f32.mrb[0].mxu0
      %2068 = vmatprep.mubr.f32.mxu0 0.0
      %2069 = vmatmul.mubr.f32.gmra.mrb[0].mxu0 %v1887
      %v2070 = vpop.f32.mrb[0].mxu0
      %v2071 = vadd.f32 0.0, %v2070
      %v2072 = vpop.f32.mrb[0].mxu0
      %2073 = vmatprep.mubr.f32.mxu0 0.0
      %2074 = vmatmul.mubr.f32.gmra.mrb[0].mxu0 %v1890
      %v2075 = vpop.f32.mrb[0].mxu0
      %v2076 = vadd.f32 0.0, %v2075
      %v2077 = vpop.f32.mrb[0].mxu0
      %2078 = vmatprep.mubr.f32.mxu0 0.0
      %2079 = vmatmul.mubr.f32.gmra.mrb[0].mxu0 %v1893
      %v2080 = vpop.f32.mrb[0].mxu0
      %v2081 = vadd.f32 0.0, %v2080
      %v2082 = vpop.f32.mrb[0].mxu0
      %2083 = vmatprep.mubr.f32.mxu0 0.0
      %2084 = vmatmul.mubr.f32.gmra.mrb[0].mxu0 %v1896
      %v2085 = vpop.f32.mrb[0].mxu0
      %v2086 = vadd.f32 0.0, %v2085
      %v2087 = vpop.f32.mrb[0].mxu0
      %2088 = vmatprep.mubr.f32.mxu0 0.0
      %2089 = vmatmul.mubr.f32.gmra.mrb[0].mxu0 %v1899
      %v2090 = vpop.f32.mrb[0].mxu0
      %v2091 = vadd.f32 0.0, %v2090
      %v2092 = vpop.f32.mrb[0].mxu0
      %2093 = vmatprep.mubr.f32.mxu0 0.0
      %2094 = vmatmul.mubr.f32.gmra.mrb[0].mxu0 %v1902
      %v2095 = vpop.f32.mrb[0].mxu0
      %v2096 = vadd.f32 0.0, %v2095
      %v2097 = vpop.f32.mrb[0].mxu0
      %2098 = vmatprep.mubr.f32.mxu0 0.0
      %2099 = vmatmul.mubr.f32.gmra.mrb[0].mxu0 %v1905
      %v2100 = vpop.f32.mrb[0].mxu0
      %v2101 = vadd.f32 0.0, %v2100
      %v2102 = vpop.f32.mrb[0].mxu0
      %2103 = vmatprep.mubr.f32.mxu0 0.0
      %2104 = vmatmul.mubr.f32.gmra.mrb[0].mxu0 %v1908
      %v2105 = vpop.f32.mrb[0].mxu0
      %v2106 = vadd.f32 0.0, %v2105
      %v2107 = vpop.f32.mrb[0].mxu0
      %2108 = vmatprep.mubr.f32.mxu0 0.0
      %2109 = vmatmul.mubr.f32.gmra.mrb[0].mxu0 %v1911
      %v2110 = vpop.f32.mrb[0].mxu0
      %v2111 = vadd.f32 0.0, %v2110
      %v2112 = vpop.f32.mrb[0].mxu0
      %2113 = vmatprep.mubr.f32.mxu0 0.0
      %2114 = vmatmul.mubr.f32.gmra.mrb[0].mxu0 %v1914
      %v2115 = vpop.f32.mrb[0].mxu0
      %v2116 = vadd.f32 0.0, %v2115
      %v2117 = vpop.f32.mrb[0].mxu0
      %2118 = vdwg.mxu0
      %vm2119 = vcmask 64512
      %v2120 = vsel %vm2119, %v1986, -inf
      %2121 = vmax.xlane.f32.xlu0 %v2120
      %v2122 = vpop.xlane.xlu0 %2121
      %v2123 = vsel %vm2119, %v1991, -inf
      %2124 = vmax.xlane.f32.xlu0 %v2123
      %v2125 = vpop.xlane.xlu0 %2124
      %v2126 = vsel %vm2119, %v1996, -inf
      %2127 = vmax.xlane.f32.xlu0 %v2126
      %v2128 = vpop.xlane.xlu0 %2127
      %v2129 = vsel %vm2119, %v2001, -inf
      %2130 = vmax.xlane.f32.xlu0 %v2129
      %v2131 = vpop.xlane.xlu0 %2130
      %v2132 = vsel %vm2119, %v2006, -inf
      %2133 = vmax.xlane.f32.xlu0 %v2132
      %v2134 = vpop.xlane.xlu0 %2133
      %v2135 = vsel %vm2119, %v2011, -inf
      %2136 = vmax.xlane.f32.xlu0 %v2135
      %v2137 = vpop.xlane.xlu0 %2136
      %v2138 = vsel %vm2119, %v2016, -inf
      %2139 = vmax.xlane.f32.xlu0 %v2138
      %v2140 = vpop.xlane.xlu0 %2139
      %v2141 = vsel %vm2119, %v2021, -inf
      %2142 = vmax.xlane.f32.xlu0 %v2141
      %v2143 = vpop.xlane.xlu0 %2142
      %v2144 = vsel %vm2119, %v2026, -inf
      %2145 = vmax.xlane.f32.xlu0 %v2144
      %v2146 = vpop.xlane.xlu0 %2145
      %v2147 = vsel %vm2119, %v2031, -inf
      %2148 = vmax.xlane.f32.xlu0 %v2147
      %v2149 = vpop.xlane.xlu0 %2148
      %v2150 = vsel %vm2119, %v2036, -inf
      %2151 = vmax.xlane.f32.xlu0 %v2150
      %v2152 = vpop.xlane.xlu0 %2151
      %v2153 = vsel %vm2119, %v2041, -inf
      %2154 = vmax.xlane.f32.xlu0 %v2153
      %v2155 = vpop.xlane.xlu0 %2154
      %v2156 = vsel %vm2119, %v2046, -inf
      %2157 = vmax.xlane.f32.xlu0 %v2156
      %v2158 = vpop.xlane.xlu0 %2157
      %v2159 = vsel %vm2119, %v2051, -inf
      %2160 = vmax.xlane.f32.xlu0 %v2159
      %v2161 = vpop.xlane.xlu0 %2160
      %v2162 = vsel %vm2119, %v2056, -inf
      %2163 = vmax.xlane.f32.xlu0 %v2162
      %v2164 = vpop.xlane.xlu0 %2163
      %v2165 = vsel %vm2119, %v2061, -inf
      %2166 = vmax.xlane.f32.xlu0 %v2165
      %v2167 = vpop.xlane.xlu0 %2166
      %v2168 = vsel %vm2119, %v2066, -inf
      %2169 = vmax.xlane.f32.xlu0 %v2168
      %v2170 = vpop.xlane.xlu0 %2169
      %v2171 = vsel %vm2119, %v2071, -inf
      %2172 = vmax.xlane.f32.xlu0 %v2171
      %v2173 = vpop.xlane.xlu0 %2172
      %v2174 = vsel %vm2119, %v2076, -inf
      %2175 = vmax.xlane.f32.xlu0 %v2174
      %v2176 = vpop.xlane.xlu0 %2175
      %v2177 = vsel %vm2119, %v2081, -inf
      %2178 = vmax.xlane.f32.xlu0 %v2177
      %v2179 = vpop.xlane.xlu0 %2178
      %v2180 = vsel %vm2119, %v2086, -inf
      %2181 = vmax.xlane.f32.xlu0 %v2180
      %v2182 = vpop.xlane.xlu0 %2181
      %v2183 = vsel %vm2119, %v2091, -inf
      %2184 = vmax.xlane.f32.xlu0 %v2183
      %v2185 = vpop.xlane.xlu0 %2184
      %v2186 = vsel %vm2119, %v2096, -inf
      %2187 = vmax.xlane.f32.xlu0 %v2186
      %v2188 = vpop.xlane.xlu0 %2187
      %v2189 = vsel %vm2119, %v2101, -inf
      %2190 = vmax.xlane.f32.xlu0 %v2189
      %v2191 = vpop.xlane.xlu0 %2190
      %v2192 = vsel %vm2119, %v2106, -inf
      %2193 = vmax.xlane.f32.xlu0 %v2192
      %v2194 = vpop.xlane.xlu0 %2193
      %v2195 = vsel %vm2119, %v2111, -inf
      %2196 = vmax.xlane.f32.xlu0 %v2195
      %v2197 = vpop.xlane.xlu0 %2196
      %v2198 = vsel %vm2119, %v2116, -inf
      %2199 = vmax.xlane.f32.xlu0 %v2198
      %v2200 = vpop.xlane.xlu0 %2199
      %v2201 = vsub.f32 %v1986, %v2122
      %v2202 = vsub.f32 %v1991, %v2125
      %v2203 = vsub.f32 %v1996, %v2128
      %v2204 = vsub.f32 %v2001, %v2131
      %v2205 = vsub.f32 %v2006, %v2134
      %v2206 = vsub.f32 %v2011, %v2137
      %v2207 = vsub.f32 %v2016, %v2140
      %v2208 = vsub.f32 %v2021, %v2143
      %v2209 = vsub.f32 %v2026, %v2146
      %v2210 = vsub.f32 %v2031, %v2149
      %v2211 = vsub.f32 %v2036, %v2152
      %v2212 = vsub.f32 %v2041, %v2155
      %v2213 = vsub.f32 %v2046, %v2158
      %v2214 = vsub.f32 %v2051, %v2161
      %v2215 = vsub.f32 %v2056, %v2164
      %v2216 = vsub.f32 %v2061, %v2167
      %v2217 = vsub.f32 %v2066, %v2170
      %v2218 = vsub.f32 %v2071, %v2173
      %v2219 = vsub.f32 %v2076, %v2176
      %v2220 = vsub.f32 %v2081, %v2179
      %v2221 = vsub.f32 %v2086, %v2182
      %v2222 = vsub.f32 %v2091, %v2185
      %v2223 = vsub.f32 %v2096, %v2188
      %v2224 = vsub.f32 %v2101, %v2191
      %v2225 = vsub.f32 %v2106, %v2194
      %v2226 = vsub.f32 %v2111, %v2197
      %v2227 = vsub.f32 %v2116, %v2200
      %v2228 = vmul.f32 %v2201, 1.442695
      %v2229 = vpow.pop %v2228
      %v2230 = vmul.f32 %v2202, 1.442695
      %v2231 = vpow.pop %v2230
      %v2232 = vmul.f32 %v2203, 1.442695
      %v2233 = vpow.pop %v2232
      %v2234 = vmul.f32 %v2204, 1.442695
      %v2235 = vpow.pop %v2234
      %v2236 = vmul.f32 %v2205, 1.442695
      %v2237 = vpow.pop %v2236
      %v2238 = vmul.f32 %v2206, 1.442695
      %v2239 = vpow.pop %v2238
      %v2240 = vmul.f32 %v2207, 1.442695
      %v2241 = vpow.pop %v2240
      %v2242 = vmul.f32 %v2208, 1.442695
      %v2243 = vpow.pop %v2242
      %v2244 = vmul.f32 %v2209, 1.442695
      %v2245 = vpow.pop %v2244
      %v2246 = vmul.f32 %v2210, 1.442695
      %v2247 = vpow.pop %v2246
      %v2248 = vmul.f32 %v2211, 1.442695
      %v2249 = vpow.pop %v2248
      %v2250 = vmul.f32 %v2212, 1.442695
      %v2251 = vpow.pop %v2250
      %v2252 = vmul.f32 %v2213, 1.442695
      %v2253 = vpow.pop %v2252
      %v2254 = vmul.f32 %v2214, 1.442695
      %v2255 = vpow.pop %v2254
      %v2256 = vmul.f32 %v2215, 1.442695
      %v2257 = vpow.pop %v2256
      %v2258 = vmul.f32 %v2216, 1.442695
      %v2259 = vpow.pop %v2258
      %v2260 = vmul.f32 %v2217, 1.442695
      %v2261 = vpow.pop %v2260
      %v2262 = vmul.f32 %v2218, 1.442695
      %v2263 = vpow.pop %v2262
      %v2264 = vmul.f32 %v2219, 1.442695
      %v2265 = vpow.pop %v2264
      %v2266 = vmul.f32 %v2220, 1.442695
      %v2267 = vpow.pop %v2266
      %v2268 = vmul.f32 %v2221, 1.442695
      %v2269 = vpow.pop %v2268
      %v2270 = vmul.f32 %v2222, 1.442695
      %v2271 = vpow.pop %v2270
      %v2272 = vmul.f32 %v2223, 1.442695
      %v2273 = vpow.pop %v2272
      %v2274 = vmul.f32 %v2224, 1.442695
      %v2275 = vpow.pop %v2274
      %v2276 = vmul.f32 %v2225, 1.442695
      %v2277 = vpow.pop %v2276
      %v2278 = vmul.f32 %v2226, 1.442695
      %v2279 = vpow.pop %v2278
      %v2280 = vmul.f32 %v2227, 1.442695
      %v2281 = vpow.pop %v2280
      %v2282 = vsel %vm2119, %v2229, 0.0
      %2283 = vadd.xlane.f32.xlu0 %v2282
      %v2284 = vpop.xlane.xlu0 %2283
      %v2285 = vsel %vm2119, %v2231, 0.0
      %2286 = vadd.xlane.f32.xlu0 %v2285
      %v2287 = vpop.xlane.xlu0 %2286
      %v2288 = vsel %vm2119, %v2233, 0.0
      %2289 = vadd.xlane.f32.xlu0 %v2288
      %v2290 = vpop.xlane.xlu0 %2289
      %v2291 = vsel %vm2119, %v2235, 0.0
      %2292 = vadd.xlane.f32.xlu0 %v2291
      %v2293 = vpop.xlane.xlu0 %2292
      %v2294 = vsel %vm2119, %v2237, 0.0
      %2295 = vadd.xlane.f32.xlu0 %v2294
      %v2296 = vpop.xlane.xlu0 %2295
      %v2297 = vsel %vm2119, %v2239, 0.0
      %2298 = vadd.xlane.f32.xlu0 %v2297
      %v2299 = vpop.xlane.xlu0 %2298
      %v2300 = vsel %vm2119, %v2241, 0.0
      %2301 = vadd.xlane.f32.xlu0 %v2300
      %v2302 = vpop.xlane.xlu0 %2301
      %v2303 = vsel %vm2119, %v2243, 0.0
      %2304 = vadd.xlane.f32.xlu0 %v2303
      %v2305 = vpop.xlane.xlu0 %2304
      %v2306 = vsel %vm2119, %v2245, 0.0
      %2307 = vadd.xlane.f32.xlu0 %v2306
      %v2308 = vpop.xlane.xlu0 %2307
      %v2309 = vsel %vm2119, %v2247, 0.0
      %2310 = vadd.xlane.f32.xlu0 %v2309
      %v2311 = vpop.xlane.xlu0 %2310
      %v2312 = vsel %vm2119, %v2249, 0.0
      %2313 = vadd.xlane.f32.xlu0 %v2312
      %v2314 = vpop.xlane.xlu0 %2313
      %v2315 = vsel %vm2119, %v2251, 0.0
      %2316 = vadd.xlane.f32.xlu0 %v2315
      %v2317 = vpop.xlane.xlu0 %2316
      %v2318 = vsel %vm2119, %v2253, 0.0
      %2319 = vadd.xlane.f32.xlu0 %v2318
      %v2320 = vpop.xlane.xlu0 %2319
      %v2321 = vsel %vm2119, %v2255, 0.0
      %2322 = vadd.xlane.f32.xlu0 %v2321
      %v2323 = vpop.xlane.xlu0 %2322
      %v2324 = vsel %vm2119, %v2257, 0.0
      %2325 = vadd.xlane.f32.xlu0 %v2324
      %v2326 = vpop.xlane.xlu0 %2325
      %v2327 = vsel %vm2119, %v2259, 0.0
      %2328 = vadd.xlane.f32.xlu0 %v2327
      %v2329 = vpop.xlane.xlu0 %2328
      %v2330 = vsel %vm2119, %v2261, 0.0
      %2331 = vadd.xlane.f32.xlu0 %v2330
      %v2332 = vpop.xlane.xlu0 %2331
      %v2333 = vsel %vm2119, %v2263, 0.0
      %2334 = vadd.xlane.f32.xlu0 %v2333
      %v2335 = vpop.xlane.xlu0 %2334
      %v2336 = vsel %vm2119, %v2265, 0.0
      %2337 = vadd.xlane.f32.xlu0 %v2336
      %v2338 = vpop.xlane.xlu0 %2337
      %v2339 = vsel %vm2119, %v2267, 0.0
      %2340 = vadd.xlane.f32.xlu0 %v2339
      %v2341 = vpop.xlane.xlu0 %2340
      %v2342 = vsel %vm2119, %v2269, 0.0
      %2343 = vadd.xlane.f32.xlu0 %v2342
      %v2344 = vpop.xlane.xlu0 %2343
      %v2345 = vsel %vm2119, %v2271, 0.0
      %2346 = vadd.xlane.f32.xlu0 %v2345
      %v2347 = vpop.xlane.xlu0 %2346
      %v2348 = vsel %vm2119, %v2273, 0.0
      %2349 = vadd.xlane.f32.xlu0 %v2348
      %v2350 = vpop.xlane.xlu0 %2349
      %v2351 = vsel %vm2119, %v2275, 0.0
      %2352 = vadd.xlane.f32.xlu0 %v2351
      %v2353 = vpop.xlane.xlu0 %2352
      %v2354 = vsel %vm2119, %v2277, 0.0
      %2355 = vadd.xlane.f32.xlu0 %v2354
      %v2356 = vpop.xlane.xlu0 %2355
      %v2357 = vsel %vm2119, %v2279, 0.0
      %2358 = vadd.xlane.f32.xlu0 %v2357
      %v2359 = vpop.xlane.xlu0 %2358
      %v2360 = vsel %vm2119, %v2281, 0.0
      %2361 = vadd.xlane.f32.xlu0 %v2360
      %v2362 = vpop.xlane.xlu0 %2361
      %v2363 = vrcp.pop %v2284
      %v2364 = vrcp.pop %v2287
      %v2365 = vrcp.pop %v2290
      %v2366 = vrcp.pop %v2293
      %v2367 = vrcp.pop %v2296
      %v2368 = vrcp.pop %v2299
      %v2369 = vrcp.pop %v2302
      %v2370 = vrcp.pop %v2305
      %v2371 = vrcp.pop %v2308
      %v2372 = vrcp.pop %v2311
      %v2373 = vrcp.pop %v2314
      %v2374 = vrcp.pop %v2317
      %v2375 = vrcp.pop %v2320
      %v2376 = vrcp.pop %v2323
      %v2377 = vrcp.pop %v2326
      %v2378 = vrcp.pop %v2329
      %v2379 = vrcp.pop %v2332
      %v2380 = vrcp.pop %v2335
      %v2381 = vrcp.pop %v2338
      %v2382 = vrcp.pop %v2341
      %v2383 = vrcp.pop %v2344
      %v2384 = vrcp.pop %v2347
      %v2385 = vrcp.pop %v2350
      %v2386 = vrcp.pop %v2353
      %v2387 = vrcp.pop %v2356
      %v2388 = vrcp.pop %v2359
      %v2389 = vrcp.pop %v2362
      %v2390 = vmul.f32 %v2229, %v2363
      %v2391 = vmul.f32 %v2231, %v2364
      %v2392 = vmul.f32 %v2233, %v2365
      %v2393 = vmul.f32 %v2235, %v2366
      %v2394 = vmul.f32 %v2237, %v2367
      %v2395 = vmul.f32 %v2239, %v2368
      %v2396 = vmul.f32 %v2241, %v2369
      %v2397 = vmul.f32 %v2243, %v2370
      %v2398 = vmul.f32 %v2245, %v2371
      %v2399 = vmul.f32 %v2247, %v2372
      %v2400 = vmul.f32 %v2249, %v2373
      %v2401 = vmul.f32 %v2251, %v2374
      %v2402 = vmul.f32 %v2253, %v2375
      %v2403 = vmul.f32 %v2255, %v2376
      %v2404 = vmul.f32 %v2257, %v2377
      %v2405 = vmul.f32 %v2259, %v2378
      %v2406 = vmul.f32 %v2261, %v2379
      %v2407 = vmul.f32 %v2263, %v2380
      %v2408 = vmul.f32 %v2265, %v2381
      %v2409 = vmul.f32 %v2267, %v2382
      %v2410 = vmul.f32 %v2269, %v2383
      %v2411 = vmul.f32 %v2271, %v2384
      %v2412 = vmul.f32 %v2273, %v2385
      %v2413 = vmul.f32 %v2275, %v2386
      %v2414 = vmul.f32 %v2277, %v2387
      %v2415 = vmul.f32 %v2279, %v2388
      %v2416 = vmul.f32 %v2281, %v2389
      %v2418 = vsel %vm2119, %v2390, 0
      %v2421 = vsel %vm2119, %v2391, 0
      %v2424 = vsel %vm2119, %v2392, 0
      %v2427 = vsel %vm2119, %v2393, 0
      %v2430 = vsel %vm2119, %v2394, 0
      %v2433 = vsel %vm2119, %v2395, 0
      %v2436 = vsel %vm2119, %v2396, 0
      %v2439 = vsel %vm2119, %v2397, 0
      %v2442 = vsel %vm2119, %v2398, 0
      %v2445 = vsel %vm2119, %v2399, 0
      %v2448 = vsel %vm2119, %v2400, 0
      %v2451 = vsel %vm2119, %v2401, 0
      %v2454 = vsel %vm2119, %v2402, 0
      %v2457 = vsel %vm2119, %v2403, 0
      %v2460 = vsel %vm2119, %v2404, 0
      %v2463 = vsel %vm2119, %v2405, 0
      %v2466 = vsel %vm2119, %v2406, 0
      %v2469 = vsel %vm2119, %v2407, 0
      %v2472 = vsel %vm2119, %v2408, 0
      %v2475 = vsel %vm2119, %v2409, 0
      %v2478 = vsel %vm2119, %v2410, 0
      %v2481 = vsel %vm2119, %v2411, 0
      %v2484 = vsel %vm2119, %v2412, 0
      %v2487 = vsel %vm2119, %v2413, 0
      %v2490 = vsel %vm2119, %v2414, 0
      %v2493 = vsel %vm2119, %v2415, 0
      %v2496 = vsel %vm2119, %v2416, 0
      %2498 = vmatprep.subr.mxu0 0.0
      %2499 = vmatpush1.msra.mxu0 %v1831
      %2500 = vmatprep.subr.mxu0 0.0
      %2501 = vmatpush1.msra.mxu0 0.0
      %2502 = vmatprep.subr.mxu0 0.0
      %2503 = vmatpush1.msra.mxu0 0.0
      %2504 = vmatprep.subr.mxu0 0.0
      %2505 = vmatpush1.msra.mxu0 0.0
      %2506 = vmatprep.subr.mxu0 0.0
      %2507 = vmatpush1.msra.mxu0 0.0
      %2508 = vmatprep.subr.mxu0 0.0
      %2509 = vmatpush1.msra.mxu0 0.0
      %2510 = vmatprep.subr.mxu0 0.0
      %2511 = vmatpush1.msra.mxu0 0.0
      %2512 = vmatprep.subr.mxu0 0.0
      %2513 = vmatpush1.msra.mxu0 0.0
      %2514 = vmatprep.subr.mxu0 0.0
      %2515 = vmatpush1.msra.mxu0 0.0
      %2516 = vmatprep.subr.mxu0 0.0
      %2517 = vmatpush1.msra.mxu0 0.0
      %2518 = vmatprep.subr.mxu0 0.0
      %2519 = vmatpush1.msra.mxu0 0.0
      %2520 = vmatprep.subr.mxu0 0.0
      %2521 = vmatpush1.msra.mxu0 0.0
      %2522 = vmatprep.subr.mxu0 0.0
      %2523 = vmatpush1.msra.mxu0 0.0
      %2524 = vmatprep.subr.mxu0 0.0
      %2525 = vmatpush1.msra.mxu0 0.0
      %2526 = vmatprep.subr.mxu0 0.0
      %2527 = vmatpush1.msra.mxu0 0.0
      %2528 = vmatprep.subr.mxu0 0.0
      %2529 = vmatpush1.msra.mxu0 0.0
      %2530 = vmatprep.subr.mxu0 0.0
      %2531 = vmatpush1.msra.mxu0 0.0
      %2532 = vmatprep.subr.mxu0 0.0
      %2533 = vmatpush1.msra.mxu0 0.0
      %2534 = vmatprep.subr.mxu0 0.0
      %2535 = vmatpush1.msra.mxu0 0.0
      %2536 = vmatprep.subr.mxu0 0.0
      %2537 = vmatpush1.msra.mxu0 0.0
      %2538 = vmatprep.subr.mxu0 0.0
      %2539 = vmatpush1.msra.mxu0 0.0
      %2540 = vmatprep.subr.mxu0 0.0
      %2541 = vmatpush1.msra.mxu0 0.0
      %2542 = vmatprep.subr.mxu0 0.0
      %2543 = vmatpush1.msra.mxu0 0.0
      %2544 = vmatprep.subr.mxu0 0.0
      %2545 = vmatpush1.msra.mxu0 0.0
      %2546 = vmatprep.subr.mxu0 0.0
      %2547 = vmatpush1.msra.mxu0 0.0
      %2548 = vmatprep.subr.mxu0 0.0
      %2549 = vmatpush1.msra.mxu0 0.0
      %2550 = vmatprep.subr.mxu0 0.0
      %2551 = vmatpush1.msra.mxu0 0.0
      %2552 = vmatprep.subr.mxu0 0.0
      %2553 = vmatpush1.msra.mxu0 0.0
      %2554 = vmatprep.subr.mxu0 0.0
      %2555 = vmatpush1.msra.mxu0 0.0
      %2556 = vmatprep.subr.mxu0 0.0
      %2557 = vmatpush1.msra.mxu0 0.0
      %2558 = vmatprep.subr.mxu0 0.0
      %2559 = vmatpush1.msra.mxu0 0.0
      %2560 = vmatprep.subr.mxu0 0.0
      %2561 = vmatpush1.msra.mxu0 0.0
      %2562 = vmatprep.mubr.f32.mxu0 0.0
      %2563 = vmatmul.mubr.f32.gmra.mrb[0].mxu0 %v2418
      %v2564 = vpop.f32.mrb[0].mxu0
      %v2565 = vadd.f32 0.0, %v2564
      %v2566 = vpop.f32.mrb[0].mxu0
      %2567 = vmatprep.mubr.f32.mxu0 0.0
      %2568 = vmatmul.mubr.f32.gmra.mrb[0].mxu0 %v2421
      %v2569 = vpop.f32.mrb[0].mxu0
      %v2570 = vadd.f32 0.0, %v2569
      %v2571 = vpop.f32.mrb[0].mxu0
      %2572 = vmatprep.mubr.f32.mxu0 0.0
      %2573 = vmatmul.mubr.f32.gmra.mrb[0].mxu0 %v2424
      %v2574 = vpop.f32.mrb[0].mxu0
      %v2575 = vadd.f32 0.0, %v2574
      %v2576 = vpop.f32.mrb[0].mxu0
      %2577 = vmatprep.mubr.f32.mxu0 0.0
      %2578 = vmatmul.mubr.f32.gmra.mrb[0].mxu0 %v2427
      %v2579 = vpop.f32.mrb[0].mxu0
      %v2580 = vadd.f32 0.0, %v2579
      %v2581 = vpop.f32.mrb[0].mxu0
      %2582 = vmatprep.mubr.f32.mxu0 0.0
      %2583 = vmatmul.mubr.f32.gmra.mrb[0].mxu0 %v2430
      %v2584 = vpop.f32.mrb[0].mxu0
      %v2585 = vadd.f32 0.0, %v2584
      %v2586 = vpop.f32.mrb[0].mxu0
      %2587 = vmatprep.mubr.f32.mxu0 0.0
      %2588 = vmatmul.mubr.f32.gmra.mrb[0].mxu0 %v2433
      %v2589 = vpop.f32.mrb[0].mxu0
      %v2590 = vadd.f32 0.0, %v2589
      %v2591 = vpop.f32.mrb[0].mxu0
      %2592 = vmatprep.mubr.f32.mxu0 0.0
      %2593 = vmatmul.mubr.f32.gmra.mrb[0].mxu0 %v2436
      %v2594 = vpop.f32.mrb[0].mxu0
      %v2595 = vadd.f32 0.0, %v2594
      %v2596 = vpop.f32.mrb[0].mxu0
      %2597 = vmatprep.mubr.f32.mxu0 0.0
      %2598 = vmatmul.mubr.f32.gmra.mrb[0].mxu0 %v2439
      %v2599 = vpop.f32.mrb[0].mxu0
      %v2600 = vadd.f32 0.0, %v2599
      %v2601 = vpop.f32.mrb[0].mxu0
      %2602 = vmatprep.mubr.f32.mxu0 0.0
      %2603 = vmatmul.mubr.f32.gmra.mrb[0].mxu0 %v2442
      %v2604 = vpop.f32.mrb[0].mxu0
      %v2605 = vadd.f32 0.0, %v2604
      %v2606 = vpop.f32.mrb[0].mxu0
      %2607 = vmatprep.mubr.f32.mxu0 0.0
      %2608 = vmatmul.mubr.f32.gmra.mrb[0].mxu0 %v2445
      %v2609 = vpop.f32.mrb[0].mxu0
      %v2610 = vadd.f32 0.0, %v2609
      %v2611 = vpop.f32.mrb[0].mxu0
      %2612 = vmatprep.mubr.f32.mxu0 0.0
      %2613 = vmatmul.mubr.f32.gmra.mrb[0].mxu0 %v2448
      %v2614 = vpop.f32.mrb[0].mxu0
      %v2615 = vadd.f32 0.0, %v2614
      %v2616 = vpop.f32.mrb[0].mxu0
      %2617 = vmatprep.mubr.f32.mxu0 0.0
      %2618 = vmatmul.mubr.f32.gmra.mrb[0].mxu0 %v2451
      %v2619 = vpop.f32.mrb[0].mxu0
      %v2620 = vadd.f32 0.0, %v2619
      %v2621 = vpop.f32.mrb[0].mxu0
      %2622 = vmatprep.mubr.f32.mxu0 0.0
      %2623 = vmatmul.mubr.f32.gmra.mrb[0].mxu0 %v2454
      %v2624 = vpop.f32.mrb[0].mxu0
      %v2625 = vadd.f32 0.0, %v2624
      %v2626 = vpop.f32.mrb[0].mxu0
      %2627 = vmatprep.mubr.f32.mxu0 0.0
      %2628 = vmatmul.mubr.f32.gmra.mrb[0].mxu0 %v2457
      %v2629 = vpop.f32.mrb[0].mxu0
      %v2630 = vadd.f32 0.0, %v2629
      %v2631 = vpop.f32.mrb[0].mxu0
      %2632 = vmatprep.mubr.f32.mxu0 0.0
      %2633 = vmatmul.mubr.f32.gmra.mrb[0].mxu0 %v2460
      %v2634 = vpop.f32.mrb[0].mxu0
      %v2635 = vadd.f32 0.0, %v2634
      %v2636 = vpop.f32.mrb[0].mxu0
      %2637 = vmatprep.mubr.f32.mxu0 0.0
      %2638 = vmatmul.mubr.f32.gmra.mrb[0].mxu0 %v2463
      %v2639 = vpop.f32.mrb[0].mxu0
      %v2640 = vadd.f32 0.0, %v2639
      %v2641 = vpop.f32.mrb[0].mxu0
      %2642 = vmatprep.mubr.f32.mxu0 0.0
      %2643 = vmatmul.mubr.f32.gmra.mrb[0].mxu0 %v2466
      %v2644 = vpop.f32.mrb[0].mxu0
      %v2645 = vadd.f32 0.0, %v2644
      %v2646 = vpop.f32.mrb[0].mxu0
      %2647 = vmatprep.mubr.f32.mxu0 0.0
      %2648 = vmatmul.mubr.f32.gmra.mrb[0].mxu0 %v2469
      %v2649 = vpop.f32.mrb[0].mxu0
      %v2650 = vadd.f32 0.0, %v2649
      %v2651 = vpop.f32.mrb[0].mxu0
      %2652 = vmatprep.mubr.f32.mxu0 0.0
      %2653 = vmatmul.mubr.f32.gmra.mrb[0].mxu0 %v2472
      %v2654 = vpop.f32.mrb[0].mxu0
      %v2655 = vadd.f32 0.0, %v2654
      %v2656 = vpop.f32.mrb[0].mxu0
      %2657 = vmatprep.mubr.f32.mxu0 0.0
      %2658 = vmatmul.mubr.f32.gmra.mrb[0].mxu0 %v2475
      %v2659 = vpop.f32.mrb[0].mxu0
      %v2660 = vadd.f32 0.0, %v2659
      %v2661 = vpop.f32.mrb[0].mxu0
      %2662 = vmatprep.mubr.f32.mxu0 0.0
      %2663 = vmatmul.mubr.f32.gmra.mrb[0].mxu0 %v2478
      %v2664 = vpop.f32.mrb[0].mxu0
      %v2665 = vadd.f32 0.0, %v2664
      %v2666 = vpop.f32.mrb[0].mxu0
      %2667 = vmatprep.mubr.f32.mxu0 0.0
      %2668 = vmatmul.mubr.f32.gmra.mrb[0].mxu0 %v2481
      %v2669 = vpop.f32.mrb[0].mxu0
      %v2670 = vadd.f32 0.0, %v2669
      %v2671 = vpop.f32.mrb[0].mxu0
      %2672 = vmatprep.mubr.f32.mxu0 0.0
      %2673 = vmatmul.mubr.f32.gmra.mrb[0].mxu0 %v2484
      %v2674 = vpop.f32.mrb[0].mxu0
      %v2675 = vadd.f32 0.0, %v2674
      %v2676 = vpop.f32.mrb[0].mxu0
      %2677 = vmatprep.mubr.f32.mxu0 0.0
      %2678 = vmatmul.mubr.f32.gmra.mrb[0].mxu0 %v2487
      %v2679 = vpop.f32.mrb[0].mxu0
      %v2680 = vadd.f32 0.0, %v2679
      %v2681 = vpop.f32.mrb[0].mxu0
      %2682 = vmatprep.mubr.f32.mxu0 0.0
      %2683 = vmatmul.mubr.f32.gmra.mrb[0].mxu0 %v2490
      %v2684 = vpop.f32.mrb[0].mxu0
      %v2685 = vadd.f32 0.0, %v2684
      %v2686 = vpop.f32.mrb[0].mxu0
      %2687 = vmatprep.mubr.f32.mxu0 0.0
      %2688 = vmatmul.mubr.f32.gmra.mrb[0].mxu0 %v2493
      %v2689 = vpop.f32.mrb[0].mxu0
      %v2690 = vadd.f32 0.0, %v2689
      %v2691 = vpop.f32.mrb[0].mxu0
      %2692 = vmatprep.mubr.f32.mxu0 0.0
      %2693 = vmatmul.mubr.f32.gmra.mrb[0].mxu0 %v2496
      %v2694 = vpop.f32.mrb[0].mxu0
      %v2695 = vadd.f32 0.0, %v2694
      %v2696 = vpop.f32.mrb[0].mxu0
      %2697 = vdwg.mxu0
      %v2698 = vld [vmem:[%s11] sm:$0xff]
      %v2699 = vld [vmem:[%s11 + $0x8] sm:$0xff]
      %v2700 = vld [vmem:[%s11 + $0x10] sm:$0xff]
      %v2701 = vld [vmem:[%s11 + $0x18] sm:$0xff]
      %v2702 = vld [vmem:[%s12] sm:$0x1]
      %v2704 = vlaneseq
      %v2705 = vshrl.u32 %v2704, 7
      %v2706 = vsub.s32 0, %v2705
      %v2707 = vrot.slane %v2702, %v2706
      %v2710 = vsel %vm850, %v2565, 0
      %v2713 = vsel %vm850, %v2570, 0
      %v2716 = vsel %vm850, %v2575, 0
      %v2719 = vsel %vm850, %v2580, 0
      %v2722 = vsel %vm850, %v2585, 0
      %v2725 = vsel %vm850, %v2590, 0
      %v2728 = vsel %vm850, %v2595, 0
      %v2731 = vsel %vm850, %v2600, 0
      %v2734 = vsel %vm850, %v2605, 0
      %v2737 = vsel %vm850, %v2610, 0
      %v2740 = vsel %vm850, %v2615, 0
      %v2743 = vsel %vm850, %v2620, 0
      %v2746 = vsel %vm850, %v2625, 0
      %v2749 = vsel %vm850, %v2630, 0
      %v2752 = vsel %vm850, %v2635, 0
      %v2755 = vsel %vm850, %v2640, 0
      %v2758 = vsel %vm850, %v2645, 0
      %v2761 = vsel %vm850, %v2650, 0
      %v2764 = vsel %vm850, %v2655, 0
      %v2767 = vsel %vm850, %v2660, 0
      %v2770 = vsel %vm850, %v2665, 0
      %v2773 = vsel %vm850, %v2670, 0
      %v2776 = vsel %vm850, %v2675, 0
      %v2779 = vsel %vm850, %v2680, 0
      %v2782 = vsel %vm850, %v2685, 0
      %v2785 = vsel %vm850, %v2690, 0
      %v2788 = vsel %vm850, %v2695, 0
      %2790 = vmatprep.subr.mxu0 0.0
      %2791 = vmatpush1.msra.mxu0 %v2698
      %2792 = vmatprep.subr.mxu0 0.0
      %2793 = vmatpush1.msra.mxu0 %v2699
      %2794 = vmatprep.subr.mxu0 0.0
      %2795 = vmatpush1.msra.mxu0 %v2700
      %2796 = vmatprep.subr.mxu0 0.0
      %2797 = vmatpush1.msra.mxu0 %v2701
      %2798 = vmatprep.subr.mxu0 0.0
      %2799 = vmatpush1.msra.mxu0 0.0
      %2800 = vmatprep.subr.mxu0 0.0
      %2801 = vmatpush1.msra.mxu0 0.0
      %2802 = vmatprep.subr.mxu0 0.0
      %2803 = vmatpush1.msra.mxu0 0.0
      %2804 = vmatprep.subr.mxu0 0.0
      %2805 = vmatpush1.msra.mxu0 0.0
      %2806 = vmatprep.subr.mxu0 0.0
      %2807 = vmatpush1.msra.mxu0 0.0
      %2808 = vmatprep.subr.mxu0 0.0
      %2809 = vmatpush1.msra.mxu0 0.0
      %2810 = vmatprep.subr.mxu0 0.0
      %2811 = vmatpush1.msra.mxu0 0.0
      %2812 = vmatprep.subr.mxu0 0.0
      %2813 = vmatpush1.msra.mxu0 0.0
      %2814 = vmatprep.subr.mxu0 0.0
      %2815 = vmatpush1.msra.mxu0 0.0
      %2816 = vmatprep.subr.mxu0 0.0
      %2817 = vmatpush1.msra.mxu0 0.0
      %2818 = vmatprep.subr.mxu0 0.0
      %2819 = vmatpush1.msra.mxu0 0.0
      %2820 = vmatprep.subr.mxu0 0.0
      %2821 = vmatpush1.msra.mxu0 0.0
      %2822 = vmatprep.subr.mxu0 0.0
      %2823 = vmatpush1.msra.mxu0 0.0
      %2824 = vmatprep.subr.mxu0 0.0
      %2825 = vmatpush1.msra.mxu0 0.0
      %2826 = vmatprep.subr.mxu0 0.0
      %2827 = vmatpush1.msra.mxu0 0.0
      %2828 = vmatprep.subr.mxu0 0.0
      %2829 = vmatpush1.msra.mxu0 0.0
      %2830 = vmatprep.subr.mxu0 0.0
      %2831 = vmatpush1.msra.mxu0 0.0
      %2832 = vmatprep.subr.mxu0 0.0
      %2833 = vmatpush1.msra.mxu0 0.0
      %2834 = vmatprep.subr.mxu0 0.0
      %2835 = vmatpush1.msra.mxu0 0.0
      %2836 = vmatprep.subr.mxu0 0.0
      %2837 = vmatpush1.msra.mxu0 0.0
      %2838 = vmatprep.subr.mxu0 0.0
      %2839 = vmatpush1.msra.mxu0 0.0
      %2840 = vmatprep.subr.mxu0 0.0
      %2841 = vmatpush1.msra.mxu0 0.0
      %2842 = vmatprep.subr.mxu0 0.0
      %2843 = vmatpush1.msra.mxu0 0.0
      %2844 = vmatprep.subr.mxu0 0.0
      %2845 = vmatpush1.msra.mxu0 0.0
      %2846 = vmatprep.subr.mxu0 0.0
      %2847 = vmatpush1.msra.mxu0 0.0
      %2848 = vmatprep.subr.mxu0 0.0
      %2849 = vmatpush1.msra.mxu0 0.0
      %2850 = vmatprep.subr.mxu0 0.0
      %2851 = vmatpush1.msra.mxu0 0.0
      %2852 = vmatprep.subr.mxu0 0.0
      %2853 = vmatpush1.msra.mxu0 0.0
      %2854 = vmatprep.mubr.f32.mxu0 0.0
      %2855 = vmatmul.mubr.f32.gmra.mrb[0].mxu0 %v2710
      %v2856 = vpop.f32.mrb[0].mxu0
      %v2857 = vadd.f32 %v2707, %v2856
      %v2858 = vpop.f32.mrb[0].mxu0
      %2859 = vmatprep.mubr.f32.mxu0 0.0
      %2860 = vmatmul.mubr.f32.gmra.mrb[0].mxu0 %v2713
      %v2861 = vpop.f32.mrb[0].mxu0
      %v2862 = vadd.f32 %v2707, %v2861
      %v2863 = vpop.f32.mrb[0].mxu0
      %2864 = vmatprep.mubr.f32.mxu0 0.0
      %2865 = vmatmul.mubr.f32.gmra.mrb[0].mxu0 %v2716
      %v2866 = vpop.f32.mrb[0].mxu0
      %v2867 = vadd.f32 %v2707, %v2866
      %v2868 = vpop.f32.mrb[0].mxu0
      %2869 = vmatprep.mubr.f32.mxu0 0.0
      %2870 = vmatmul.mubr.f32.gmra.mrb[0].mxu0 %v2719
      %v2871 = vpop.f32.mrb[0].mxu0
      %v2872 = vadd.f32 %v2707, %v2871
      %v2873 = vpop.f32.mrb[0].mxu0
      %2874 = vmatprep.mubr.f32.mxu0 0.0
      %2875 = vmatmul.mubr.f32.gmra.mrb[0].mxu0 %v2722
      %v2876 = vpop.f32.mrb[0].mxu0
      %v2877 = vadd.f32 %v2707, %v2876
      %v2878 = vpop.f32.mrb[0].mxu0
      %2879 = vmatprep.mubr.f32.mxu0 0.0
      %2880 = vmatmul.mubr.f32.gmra.mrb[0].mxu0 %v2725
      %v2881 = vpop.f32.mrb[0].mxu0
      %v2882 = vadd.f32 %v2707, %v2881
      %v2883 = vpop.f32.mrb[0].mxu0
      %2884 = vmatprep.mubr.f32.mxu0 0.0
      %2885 = vmatmul.mubr.f32.gmra.mrb[0].mxu0 %v2728
      %v2886 = vpop.f32.mrb[0].mxu0
      %v2887 = vadd.f32 %v2707, %v2886
      %v2888 = vpop.f32.mrb[0].mxu0
      %2889 = vmatprep.mubr.f32.mxu0 0.0
      %2890 = vmatmul.mubr.f32.gmra.mrb[0].mxu0 %v2731
      %v2891 = vpop.f32.mrb[0].mxu0
      %v2892 = vadd.f32 %v2707, %v2891
      %v2893 = vpop.f32.mrb[0].mxu0
      %2894 = vmatprep.mubr.f32.mxu0 0.0
      %2895 = vmatmul.mubr.f32.gmra.mrb[0].mxu0 %v2734
      %v2896 = vpop.f32.mrb[0].mxu0
      %v2897 = vadd.f32 %v2707, %v2896
      %v2898 = vpop.f32.mrb[0].mxu0
      %2899 = vmatprep.mubr.f32.mxu0 0.0
      %2900 = vmatmul.mubr.f32.gmra.mrb[0].mxu0 %v2737
      %v2901 = vpop.f32.mrb[0].mxu0
      %v2902 = vadd.f32 %v2707, %v2901
      %v2903 = vpop.f32.mrb[0].mxu0
      %2904 = vmatprep.mubr.f32.mxu0 0.0
      %2905 = vmatmul.mubr.f32.gmra.mrb[0].mxu0 %v2740
      %v2906 = vpop.f32.mrb[0].mxu0
      %v2907 = vadd.f32 %v2707, %v2906
      %v2908 = vpop.f32.mrb[0].mxu0
      %2909 = vmatprep.mubr.f32.mxu0 0.0
      %2910 = vmatmul.mubr.f32.gmra.mrb[0].mxu0 %v2743
      %v2911 = vpop.f32.mrb[0].mxu0
      %v2912 = vadd.f32 %v2707, %v2911
      %v2913 = vpop.f32.mrb[0].mxu0
      %2914 = vmatprep.mubr.f32.mxu0 0.0
      %2915 = vmatmul.mubr.f32.gmra.mrb[0].mxu0 %v2746
      %v2916 = vpop.f32.mrb[0].mxu0
      %v2917 = vadd.f32 %v2707, %v2916
      %v2918 = vpop.f32.mrb[0].mxu0
      %2919 = vmatprep.mubr.f32.mxu0 0.0
      %2920 = vmatmul.mubr.f32.gmra.mrb[0].mxu0 %v2749
      %v2921 = vpop.f32.mrb[0].mxu0
      %v2922 = vadd.f32 %v2707, %v2921
      %v2923 = vpop.f32.mrb[0].mxu0
      %2924 = vmatprep.mubr.f32.mxu0 0.0
      %2925 = vmatmul.mubr.f32.gmra.mrb[0].mxu0 %v2752
      %v2926 = vpop.f32.mrb[0].mxu0
      %v2927 = vadd.f32 %v2707, %v2926
      %v2928 = vpop.f32.mrb[0].mxu0
      %2929 = vmatprep.mubr.f32.mxu0 0.0
      %2930 = vmatmul.mubr.f32.gmra.mrb[0].mxu0 %v2755
      %v2931 = vpop.f32.mrb[0].mxu0
      %v2932 = vadd.f32 %v2707, %v2931
      %v2933 = vpop.f32.mrb[0].mxu0
      %2934 = vmatprep.mubr.f32.mxu0 0.0
      %2935 = vmatmul.mubr.f32.gmra.mrb[0].mxu0 %v2758
      %v2936 = vpop.f32.mrb[0].mxu0
      %v2937 = vadd.f32 %v2707, %v2936
      %v2938 = vpop.f32.mrb[0].mxu0
      %2939 = vmatprep.mubr.f32.mxu0 0.0
      %2940 = vmatmul.mubr.f32.gmra.mrb[0].mxu0 %v2761
      %v2941 = vpop.f32.mrb[0].mxu0
      %v2942 = vadd.f32 %v2707, %v2941
      %v2943 = vpop.f32.mrb[0].mxu0
      %2944 = vmatprep.mubr.f32.mxu0 0.0
      %2945 = vmatmul.mubr.f32.gmra.mrb[0].mxu0 %v2764
      %v2946 = vpop.f32.mrb[0].mxu0
      %v2947 = vadd.f32 %v2707, %v2946
      %v2948 = vpop.f32.mrb[0].mxu0
      %2949 = vmatprep.mubr.f32.mxu0 0.0
      %2950 = vmatmul.mubr.f32.gmra.mrb[0].mxu0 %v2767
      %v2951 = vpop.f32.mrb[0].mxu0
      %v2952 = vadd.f32 %v2707, %v2951
      %v2953 = vpop.f32.mrb[0].mxu0
      %2954 = vmatprep.mubr.f32.mxu0 0.0
      %2955 = vmatmul.mubr.f32.gmra.mrb[0].mxu0 %v2770
      %v2956 = vpop.f32.mrb[0].mxu0
      %v2957 = vadd.f32 %v2707, %v2956
      %v2958 = vpop.f32.mrb[0].mxu0
      %2959 = vmatprep.mubr.f32.mxu0 0.0
      %2960 = vmatmul.mubr.f32.gmra.mrb[0].mxu0 %v2773
      %v2961 = vpop.f32.mrb[0].mxu0
      %v2962 = vadd.f32 %v2707, %v2961
      %v2963 = vpop.f32.mrb[0].mxu0
      %2964 = vmatprep.mubr.f32.mxu0 0.0
      %2965 = vmatmul.mubr.f32.gmra.mrb[0].mxu0 %v2776
      %v2966 = vpop.f32.mrb[0].mxu0
      %v2967 = vadd.f32 %v2707, %v2966
      %v2968 = vpop.f32.mrb[0].mxu0
      %2969 = vmatprep.mubr.f32.mxu0 0.0
      %2970 = vmatmul.mubr.f32.gmra.mrb[0].mxu0 %v2779
      %v2971 = vpop.f32.mrb[0].mxu0
      %v2972 = vadd.f32 %v2707, %v2971
      %v2973 = vpop.f32.mrb[0].mxu0
      %2974 = vmatprep.mubr.f32.mxu0 0.0
      %2975 = vmatmul.mubr.f32.gmra.mrb[0].mxu0 %v2782
      %v2976 = vpop.f32.mrb[0].mxu0
      %v2977 = vadd.f32 %v2707, %v2976
      %v2978 = vpop.f32.mrb[0].mxu0
      %2979 = vmatprep.mubr.f32.mxu0 0.0
      %2980 = vmatmul.mubr.f32.gmra.mrb[0].mxu0 %v2785
      %v2981 = vpop.f32.mrb[0].mxu0
      %v2982 = vadd.f32 %v2707, %v2981
      %v2983 = vpop.f32.mrb[0].mxu0
      %2984 = vmatprep.mubr.f32.mxu0 0.0
      %2985 = vmatmul.mubr.f32.gmra.mrb[0].mxu0 %v2788
      %v2986 = vpop.f32.mrb[0].mxu0
      %v2987 = vadd.f32 %v2707, %v2986
      %v2988 = vpop.f32.mrb[0].mxu0
      %2989 = vdwg.mxu0
      %v2990 = vld [vmem:[%s13] sm:$0xff]
      %v2991 = vld [vmem:[%s13 + $0x8] sm:$0xff]
      %v2992 = vld [vmem:[%s13 + $0x10] sm:$0xff]
      %v2993 = vld [vmem:[%s13 + $0x18] sm:$0xff]
      %v2994 = vld [vmem:[%s14] sm:$0x1]
      %v2996 = vlaneseq
      %v2997 = vshrl.u32 %v2996, 7
      %v2998 = vsub.s32 0, %v2997
      %v2999 = vrot.slane %v2994, %v2998
      %3001 = vmatprep.subr.mxu0 0.0
      %3002 = vmatpush1.msra.mxu0 %v2990
      %3003 = vmatprep.subr.mxu0 0.0
      %3004 = vmatpush1.msra.mxu0 %v2991
      %3005 = vmatprep.subr.mxu0 0.0
      %3006 = vmatpush1.msra.mxu0 %v2992
      %3007 = vmatprep.subr.mxu0 0.0
      %3008 = vmatpush1.msra.mxu0 %v2993
      %3009 = vmatprep.subr.mxu0 0.0
      %3010 = vmatpush1.msra.mxu0 0.0
      %3011 = vmatprep.subr.mxu0 0.0
      %3012 = vmatpush1.msra.mxu0 0.0
      %3013 = vmatprep.subr.mxu0 0.0
      %3014 = vmatpush1.msra.mxu0 0.0
      %3015 = vmatprep.subr.mxu0 0.0
      %3016 = vmatpush1.msra.mxu0 0.0
      %3017 = vmatprep.subr.mxu0 0.0
      %3018 = vmatpush1.msra.mxu0 0.0
      %3019 = vmatprep.subr.mxu0 0.0
      %3020 = vmatpush1.msra.mxu0 0.0
      %3021 = vmatprep.subr.mxu0 0.0
      %3022 = vmatpush1.msra.mxu0 0.0
      %3023 = vmatprep.subr.mxu0 0.0
      %3024 = vmatpush1.msra.mxu0 0.0
      %3025 = vmatprep.subr.mxu0 0.0
      %3026 = vmatpush1.msra.mxu0 0.0
      %3027 = vmatprep.subr.mxu0 0.0
      %3028 = vmatpush1.msra.mxu0 0.0
      %3029 = vmatprep.subr.mxu0 0.0
      %3030 = vmatpush1.msra.mxu0 0.0
      %3031 = vmatprep.subr.mxu0 0.0
      %3032 = vmatpush1.msra.mxu0 0.0
      %3033 = vmatprep.subr.mxu0 0.0
      %3034 = vmatpush1.msra.mxu0 0.0
      %3035 = vmatprep.subr.mxu0 0.0
      %3036 = vmatpush1.msra.mxu0 0.0
      %3037 = vmatprep.subr.mxu0 0.0
      %3038 = vmatpush1.msra.mxu0 0.0
      %3039 = vmatprep.subr.mxu0 0.0
      %3040 = vmatpush1.msra.mxu0 0.0
      %3041 = vmatprep.subr.mxu0 0.0
      %3042 = vmatpush1.msra.mxu0 0.0
      %3043 = vmatprep.subr.mxu0 0.0
      %3044 = vmatpush1.msra.mxu0 0.0
      %3045 = vmatprep.subr.mxu0 0.0
      %3046 = vmatpush1.msra.mxu0 0.0
      %3047 = vmatprep.subr.mxu0 0.0
      %3048 = vmatpush1.msra.mxu0 0.0
      %3049 = vmatprep.subr.mxu0 0.0
      %3050 = vmatpush1.msra.mxu0 0.0
      %3051 = vmatprep.subr.mxu0 0.0
      %3052 = vmatpush1.msra.mxu0 0.0
      %3053 = vmatprep.subr.mxu0 0.0
      %3054 = vmatpush1.msra.mxu0 0.0
      %3055 = vmatprep.subr.mxu0 0.0
      %3056 = vmatpush1.msra.mxu0 0.0
      %3057 = vmatprep.subr.mxu0 0.0
      %3058 = vmatpush1.msra.mxu0 0.0
      %3059 = vmatprep.subr.mxu0 0.0
      %3060 = vmatpush1.msra.mxu0 0.0
      %3061 = vmatprep.subr.mxu0 0.0
      %3062 = vmatpush1.msra.mxu0 0.0
      %3063 = vmatprep.subr.mxu0 0.0
      %3064 = vmatpush1.msra.mxu0 0.0
      %3065 = vmatprep.mubr.f32.mxu0 0.0
      %3066 = vmatmul.mubr.f32.gmra.mrb[0].mxu0 %v2710
      %v3067 = vpop.f32.mrb[0].mxu0
      %v3068 = vadd.f32 %v2999, %v3067
      %v3069 = vpop.f32.mrb[0].mxu0
      %3070 = vmatprep.mubr.f32.mxu0 0.0
      %3071 = vmatmul.mubr.f32.gmra.mrb[0].mxu0 %v2713
      %v3072 = vpop.f32.mrb[0].mxu0
      %v3073 = vadd.f32 %v2999, %v3072
      %v3074 = vpop.f32.mrb[0].mxu0
      %3075 = vmatprep.mubr.f32.mxu0 0.0
      %3076 = vmatmul.mubr.f32.gmra.mrb[0].mxu0 %v2716
      %v3077 = vpop.f32.mrb[0].mxu0
      %v3078 = vadd.f32 %v2999, %v3077
      %v3079 = vpop.f32.mrb[0].mxu0
      %3080 = vmatprep.mubr.f32.mxu0 0.0
      %3081 = vmatmul.mubr.f32.gmra.mrb[0].mxu0 %v2719
      %v3082 = vpop.f32.mrb[0].mxu0
      %v3083 = vadd.f32 %v2999, %v3082
      %v3084 = vpop.f32.mrb[0].mxu0
      %3085 = vmatprep.mubr.f32.mxu0 0.0
      %3086 = vmatmul.mubr.f32.gmra.mrb[0].mxu0 %v2722
      %v3087 = vpop.f32.mrb[0].mxu0
      %v3088 = vadd.f32 %v2999, %v3087
      %v3089 = vpop.f32.mrb[0].mxu0
      %3090 = vmatprep.mubr.f32.mxu0 0.0
      %3091 = vmatmul.mubr.f32.gmra.mrb[0].mxu0 %v2725
      %v3092 = vpop.f32.mrb[0].mxu0
      %v3093 = vadd.f32 %v2999, %v3092
      %v3094 = vpop.f32.mrb[0].mxu0
      %3095 = vmatprep.mubr.f32.mxu0 0.0
      %3096 = vmatmul.mubr.f32.gmra.mrb[0].mxu0 %v2728
      %v3097 = vpop.f32.mrb[0].mxu0
      %v3098 = vadd.f32 %v2999, %v3097
      %v3099 = vpop.f32.mrb[0].mxu0
      %3100 = vmatprep.mubr.f32.mxu0 0.0
      %3101 = vmatmul.mubr.f32.gmra.mrb[0].mxu0 %v2731
      %v3102 = vpop.f32.mrb[0].mxu0
      %v3103 = vadd.f32 %v2999, %v3102
      %v3104 = vpop.f32.mrb[0].mxu0
      %3105 = vmatprep.mubr.f32.mxu0 0.0
      %3106 = vmatmul.mubr.f32.gmra.mrb[0].mxu0 %v2734
      %v3107 = vpop.f32.mrb[0].mxu0
      %v3108 = vadd.f32 %v2999, %v3107
      %v3109 = vpop.f32.mrb[0].mxu0
      %3110 = vmatprep.mubr.f32.mxu0 0.0
      %3111 = vmatmul.mubr.f32.gmra.mrb[0].mxu0 %v2737
      %v3112 = vpop.f32.mrb[0].mxu0
      %v3113 = vadd.f32 %v2999, %v3112
      %v3114 = vpop.f32.mrb[0].mxu0
      %3115 = vmatprep.mubr.f32.mxu0 0.0
      %3116 = vmatmul.mubr.f32.gmra.mrb[0].mxu0 %v2740
      %v3117 = vpop.f32.mrb[0].mxu0
      %v3118 = vadd.f32 %v2999, %v3117
      %v3119 = vpop.f32.mrb[0].mxu0
      %3120 = vmatprep.mubr.f32.mxu0 0.0
      %3121 = vmatmul.mubr.f32.gmra.mrb[0].mxu0 %v2743
      %v3122 = vpop.f32.mrb[0].mxu0
      %v3123 = vadd.f32 %v2999, %v3122
      %v3124 = vpop.f32.mrb[0].mxu0
      %3125 = vmatprep.mubr.f32.mxu0 0.0
      %3126 = vmatmul.mubr.f32.gmra.mrb[0].mxu0 %v2746
      %v3127 = vpop.f32.mrb[0].mxu0
      %v3128 = vadd.f32 %v2999, %v3127
      %v3129 = vpop.f32.mrb[0].mxu0
      %3130 = vmatprep.mubr.f32.mxu0 0.0
      %3131 = vmatmul.mubr.f32.gmra.mrb[0].mxu0 %v2749
      %v3132 = vpop.f32.mrb[0].mxu0
      %v3133 = vadd.f32 %v2999, %v3132
      %v3134 = vpop.f32.mrb[0].mxu0
      %3135 = vmatprep.mubr.f32.mxu0 0.0
      %3136 = vmatmul.mubr.f32.gmra.mrb[0].mxu0 %v2752
      %v3137 = vpop.f32.mrb[0].mxu0
      %v3138 = vadd.f32 %v2999, %v3137
      %v3139 = vpop.f32.mrb[0].mxu0
      %3140 = vmatprep.mubr.f32.mxu0 0.0
      %3141 = vmatmul.mubr.f32.gmra.mrb[0].mxu0 %v2755
      %v3142 = vpop.f32.mrb[0].mxu0
      %v3143 = vadd.f32 %v2999, %v3142
      %v3144 = vpop.f32.mrb[0].mxu0
      %3145 = vmatprep.mubr.f32.mxu0 0.0
      %3146 = vmatmul.mubr.f32.gmra.mrb[0].mxu0 %v2758
      %v3147 = vpop.f32.mrb[0].mxu0
      %v3148 = vadd.f32 %v2999, %v3147
      %v3149 = vpop.f32.mrb[0].mxu0
      %3150 = vmatprep.mubr.f32.mxu0 0.0
      %3151 = vmatmul.mubr.f32.gmra.mrb[0].mxu0 %v2761
      %v3152 = vpop.f32.mrb[0].mxu0
      %v3153 = vadd.f32 %v2999, %v3152
      %v3154 = vpop.f32.mrb[0].mxu0
      %3155 = vmatprep.mubr.f32.mxu0 0.0
      %3156 = vmatmul.mubr.f32.gmra.mrb[0].mxu0 %v2764
      %v3157 = vpop.f32.mrb[0].mxu0
      %v3158 = vadd.f32 %v2999, %v3157
      %v3159 = vpop.f32.mrb[0].mxu0
      %3160 = vmatprep.mubr.f32.mxu0 0.0
      %3161 = vmatmul.mubr.f32.gmra.mrb[0].mxu0 %v2767
      %v3162 = vpop.f32.mrb[0].mxu0
      %v3163 = vadd.f32 %v2999, %v3162
      %v3164 = vpop.f32.mrb[0].mxu0
      %3165 = vmatprep.mubr.f32.mxu0 0.0
      %3166 = vmatmul.mubr.f32.gmra.mrb[0].mxu0 %v2770
      %v3167 = vpop.f32.mrb[0].mxu0
      %v3168 = vadd.f32 %v2999, %v3167
      %v3169 = vpop.f32.mrb[0].mxu0
      %3170 = vmatprep.mubr.f32.mxu0 0.0
      %3171 = vmatmul.mubr.f32.gmra.mrb[0].mxu0 %v2773
      %v3172 = vpop.f32.mrb[0].mxu0
      %v3173 = vadd.f32 %v2999, %v3172
      %v3174 = vpop.f32.mrb[0].mxu0
      %3175 = vmatprep.mubr.f32.mxu0 0.0
      %3176 = vmatmul.mubr.f32.gmra.mrb[0].mxu0 %v2776
      %v3177 = vpop.f32.mrb[0].mxu0
      %v3178 = vadd.f32 %v2999, %v3177
      %v3179 = vpop.f32.mrb[0].mxu0
      %3180 = vmatprep.mubr.f32.mxu0 0.0
      %3181 = vmatmul.mubr.f32.gmra.mrb[0].mxu0 %v2779
      %v3182 = vpop.f32.mrb[0].mxu0
      %v3183 = vadd.f32 %v2999, %v3182
      %v3184 = vpop.f32.mrb[0].mxu0
      %3185 = vmatprep.mubr.f32.mxu0 0.0
      %3186 = vmatmul.mubr.f32.gmra.mrb[0].mxu0 %v2782
      %v3187 = vpop.f32.mrb[0].mxu0
      %v3188 = vadd.f32 %v2999, %v3187
      %v3189 = vpop.f32.mrb[0].mxu0
      %3190 = vmatprep.mubr.f32.mxu0 0.0
      %3191 = vmatmul.mubr.f32.gmra.mrb[0].mxu0 %v2785
      %v3192 = vpop.f32.mrb[0].mxu0
      %v3193 = vadd.f32 %v2999, %v3192
      %v3194 = vpop.f32.mrb[0].mxu0
      %3195 = vmatprep.mubr.f32.mxu0 0.0
      %3196 = vmatmul.mubr.f32.gmra.mrb[0].mxu0 %v2788
      %v3197 = vpop.f32.mrb[0].mxu0
      %v3198 = vadd.f32 %v2999, %v3197
      %v3199 = vpop.f32.mrb[0].mxu0
      %3200 = vdwg.mxu0
      %v3201 = vld [vmem:[%s15] sm:$0xff]
      %v3202 = vld [vmem:[%s15 + $0x8] sm:$0xff]
      %v3203 = vld [vmem:[%s15 + $0x10] sm:$0xff]
      %v3204 = vld [vmem:[%s15 + $0x18] sm:$0xff]
      %v3205 = vld [vmem:[%s16] sm:$0x1]
      %v3207 = vlaneseq
      %v3208 = vshrl.u32 %v3207, 7
      %v3209 = vsub.s32 0, %v3208
      %v3210 = vrot.slane %v3205, %v3209
      %3212 = vmatprep.subr.mxu0 0.0
      %3213 = vmatpush1.msra.mxu0 %v3201
      %3214 = vmatprep.subr.mxu0 0.0
      %3215 = vmatpush1.msra.mxu0 %v3202
      %3216 = vmatprep.subr.mxu0 0.0
      %3217 = vmatpush1.msra.mxu0 %v3203
      %3218 = vmatprep.subr.mxu0 0.0
      %3219 = vmatpush1.msra.mxu0 %v3204
      %3220 = vmatprep.subr.mxu0 0.0
      %3221 = vmatpush1.msra.mxu0 0.0
      %3222 = vmatprep.subr.mxu0 0.0
      %3223 = vmatpush1.msra.mxu0 0.0
      %3224 = vmatprep.subr.mxu0 0.0
      %3225 = vmatpush1.msra.mxu0 0.0
      %3226 = vmatprep.subr.mxu0 0.0
      %3227 = vmatpush1.msra.mxu0 0.0
      %3228 = vmatprep.subr.mxu0 0.0
      %3229 = vmatpush1.msra.mxu0 0.0
      %3230 = vmatprep.subr.mxu0 0.0
      %3231 = vmatpush1.msra.mxu0 0.0
      %3232 = vmatprep.subr.mxu0 0.0
      %3233 = vmatpush1.msra.mxu0 0.0
      %3234 = vmatprep.subr.mxu0 0.0
      %3235 = vmatpush1.msra.mxu0 0.0
      %3236 = vmatprep.subr.mxu0 0.0
      %3237 = vmatpush1.msra.mxu0 0.0
      %3238 = vmatprep.subr.mxu0 0.0
      %3239 = vmatpush1.msra.mxu0 0.0
      %3240 = vmatprep.subr.mxu0 0.0
      %3241 = vmatpush1.msra.mxu0 0.0
      %3242 = vmatprep.subr.mxu0 0.0
      %3243 = vmatpush1.msra.mxu0 0.0
      %3244 = vmatprep.subr.mxu0 0.0
      %3245 = vmatpush1.msra.mxu0 0.0
      %3246 = vmatprep.subr.mxu0 0.0
      %3247 = vmatpush1.msra.mxu0 0.0
      %3248 = vmatprep.subr.mxu0 0.0
      %3249 = vmatpush1.msra.mxu0 0.0
      %3250 = vmatprep.subr.mxu0 0.0
      %3251 = vmatpush1.msra.mxu0 0.0
      %3252 = vmatprep.subr.mxu0 0.0
      %3253 = vmatpush1.msra.mxu0 0.0
      %3254 = vmatprep.subr.mxu0 0.0
      %3255 = vmatpush1.msra.mxu0 0.0
      %3256 = vmatprep.subr.mxu0 0.0
      %3257 = vmatpush1.msra.mxu0 0.0
      %3258 = vmatprep.subr.mxu0 0.0
      %3259 = vmatpush1.msra.mxu0 0.0
      %3260 = vmatprep.subr.mxu0 0.0
      %3261 = vmatpush1.msra.mxu0 0.0
      %3262 = vmatprep.subr.mxu0 0.0
      %3263 = vmatpush1.msra.mxu0 0.0
      %3264 = vmatprep.subr.mxu0 0.0
      %3265 = vmatpush1.msra.mxu0 0.0
      %3266 = vmatprep.subr.mxu0 0.0
      %3267 = vmatpush1.msra.mxu0 0.0
      %3268 = vmatprep.subr.mxu0 0.0
      %3269 = vmatpush1.msra.mxu0 0.0
      %3270 = vmatprep.subr.mxu0 0.0
      %3271 = vmatpush1.msra.mxu0 0.0
      %3272 = vmatprep.subr.mxu0 0.0
      %3273 = vmatpush1.msra.mxu0 0.0
      %3274 = vmatprep.subr.mxu0 0.0
      %3275 = vmatpush1.msra.mxu0 0.0
      %3276 = vmatprep.mubr.f32.mxu0 0.0
      %3277 = vmatmul.mubr.f32.gmra.mrb[0].mxu0 %v2710
      %v3278 = vpop.f32.mrb[0].mxu0
      %v3279 = vadd.f32 %v3210, %v3278
      %v3280 = vpop.f32.mrb[0].mxu0
      %3281 = vmatprep.mubr.f32.mxu0 0.0
      %3282 = vmatmul.mubr.f32.gmra.mrb[0].mxu0 %v2713
      %v3283 = vpop.f32.mrb[0].mxu0
      %v3284 = vadd.f32 %v3210, %v3283
      %v3285 = vpop.f32.mrb[0].mxu0
      %3286 = vmatprep.mubr.f32.mxu0 0.0
      %3287 = vmatmul.mubr.f32.gmra.mrb[0].mxu0 %v2716
      %v3288 = vpop.f32.mrb[0].mxu0
      %v3289 = vadd.f32 %v3210, %v3288
      %v3290 = vpop.f32.mrb[0].mxu0
      %3291 = vmatprep.mubr.f32.mxu0 0.0
      %3292 = vmatmul.mubr.f32.gmra.mrb[0].mxu0 %v2719
      %v3293 = vpop.f32.mrb[0].mxu0
      %v3294 = vadd.f32 %v3210, %v3293
      %v3295 = vpop.f32.mrb[0].mxu0
      %3296 = vmatprep.mubr.f32.mxu0 0.0
      %3297 = vmatmul.mubr.f32.gmra.mrb[0].mxu0 %v2722
      %v3298 = vpop.f32.mrb[0].mxu0
      %v3299 = vadd.f32 %v3210, %v3298
      %v3300 = vpop.f32.mrb[0].mxu0
      %3301 = vmatprep.mubr.f32.mxu0 0.0
      %3302 = vmatmul.mubr.f32.gmra.mrb[0].mxu0 %v2725
      %v3303 = vpop.f32.mrb[0].mxu0
      %v3304 = vadd.f32 %v3210, %v3303
      %v3305 = vpop.f32.mrb[0].mxu0
      %3306 = vmatprep.mubr.f32.mxu0 0.0
      %3307 = vmatmul.mubr.f32.gmra.mrb[0].mxu0 %v2728
      %v3308 = vpop.f32.mrb[0].mxu0
      %v3309 = vadd.f32 %v3210, %v3308
      %v3310 = vpop.f32.mrb[0].mxu0
      %3311 = vmatprep.mubr.f32.mxu0 0.0
      %3312 = vmatmul.mubr.f32.gmra.mrb[0].mxu0 %v2731
      %v3313 = vpop.f32.mrb[0].mxu0
      %v3314 = vadd.f32 %v3210, %v3313
      %v3315 = vpop.f32.mrb[0].mxu0
      %3316 = vmatprep.mubr.f32.mxu0 0.0
      %3317 = vmatmul.mubr.f32.gmra.mrb[0].mxu0 %v2734
      %v3318 = vpop.f32.mrb[0].mxu0
      %v3319 = vadd.f32 %v3210, %v3318
      %v3320 = vpop.f32.mrb[0].mxu0
      %3321 = vmatprep.mubr.f32.mxu0 0.0
      %3322 = vmatmul.mubr.f32.gmra.mrb[0].mxu0 %v2737
      %v3323 = vpop.f32.mrb[0].mxu0
      %v3324 = vadd.f32 %v3210, %v3323
      %v3325 = vpop.f32.mrb[0].mxu0
      %3326 = vmatprep.mubr.f32.mxu0 0.0
      %3327 = vmatmul.mubr.f32.gmra.mrb[0].mxu0 %v2740
      %v3328 = vpop.f32.mrb[0].mxu0
      %v3329 = vadd.f32 %v3210, %v3328
      %v3330 = vpop.f32.mrb[0].mxu0
      %3331 = vmatprep.mubr.f32.mxu0 0.0
      %3332 = vmatmul.mubr.f32.gmra.mrb[0].mxu0 %v2743
      %v3333 = vpop.f32.mrb[0].mxu0
      %v3334 = vadd.f32 %v3210, %v3333
      %v3335 = vpop.f32.mrb[0].mxu0
      %3336 = vmatprep.mubr.f32.mxu0 0.0
      %3337 = vmatmul.mubr.f32.gmra.mrb[0].mxu0 %v2746
      %v3338 = vpop.f32.mrb[0].mxu0
      %v3339 = vadd.f32 %v3210, %v3338
      %v3340 = vpop.f32.mrb[0].mxu0
      %3341 = vmatprep.mubr.f32.mxu0 0.0
      %3342 = vmatmul.mubr.f32.gmra.mrb[0].mxu0 %v2749
      %v3343 = vpop.f32.mrb[0].mxu0
      %v3344 = vadd.f32 %v3210, %v3343
      %v3345 = vpop.f32.mrb[0].mxu0
      %3346 = vmatprep.mubr.f32.mxu0 0.0
      %3347 = vmatmul.mubr.f32.gmra.mrb[0].mxu0 %v2752
      %v3348 = vpop.f32.mrb[0].mxu0
      %v3349 = vadd.f32 %v3210, %v3348
      %v3350 = vpop.f32.mrb[0].mxu0
      %3351 = vmatprep.mubr.f32.mxu0 0.0
      %3352 = vmatmul.mubr.f32.gmra.mrb[0].mxu0 %v2755
      %v3353 = vpop.f32.mrb[0].mxu0
      %v3354 = vadd.f32 %v3210, %v3353
      %v3355 = vpop.f32.mrb[0].mxu0
      %3356 = vmatprep.mubr.f32.mxu0 0.0
      %3357 = vmatmul.mubr.f32.gmra.mrb[0].mxu0 %v2758
      %v3358 = vpop.f32.mrb[0].mxu0
      %v3359 = vadd.f32 %v3210, %v3358
      %v3360 = vpop.f32.mrb[0].mxu0
      %3361 = vmatprep.mubr.f32.mxu0 0.0
      %3362 = vmatmul.mubr.f32.gmra.mrb[0].mxu0 %v2761
      %v3363 = vpop.f32.mrb[0].mxu0
      %v3364 = vadd.f32 %v3210, %v3363
      %v3365 = vpop.f32.mrb[0].mxu0
      %3366 = vmatprep.mubr.f32.mxu0 0.0
      %3367 = vmatmul.mubr.f32.gmra.mrb[0].mxu0 %v2764
      %v3368 = vpop.f32.mrb[0].mxu0
      %v3369 = vadd.f32 %v3210, %v3368
      %v3370 = vpop.f32.mrb[0].mxu0
      %3371 = vmatprep.mubr.f32.mxu0 0.0
      %3372 = vmatmul.mubr.f32.gmra.mrb[0].mxu0 %v2767
      %v3373 = vpop.f32.mrb[0].mxu0
      %v3374 = vadd.f32 %v3210, %v3373
      %v3375 = vpop.f32.mrb[0].mxu0
      %3376 = vmatprep.mubr.f32.mxu0 0.0
      %3377 = vmatmul.mubr.f32.gmra.mrb[0].mxu0 %v2770
      %v3378 = vpop.f32.mrb[0].mxu0
      %v3379 = vadd.f32 %v3210, %v3378
      %v3380 = vpop.f32.mrb[0].mxu0
      %3381 = vmatprep.mubr.f32.mxu0 0.0
      %3382 = vmatmul.mubr.f32.gmra.mrb[0].mxu0 %v2773
      %v3383 = vpop.f32.mrb[0].mxu0
      %v3384 = vadd.f32 %v3210, %v3383
      %v3385 = vpop.f32.mrb[0].mxu0
      %3386 = vmatprep.mubr.f32.mxu0 0.0
      %3387 = vmatmul.mubr.f32.gmra.mrb[0].mxu0 %v2776
      %v3388 = vpop.f32.mrb[0].mxu0
      %v3389 = vadd.f32 %v3210, %v3388
      %v3390 = vpop.f32.mrb[0].mxu0
      %3391 = vmatprep.mubr.f32.mxu0 0.0
      %3392 = vmatmul.mubr.f32.gmra.mrb[0].mxu0 %v2779
      %v3393 = vpop.f32.mrb[0].mxu0
      %v3394 = vadd.f32 %v3210, %v3393
      %v3395 = vpop.f32.mrb[0].mxu0
      %3396 = vmatprep.mubr.f32.mxu0 0.0
      %3397 = vmatmul.mubr.f32.gmra.mrb[0].mxu0 %v2782
      %v3398 = vpop.f32.mrb[0].mxu0
      %v3399 = vadd.f32 %v3210, %v3398
      %v3400 = vpop.f32.mrb[0].mxu0
      %3401 = vmatprep.mubr.f32.mxu0 0.0
      %3402 = vmatmul.mubr.f32.gmra.mrb[0].mxu0 %v2785
      %v3403 = vpop.f32.mrb[0].mxu0
      %v3404 = vadd.f32 %v3210, %v3403
      %v3405 = vpop.f32.mrb[0].mxu0
      %3406 = vmatprep.mubr.f32.mxu0 0.0
      %3407 = vmatmul.mubr.f32.gmra.mrb[0].mxu0 %v2788
      %v3408 = vpop.f32.mrb[0].mxu0
      %v3409 = vadd.f32 %v3210, %v3408
      %v3410 = vpop.f32.mrb[0].mxu0
      %3411 = vdwg.mxu0
      %3412 = vst.msk [vmem:[#allocation3] sm:$0xff] %vm850, %v3279
      %3413 = vst.msk [vmem:[#allocation3 + $0x8] sm:$0xff] %vm850, %v3284
      %3414 = vst.msk [vmem:[#allocation3 + $0x10] sm:$0xff] %vm850, %v3289
      %3415 = vst.msk [vmem:[#allocation3 + $0x18] sm:$0xff] %vm850, %v3294
      %3416 = vst.msk [vmem:[#allocation3 + $0x20] sm:$0xff] %vm850, %v3299
      %3417 = vst.msk [vmem:[#allocation3 + $0x28] sm:$0xff] %vm850, %v3304
      %3418 = vst.msk [vmem:[#allocation3 + $0x30] sm:$0xff] %vm850, %v3309
      %3419 = vst.msk [vmem:[#allocation3 + $0x38] sm:$0xff] %vm850, %v3314
      %3420 = vst.msk [vmem:[#allocation3 + $0x40] sm:$0xff] %vm850, %v3319
      %3421 = vst.msk [vmem:[#allocation3 + $0x48] sm:$0xff] %vm850, %v3324
      %3422 = vst.msk [vmem:[#allocation3 + $0x50] sm:$0xff] %vm850, %v3329
      %3423 = vst.msk [vmem:[#allocation3 + $0x58] sm:$0xff] %vm850, %v3334
      %3424 = vst.msk [vmem:[#allocation3 + $0x60] sm:$0xff] %vm850, %v3339
      %3425 = vst.msk [vmem:[#allocation3 + $0x68] sm:$0xff] %vm850, %v3344
      %3426 = vst.msk [vmem:[#allocation3 + $0x70] sm:$0xff] %vm850, %v3349
      %3427 = vst.msk [vmem:[#allocation3 + $0x78] sm:$0xff] %vm850, %v3354
      %3428 = vst.msk [vmem:[#allocation3 + $0x80] sm:$0xff] %vm850, %v3359
      %3429 = vst.msk [vmem:[#allocation3 + $0x88] sm:$0xff] %vm850, %v3364
      %3430 = vst.msk [vmem:[#allocation3 + $0x90] sm:$0xff] %vm850, %v3369
      %3431 = vst.msk [vmem:[#allocation3 + $0x98] sm:$0xff] %vm850, %v3374
      %3432 = vst.msk [vmem:[#allocation3 + $0xa0] sm:$0xff] %vm850, %v3379
      %3433 = vst.msk [vmem:[#allocation3 + $0xa8] sm:$0xff] %vm850, %v3384
      %3434 = vst.msk [vmem:[#allocation3 + $0xb0] sm:$0xff] %vm850, %v3389
      %3435 = vst.msk [vmem:[#allocation3 + $0xb8] sm:$0xff] %vm850, %v3394
      %3436 = vst.msk [vmem:[#allocation3 + $0xc0] sm:$0xff] %vm850, %v3399
      %3437 = vst.msk [vmem:[#allocation3 + $0xc8] sm:$0xff] %vm850, %v3404
      %3438 = vst.msk [vmem:[#allocation3 + $0xd0] sm:$0xff] %vm850, %v3409
      %v3440 = vsel %vm1834, %v3068, 0
      %v3443 = vsel %vm1834, %v3073, 0
      %v3446 = vsel %vm1834, %v3078, 0
      %v3449 = vsel %vm1834, %v3083, 0
      %v3452 = vsel %vm1834, %v3088, 0
      %v3455 = vsel %vm1834, %v3093, 0
      %v3458 = vsel %vm1834, %v3098, 0
      %v3461 = vsel %vm1834, %v3103, 0
      %v3464 = vsel %vm1834, %v3108, 0
      %v3467 = vsel %vm1834, %v3113, 0
      %v3470 = vsel %vm1834, %v3118, 0
      %v3473 = vsel %vm1834, %v3123, 0
      %v3476 = vsel %vm1834, %v3128, 0
      %v3479 = vsel %vm1834, %v3133, 0
      %v3482 = vsel %vm1834, %v3138, 0
      %v3485 = vsel %vm1834, %v3143, 0
      %v3488 = vsel %vm1834, %v3148, 0
      %v3491 = vsel %vm1834, %v3153, 0
      %v3494 = vsel %vm1834, %v3158, 0
      %v3497 = vsel %vm1834, %v3163, 0
      %v3500 = vsel %vm1834, %v3168, 0
      %v3503 = vsel %vm1834, %v3173, 0
      %v3506 = vsel %vm1834, %v3178, 0
      %v3509 = vsel %vm1834, %v3183, 0
      %v3512 = vsel %vm1834, %v3188, 0
      %v3515 = vsel %vm1834, %v3193, 0
      %v3518 = vsel %vm1834, %v3198, 0
      %v3521 = vsel %vm1834, %v2857, 0
      %v3524 = vsel %vm1834, %v2862, 0
      %v3527 = vsel %vm1834, %v2867, 0
      %v3530 = vsel %vm1834, %v2872, 0
      %v3533 = vsel %vm1834, %v2877, 0
      %v3536 = vsel %vm1834, %v2882, 0
      %v3539 = vsel %vm1834, %v2887, 0
      %v3542 = vsel %vm1834, %v2892, 0
      %v3545 = vsel %vm1834, %v2897, 0
      %v3548 = vsel %vm1834, %v2902, 0
      %v3551 = vsel %vm1834, %v2907, 0
      %v3554 = vsel %vm1834, %v2912, 0
      %v3557 = vsel %vm1834, %v2917, 0
      %v3560 = vsel %vm1834, %v2922, 0
      %v3563 = vsel %vm1834, %v2927, 0
      %v3566 = vsel %vm1834, %v2932, 0
      %v3569 = vsel %vm1834, %v2937, 0
      %v3572 = vsel %vm1834, %v2942, 0
      %v3575 = vsel %vm1834, %v2947, 0
      %v3578 = vsel %vm1834, %v2952, 0
      %v3581 = vsel %vm1834, %v2957, 0
      %v3584 = vsel %vm1834, %v2962, 0
      %v3587 = vsel %vm1834, %v2967, 0
      %v3590 = vsel %vm1834, %v2972, 0
      %v3593 = vsel %vm1834, %v2977, 0
      %v3596 = vsel %vm1834, %v2982, 0
      %v3599 = vsel %vm1834, %v2987, 0
      %3601 = vmatprep.subr.mxu0 0.0
      %3602 = vmatpush1.xpose.msra.mxu0 %v3521
      %3603 = vmatprep.subr.mxu0 0.0
      %3604 = vmatpush1.xpose.msra.mxu0 %v3524
      %3605 = vmatprep.subr.mxu0 0.0
      %3606 = vmatpush1.xpose.msra.mxu0 %v3527
      %3607 = vmatprep.subr.mxu0 0.0
      %3608 = vmatpush1.xpose.msra.mxu0 %v3530
      %3609 = vmatprep.subr.mxu0 0.0
      %3610 = vmatpush1.xpose.msra.mxu0 %v3533
      %3611 = vmatprep.subr.mxu0 0.0
      %3612 = vmatpush1.xpose.msra.mxu0 %v3536
      %3613 = vmatprep.subr.mxu0 0.0
      %3614 = vmatpush1.xpose.msra.mxu0 %v3539
      %3615 = vmatprep.subr.mxu0 0.0
      %3616 = vmatpush1.xpose.msra.mxu0 %v3542
      %3617 = vmatprep.subr.mxu0 0.0
      %3618 = vmatpush1.xpose.msra.mxu0 %v3545
      %3619 = vmatprep.subr.mxu0 0.0
      %3620 = vmatpush1.xpose.msra.mxu0 %v3548
      %3621 = vmatprep.subr.mxu0 0.0
      %3622 = vmatpush1.xpose.msra.mxu0 %v3551
      %3623 = vmatprep.subr.mxu0 0.0
      %3624 = vmatpush1.xpose.msra.mxu0 %v3554
      %3625 = vmatprep.subr.mxu0 0.0
      %3626 = vmatpush1.xpose.msra.mxu0 %v3557
      %3627 = vmatprep.subr.mxu0 0.0
      %3628 = vmatpush1.xpose.msra.mxu0 %v3560
      %3629 = vmatprep.subr.mxu0 0.0
      %3630 = vmatpush1.xpose.msra.mxu0 %v3563
      %3631 = vmatprep.subr.mxu0 0.0
      %3632 = vmatpush1.xpose.msra.mxu0 %v3566
      %3633 = vmatprep.subr.mxu0 0.0
      %3634 = vmatpush1.xpose.msra.mxu0 %v3569
      %3635 = vmatprep.subr.mxu0 0.0
      %3636 = vmatpush1.xpose.msra.mxu0 %v3572
      %3637 = vmatprep.subr.mxu0 0.0
      %3638 = vmatpush1.xpose.msra.mxu0 %v3575
      %3639 = vmatprep.subr.mxu0 0.0
      %3640 = vmatpush1.xpose.msra.mxu0 %v3578
      %3641 = vmatprep.subr.mxu0 0.0
      %3642 = vmatpush1.xpose.msra.mxu0 %v3581
      %3643 = vmatprep.subr.mxu0 0.0
      %3644 = vmatpush1.xpose.msra.mxu0 %v3584
      %3645 = vmatprep.subr.mxu0 0.0
      %3646 = vmatpush1.xpose.msra.mxu0 %v3587
      %3647 = vmatprep.subr.mxu0 0.0
      %3648 = vmatpush1.xpose.msra.mxu0 %v3590
      %3649 = vmatprep.subr.mxu0 0.0
      %3650 = vmatpush1.xpose.msra.mxu0 %v3593
      %3651 = vmatprep.subr.mxu0 0.0
      %3652 = vmatpush1.xpose.msra.mxu0 %v3596
      %3653 = vmatprep.subr.mxu0 0.0
      %3654 = vmatpush1.xpose.msra.mxu0 %v3599
      %3655 = vmatprep.subr.mxu0 0.0
      %3656 = vmatpush1.xpose.msra.mxu0 0.0
      %3657 = vmatprep.subr.mxu0 0.0
      %3658 = vmatpush1.xpose.msra.mxu0 0.0
      %3659 = vmatprep.subr.mxu0 0.0
      %3660 = vmatpush1.xpose.msra.mxu0 0.0
      %3661 = vmatprep.subr.mxu0 0.0
      %3662 = vmatpush1.xpose.msra.mxu0 0.0
      %3663 = vmatprep.subr.mxu0 0.0
      %3664 = vmatpush1.xpose.msra.mxu0 0.0
      %3665 = vmatprep.mubr.f32.mxu0 0.0
      %3666 = vmatmul.mubr.f32.gmra.mrb[0].mxu0 %v3440
      %v3667 = vpop.f32.mrb[0].mxu0
      %v3668 = vadd.f32 0.0, %v3667
      %v3669 = vpop.f32.mrb[0].mxu0
      %v3670 = vadd.f32 0.0, %v3669
      %3671 = vmatprep.mubr.f32.mxu0 0.0
      %3672 = vmatmul.mubr.f32.gmra.mrb[0].mxu0 %v3443
      %v3673 = vpop.f32.mrb[0].mxu0
      %v3674 = vadd.f32 0.0, %v3673
      %v3675 = vpop.f32.mrb[0].mxu0
      %v3676 = vadd.f32 0.0, %v3675
      %3677 = vmatprep.mubr.f32.mxu0 0.0
      %3678 = vmatmul.mubr.f32.gmra.mrb[0].mxu0 %v3446
      %v3679 = vpop.f32.mrb[0].mxu0
      %v3680 = vadd.f32 0.0, %v3679
      %v3681 = vpop.f32.mrb[0].mxu0
      %v3682 = vadd.f32 0.0, %v3681
      %3683 = vmatprep.mubr.f32.mxu0 0.0
      %3684 = vmatmul.mubr.f32.gmra.mrb[0].mxu0 %v3449
      %v3685 = vpop.f32.mrb[0].mxu0
      %v3686 = vadd.f32 0.0, %v3685
      %v3687 = vpop.f32.mrb[0].mxu0
      %v3688 = vadd.f32 0.0, %v3687
      %3689 = vmatprep.mubr.f32.mxu0 0.0
      %3690 = vmatmul.mubr.f32.gmra.mrb[0].mxu0 %v3452
      %v3691 = vpop.f32.mrb[0].mxu0
      %v3692 = vadd.f32 0.0, %v3691
      %v3693 = vpop.f32.mrb[0].mxu0
      %v3694 = vadd.f32 0.0, %v3693
      %3695 = vmatprep.mubr.f32.mxu0 0.0
      %3696 = vmatmul.mubr.f32.gmra.mrb[0].mxu0 %v3455
      %v3697 = vpop.f32.mrb[0].mxu0
      %v3698 = vadd.f32 0.0, %v3697
      %v3699 = vpop.f32.mrb[0].mxu0
      %v3700 = vadd.f32 0.0, %v3699
      %3701 = vmatprep.mubr.f32.mxu0 0.0
      %3702 = vmatmul.mubr.f32.gmra.mrb[0].mxu0 %v3458
      %v3703 = vpop.f32.mrb[0].mxu0
      %v3704 = vadd.f32 0.0, %v3703
      %v3705 = vpop.f32.mrb[0].mxu0
      %v3706 = vadd.f32 0.0, %v3705
      %3707 = vmatprep.mubr.f32.mxu0 0.0
      %3708 = vmatmul.mubr.f32.gmra.mrb[0].mxu0 %v3461
      %v3709 = vpop.f32.mrb[0].mxu0
      %v3710 = vadd.f32 0.0, %v3709
      %v3711 = vpop.f32.mrb[0].mxu0
      %v3712 = vadd.f32 0.0, %v3711
      %3713 = vmatprep.mubr.f32.mxu0 0.0
      %3714 = vmatmul.mubr.f32.gmra.mrb[0].mxu0 %v3464
      %v3715 = vpop.f32.mrb[0].mxu0
      %v3716 = vadd.f32 0.0, %v3715
      %v3717 = vpop.f32.mrb[0].mxu0
      %v3718 = vadd.f32 0.0, %v3717
      %3719 = vmatprep.mubr.f32.mxu0 0.0
      %3720 = vmatmul.mubr.f32.gmra.mrb[0].mxu0 %v3467
      %v3721 = vpop.f32.mrb[0].mxu0
      %v3722 = vadd.f32 0.0, %v3721
      %v3723 = vpop.f32.mrb[0].mxu0
      %v3724 = vadd.f32 0.0, %v3723
      %3725 = vmatprep.mubr.f32.mxu0 0.0
      %3726 = vmatmul.mubr.f32.gmra.mrb[0].mxu0 %v3470
      %v3727 = vpop.f32.mrb[0].mxu0
      %v3728 = vadd.f32 0.0, %v3727
      %v3729 = vpop.f32.mrb[0].mxu0
      %v3730 = vadd.f32 0.0, %v3729
      %3731 = vmatprep.mubr.f32.mxu0 0.0
      %3732 = vmatmul.mubr.f32.gmra.mrb[0].mxu0 %v3473
      %v3733 = vpop.f32.mrb[0].mxu0
      %v3734 = vadd.f32 0.0, %v3733
      %v3735 = vpop.f32.mrb[0].mxu0
      %v3736 = vadd.f32 0.0, %v3735
      %3737 = vmatprep.mubr.f32.mxu0 0.0
      %3738 = vmatmul.mubr.f32.gmra.mrb[0].mxu0 %v3476
      %v3739 = vpop.f32.mrb[0].mxu0
      %v3740 = vadd.f32 0.0, %v3739
      %v3741 = vpop.f32.mrb[0].mxu0
      %v3742 = vadd.f32 0.0, %v3741
      %3743 = vmatprep.mubr.f32.mxu0 0.0
      %3744 = vmatmul.mubr.f32.gmra.mrb[0].mxu0 %v3479
      %v3745 = vpop.f32.mrb[0].mxu0
      %v3746 = vadd.f32 0.0, %v3745
      %v3747 = vpop.f32.mrb[0].mxu0
      %v3748 = vadd.f32 0.0, %v3747
      %3749 = vmatprep.mubr.f32.mxu0 0.0
      %3750 = vmatmul.mubr.f32.gmra.mrb[0].mxu0 %v3482
      %v3751 = vpop.f32.mrb[0].mxu0
      %v3752 = vadd.f32 0.0, %v3751
      %v3753 = vpop.f32.mrb[0].mxu0
      %v3754 = vadd.f32 0.0, %v3753
      %3755 = vmatprep.mubr.f32.mxu0 0.0
      %3756 = vmatmul.mubr.f32.gmra.mrb[0].mxu0 %v3485
      %v3757 = vpop.f32.mrb[0].mxu0
      %v3758 = vadd.f32 0.0, %v3757
      %v3759 = vpop.f32.mrb[0].mxu0
      %v3760 = vadd.f32 0.0, %v3759
      %3761 = vmatprep.mubr.f32.mxu0 0.0
      %3762 = vmatmul.mubr.f32.gmra.mrb[0].mxu0 %v3488
      %v3763 = vpop.f32.mrb[0].mxu0
      %v3764 = vadd.f32 0.0, %v3763
      %v3765 = vpop.f32.mrb[0].mxu0
      %v3766 = vadd.f32 0.0, %v3765
      %3767 = vmatprep.mubr.f32.mxu0 0.0
      %3768 = vmatmul.mubr.f32.gmra.mrb[0].mxu0 %v3491
      %v3769 = vpop.f32.mrb[0].mxu0
      %v3770 = vadd.f32 0.0, %v3769
      %v3771 = vpop.f32.mrb[0].mxu0
      %v3772 = vadd.f32 0.0, %v3771
      %3773 = vmatprep.mubr.f32.mxu0 0.0
      %3774 = vmatmul.mubr.f32.gmra.mrb[0].mxu0 %v3494
      %v3775 = vpop.f32.mrb[0].mxu0
      %v3776 = vadd.f32 0.0, %v3775
      %v3777 = vpop.f32.mrb[0].mxu0
      %v3778 = vadd.f32 0.0, %v3777
      %3779 = vmatprep.mubr.f32.mxu0 0.0
      %3780 = vmatmul.mubr.f32.gmra.mrb[0].mxu0 %v3497
      %v3781 = vpop.f32.mrb[0].mxu0
      %v3782 = vadd.f32 0.0, %v3781
      %v3783 = vpop.f32.mrb[0].mxu0
      %v3784 = vadd.f32 0.0, %v3783
      %3785 = vmatprep.mubr.f32.mxu0 0.0
      %3786 = vmatmul.mubr.f32.gmra.mrb[0].mxu0 %v3500
      %v3787 = vpop.f32.mrb[0].mxu0
      %v3788 = vadd.f32 0.0, %v3787
      %v3789 = vpop.f32.mrb[0].mxu0
      %v3790 = vadd.f32 0.0, %v3789
      %3791 = vmatprep.mubr.f32.mxu0 0.0
      %3792 = vmatmul.mubr.f32.gmra.mrb[0].mxu0 %v3503
      %v3793 = vpop.f32.mrb[0].mxu0
      %v3794 = vadd.f32 0.0, %v3793
      %v3795 = vpop.f32.mrb[0].mxu0
      %v3796 = vadd.f32 0.0, %v3795
      %3797 = vmatprep.mubr.f32.mxu0 0.0
      %3798 = vmatmul.mubr.f32.gmra.mrb[0].mxu0 %v3506
      %v3799 = vpop.f32.mrb[0].mxu0
      %v3800 = vadd.f32 0.0, %v3799
      %v3801 = vpop.f32.mrb[0].mxu0
      %v3802 = vadd.f32 0.0, %v3801
      %3803 = vmatprep.mubr.f32.mxu0 0.0
      %3804 = vmatmul.mubr.f32.gmra.mrb[0].mxu0 %v3509
      %v3805 = vpop.f32.mrb[0].mxu0
      %v3806 = vadd.f32 0.0, %v3805
      %v3807 = vpop.f32.mrb[0].mxu0
      %v3808 = vadd.f32 0.0, %v3807
      %3809 = vmatprep.mubr.f32.mxu0 0.0
      %3810 = vmatmul.mubr.f32.gmra.mrb[0].mxu0 %v3512
      %v3811 = vpop.f32.mrb[0].mxu0
      %v3812 = vadd.f32 0.0, %v3811
      %v3813 = vpop.f32.mrb[0].mxu0
      %v3814 = vadd.f32 0.0, %v3813
      %3815 = vmatprep.mubr.f32.mxu0 0.0
      %3816 = vmatmul.mubr.f32.gmra.mrb[0].mxu0 %v3515
      %v3817 = vpop.f32.mrb[0].mxu0
      %v3818 = vadd.f32 0.0, %v3817
      %v3819 = vpop.f32.mrb[0].mxu0
      %v3820 = vadd.f32 0.0, %v3819
      %3821 = vmatprep.mubr.f32.mxu0 0.0
      %3822 = vmatmul.mubr.f32.gmra.mrb[0].mxu0 %v3518
      %v3823 = vpop.f32.mrb[0].mxu0
      %v3824 = vadd.f32 0.0, %v3823
      %v3825 = vpop.f32.mrb[0].mxu0
      %v3826 = vadd.f32 0.0, %v3825
      %3827 = vdwg.mxu0
      %v3828 = vmax.f32 %v3668, %v3680
      %v3829 = vmax.f32 %v3674, %v3686
      %v3830 = vmax.f32 %v3828, %v3692
      %v3831 = vmax.f32 %v3829, %v3698
      %v3832 = vmax.f32 %v3830, %v3704
      %v3833 = vmax.f32 %v3831, %v3710
      %v3834 = vmax.f32 %v3832, %v3716
      %v3835 = vmax.f32 %v3833, %v3722
      %v3836 = vmax.f32 %v3834, %v3728
      %v3837 = vmax.f32 %v3835, %v3734
      %v3838 = vmax.f32 %v3836, %v3740
      %v3839 = vmax.f32 %v3837, %v3746
      %v3840 = vmax.f32 %v3838, %v3752
      %v3841 = vmax.f32 %v3839, %v3758
      %v3842 = vmax.f32 %v3840, %v3764
      %v3843 = vmax.f32 %v3841, %v3770
      %v3844 = vmax.f32 %v3842, %v3776
      %v3845 = vmax.f32 %v3843, %v3782
      %v3846 = vmax.f32 %v3844, %v3788
      %v3847 = vmax.f32 %v3845, %v3794
      %v3848 = vmax.f32 %v3846, %v3800
      %v3849 = vmax.f32 %v3847, %v3806
      %v3850 = vmax.f32 %v3848, %v3812
      %v3851 = vmax.f32 %v3849, %v3818
      %v3852 = vmax.f32 %v3850, %v3824
      %v3853 = vmax.f32 %v3852, %v3851
      %v3854 = vrot.slane %v3853, 4
      %v3855 = vmax.f32 %v3853, %v3854
      %v3856 = vrot.slane %v3855, 2
      %v3857 = vmax.f32 %v3855, %v3856
      %v3858 = vrot.slane %v3857, 1
      %v3859 = vmax.f32 %v3857, %v3858
      %v3860 = vsel %vm1273, %v3670, -inf
      %v3861 = vsel %vm1273, %v3676, -inf
      %v3862 = vsel %vm1273, %v3682, -inf
      %v3863 = vmax.f32 %v3860, %v3862
      %v3864 = vsel %vm1273, %v3688, -inf
      %v3865 = vmax.f32 %v3861, %v3864
      %v3866 = vsel %vm1273, %v3694, -inf
      %v3867 = vmax.f32 %v3863, %v3866
      %v3868 = vsel %vm1273, %v3700, -inf
      %v3869 = vmax.f32 %v3865, %v3868
      %v3870 = vsel %vm1273, %v3706, -inf
      %v3871 = vmax.f32 %v3867, %v3870
      %v3872 = vsel %vm1273, %v3712, -inf
      %v3873 = vmax.f32 %v3869, %v3872
      %v3874 = vsel %vm1273, %v3718, -inf
      %v3875 = vmax.f32 %v3871, %v3874
      %v3876 = vsel %vm1273, %v3724, -inf
      %v3877 = vmax.f32 %v3873, %v3876
      %v3878 = vsel %vm1273, %v3730, -inf
      %v3879 = vmax.f32 %v3875, %v3878
      %v3880 = vsel %vm1273, %v3736, -inf
      %v3881 = vmax.f32 %v3877, %v3880
      %v3882 = vsel %vm1273, %v3742, -inf
      %v3883 = vmax.f32 %v3879, %v3882
      %v3884 = vsel %vm1273, %v3748, -inf
      %v3885 = vmax.f32 %v3881, %v3884
      %v3886 = vsel %vm1273, %v3754, -inf
      %v3887 = vmax.f32 %v3883, %v3886
      %v3888 = vsel %vm1273, %v3760, -inf
      %v3889 = vmax.f32 %v3885, %v3888
      %v3890 = vsel %vm1273, %v3766, -inf
      %v3891 = vmax.f32 %v3887, %v3890
      %v3892 = vsel %vm1273, %v3772, -inf
      %v3893 = vmax.f32 %v3889, %v3892
      %v3894 = vsel %vm1273, %v3778, -inf
      %v3895 = vmax.f32 %v3891, %v3894
      %v3896 = vsel %vm1273, %v3784, -inf
      %v3897 = vmax.f32 %v3893, %v3896
      %v3898 = vsel %vm1273, %v3790, -inf
      %v3899 = vmax.f32 %v3895, %v3898
      %v3900 = vsel %vm1273, %v3796, -inf
      %v3901 = vmax.f32 %v3897, %v3900
      %v3902 = vsel %vm1273, %v3802, -inf
      %v3903 = vmax.f32 %v3899, %v3902
      %v3904 = vsel %vm1273, %v3808, -inf
      %v3905 = vmax.f32 %v3901, %v3904
      %v3906 = vsel %vm1273, %v3814, -inf
      %v3907 = vmax.f32 %v3903, %v3906
      %v3908 = vsel %vm1273, %v3820, -inf
      %v3909 = vmax.f32 %v3905, %v3908
      %v3910 = vsel %vm1273, %v3826, -inf
      %v3911 = vmax.f32 %v3907, %v3910
      %v3912 = vmax.f32 %v3911, %v3909
      %v3913 = vrot.slane %v3912, 4
      %v3914 = vmax.f32 %v3912, %v3913
      %v3915 = vrot.slane %v3914, 2
      %v3916 = vmax.f32 %v3914, %v3915
      %v3917 = vrot.slane %v3916, 1
      %v3918 = vmax.f32 %v3916, %v3917
      %v3919 = vsub.f32 %v3668, %v3859
      %v3920 = vsub.f32 %v3670, %v3918
      %v3921 = vsub.f32 %v3674, %v3859
      %v3922 = vsub.f32 %v3676, %v3918
      %v3923 = vsub.f32 %v3680, %v3859
      %v3924 = vsub.f32 %v3682, %v3918
      %v3925 = vsub.f32 %v3686, %v3859
      %v3926 = vsub.f32 %v3688, %v3918
      %v3927 = vsub.f32 %v3692, %v3859
      %v3928 = vsub.f32 %v3694, %v3918
      %v3929 = vsub.f32 %v3698, %v3859
      %v3930 = vsub.f32 %v3700, %v3918
      %v3931 = vsub.f32 %v3704, %v3859
      %v3932 = vsub.f32 %v3706, %v3918
      %v3933 = vsub.f32 %v3710, %v3859
      %v3934 = vsub.f32 %v3712, %v3918
      %v3935 = vsub.f32 %v3716, %v3859
      %v3936 = vsub.f32 %v3718, %v3918
      %v3937 = vsub.f32 %v3722, %v3859
      %v3938 = vsub.f32 %v3724, %v3918
      %v3939 = vsub.f32 %v3728, %v3859
      %v3940 = vsub.f32 %v3730, %v3918
      %v3941 = vsub.f32 %v3734, %v3859
      %v3942 = vsub.f32 %v3736, %v3918
      %v3943 = vsub.f32 %v3740, %v3859
      %v3944 = vsub.f32 %v3742, %v3918
      %v3945 = vsub.f32 %v3746, %v3859
      %v3946 = vsub.f32 %v3748, %v3918
      %v3947 = vsub.f32 %v3752, %v3859
      %v3948 = vsub.f32 %v3754, %v3918
      %v3949 = vsub.f32 %v3758, %v3859
      %v3950 = vsub.f32 %v3760, %v3918
      %v3951 = vsub.f32 %v3764, %v3859
      %v3952 = vsub.f32 %v3766, %v3918
      %v3953 = vsub.f32 %v3770, %v3859
      %v3954 = vsub.f32 %v3772, %v3918
      %v3955 = vsub.f32 %v3776, %v3859
      %v3956 = vsub.f32 %v3778, %v3918
      %v3957 = vsub.f32 %v3782, %v3859
      %v3958 = vsub.f32 %v3784, %v3918
      %v3959 = vsub.f32 %v3788, %v3859
      %v3960 = vsub.f32 %v3790, %v3918
      %v3961 = vsub.f32 %v3794, %v3859
      %v3962 = vsub.f32 %v3796, %v3918
      %v3963 = vsub.f32 %v3800, %v3859
      %v3964 = vsub.f32 %v3802, %v3918
      %v3965 = vsub.f32 %v3806, %v3859
      %v3966 = vsub.f32 %v3808, %v3918
      %v3967 = vsub.f32 %v3812, %v3859
      %v3968 = vsub.f32 %v3814, %v3918
      %v3969 = vsub.f32 %v3818, %v3859
      %v3970 = vsub.f32 %v3820, %v3918
      %v3971 = vsub.f32 %v3824, %v3859
      %v3972 = vsub.f32 %v3826, %v3918
      %v3973 = vmul.f32 %v3919, 1.442695
      %v3974 = vpow.pop %v3973
      %v3975 = vmul.f32 %v3920, 1.442695
      %v3976 = vpow.pop %v3975
      %v3977 = vmul.f32 %v3921, 1.442695
      %v3978 = vpow.pop %v3977
      %v3979 = vmul.f32 %v3922, 1.442695
      %v3980 = vpow.pop %v3979
      %v3981 = vmul.f32 %v3923, 1.442695
      %v3982 = vpow.pop %v3981
      %v3983 = vmul.f32 %v3924, 1.442695
      %v3984 = vpow.pop %v3983
      %v3985 = vmul.f32 %v3925, 1.442695
      %v3986 = vpow.pop %v3985
      %v3987 = vmul.f32 %v3926, 1.442695
      %v3988 = vpow.pop %v3987
      %v3989 = vmul.f32 %v3927, 1.442695
      %v3990 = vpow.pop %v3989
      %v3991 = vmul.f32 %v3928, 1.442695
      %v3992 = vpow.pop %v3991
      %v3993 = vmul.f32 %v3929, 1.442695
      %v3994 = vpow.pop %v3993
      %v3995 = vmul.f32 %v3930, 1.442695
      %v3996 = vpow.pop %v3995
      %v3997 = vmul.f32 %v3931, 1.442695
      %v3998 = vpow.pop %v3997
      %v3999 = vmul.f32 %v3932, 1.442695
      %v4000 = vpow.pop %v3999
      %v4001 = vmul.f32 %v3933, 1.442695
      %v4002 = vpow.pop %v4001
      %v4003 = vmul.f32 %v3934, 1.442695
      %v4004 = vpow.pop %v4003
      %v4005 = vmul.f32 %v3935, 1.442695
      %v4006 = vpow.pop %v4005
      %v4007 = vmul.f32 %v3936, 1.442695
      %v4008 = vpow.pop %v4007
      %v4009 = vmul.f32 %v3937, 1.442695
      %v4010 = vpow.pop %v4009
      %v4011 = vmul.f32 %v3938, 1.442695
      %v4012 = vpow.pop %v4011
      %v4013 = vmul.f32 %v3939, 1.442695
      %v4014 = vpow.pop %v4013
      %v4015 = vmul.f32 %v3940, 1.442695
      %v4016 = vpow.pop %v4015
      %v4017 = vmul.f32 %v3941, 1.442695
      %v4018 = vpow.pop %v4017
      %v4019 = vmul.f32 %v3942, 1.442695
      %v4020 = vpow.pop %v4019
      %v4021 = vmul.f32 %v3943, 1.442695
      %v4022 = vpow.pop %v4021
      %v4023 = vmul.f32 %v3944, 1.442695
      %v4024 = vpow.pop %v4023
      %v4025 = vmul.f32 %v3945, 1.442695
      %v4026 = vpow.pop %v4025
      %v4027 = vmul.f32 %v3946, 1.442695
      %v4028 = vpow.pop %v4027
      %v4029 = vmul.f32 %v3947, 1.442695
      %v4030 = vpow.pop %v4029
      %v4031 = vmul.f32 %v3948, 1.442695
      %v4032 = vpow.pop %v4031
      %v4033 = vmul.f32 %v3949, 1.442695
      %v4034 = vpow.pop %v4033
      %v4035 = vmul.f32 %v3950, 1.442695
      %v4036 = vpow.pop %v4035
      %v4037 = vmul.f32 %v3951, 1.442695
      %v4038 = vpow.pop %v4037
      %v4039 = vmul.f32 %v3952, 1.442695
      %v4040 = vpow.pop %v4039
      %v4041 = vmul.f32 %v3953, 1.442695
      %v4042 = vpow.pop %v4041
      %v4043 = vmul.f32 %v3954, 1.442695
      %v4044 = vpow.pop %v4043
      %v4045 = vmul.f32 %v3955, 1.442695
      %v4046 = vpow.pop %v4045
      %v4047 = vmul.f32 %v3956, 1.442695
      %v4048 = vpow.pop %v4047
      %v4049 = vmul.f32 %v3957, 1.442695
      %v4050 = vpow.pop %v4049
      %v4051 = vmul.f32 %v3958, 1.442695
      %v4052 = vpow.pop %v4051
      %v4053 = vmul.f32 %v3959, 1.442695
      %v4054 = vpow.pop %v4053
      %v4055 = vmul.f32 %v3960, 1.442695
      %v4056 = vpow.pop %v4055
      %v4057 = vmul.f32 %v3961, 1.442695
      %v4058 = vpow.pop %v4057
      %v4059 = vmul.f32 %v3962, 1.442695
      %v4060 = vpow.pop %v4059
      %v4061 = vmul.f32 %v3963, 1.442695
      %v4062 = vpow.pop %v4061
      %v4063 = vmul.f32 %v3964, 1.442695
      %v4064 = vpow.pop %v4063
      %v4065 = vmul.f32 %v3965, 1.442695
      %v4066 = vpow.pop %v4065
      %v4067 = vmul.f32 %v3966, 1.442695
      %v4068 = vpow.pop %v4067
      %v4069 = vmul.f32 %v3967, 1.442695
      %v4070 = vpow.pop %v4069
      %v4071 = vmul.f32 %v3968, 1.442695
      %v4072 = vpow.pop %v4071
      %v4073 = vmul.f32 %v3969, 1.442695
      %v4074 = vpow.pop %v4073
      %v4075 = vmul.f32 %v3970, 1.442695
      %v4076 = vpow.pop %v4075
      %v4077 = vmul.f32 %v3971, 1.442695
      %v4078 = vpow.pop %v4077
      %v4079 = vmul.f32 %v3972, 1.442695
      %v4080 = vpow.pop %v4079
      %v4081 = vld [vmem:[%s18] sm:$0xff]
      %v4082 = vld [vmem:[%s18 + $0x8] sm:$0xff]
      %v4083 = vld [vmem:[%s18 + $0x10] sm:$0xff]
      %v4084 = vld [vmem:[%s18 + $0x18] sm:$0xff]
      %v4085 = vld [vmem:[%s18 + $0x20] sm:$0xff]
      %v4086 = vld [vmem:[%s18 + $0x28] sm:$0xff]
      %v4087 = vld [vmem:[%s18 + $0x30] sm:$0x7]
      %v4088 = vld [vmem:[%s18 + $0x38] sm:$0x7]
      %v4090 = vsel %vm1273, %v4082, 0
      %v4093 = vsel %vm1273, %v4084, 0
      %v4096 = vsel %vm1273, %v4086, 0
      %v4099 = vsel %vm1273, %v4088, 0
      %4101 = vmatprep.subr.mxu0 %v3976
      %4102 = vmatpush1.msra.mxu0 %v3974
      %4103 = vmatprep.subr.mxu0 %v3980
      %4104 = vmatpush1.msra.mxu0 %v3978
      %4105 = vmatprep.subr.mxu0 %v3984
      %4106 = vmatpush1.msra.mxu0 %v3982
      %4107 = vmatprep.subr.mxu0 %v3988
      %4108 = vmatpush1.msra.mxu0 %v3986
      %4109 = vmatprep.subr.mxu0 %v3992
      %4110 = vmatpush1.msra.mxu0 %v3990
      %4111 = vmatprep.subr.mxu0 %v3996
      %4112 = vmatpush1.msra.mxu0 %v3994
      %4113 = vmatprep.subr.mxu0 %v4000
      %4114 = vmatpush1.msra.mxu0 %v3998
      %4115 = vmatprep.subr.mxu0 %v4004
      %4116 = vmatpush1.msra.mxu0 %v4002
      %4117 = vmatprep.subr.mxu0 %v4008
      %4118 = vmatpush1.msra.mxu0 %v4006
      %4119 = vmatprep.subr.mxu0 %v4012
      %4120 = vmatpush1.msra.mxu0 %v4010
      %4121 = vmatprep.subr.mxu0 %v4016
      %4122 = vmatpush1.msra.mxu0 %v4014
      %4123 = vmatprep.subr.mxu0 %v4020
      %4124 = vmatpush1.msra.mxu0 %v4018
      %4125 = vmatprep.subr.mxu0 %v4024
      %4126 = vmatpush1.msra.mxu0 %v4022
      %4127 = vmatprep.subr.mxu0 %v4028
      %4128 = vmatpush1.msra.mxu0 %v4026
      %4129 = vmatprep.subr.mxu0 %v4032
      %4130 = vmatpush1.msra.mxu0 %v4030
      %4131 = vmatprep.subr.mxu0 %v4036
      %4132 = vmatpush1.msra.mxu0 %v4034
      %4133 = vmatprep.subr.mxu0 %v4040
      %4134 = vmatpush1.msra.mxu0 %v4038
      %4135 = vmatprep.subr.mxu0 %v4044
      %4136 = vmatpush1.msra.mxu0 %v4042
      %4137 = vmatprep.subr.mxu0 %v4048
      %4138 = vmatpush1.msra.mxu0 %v4046
      %4139 = vmatprep.subr.mxu0 %v4052
      %4140 = vmatpush1.msra.mxu0 %v4050
      %4141 = vmatprep.subr.mxu0 %v4056
      %4142 = vmatpush1.msra.mxu0 %v4054
      %4143 = vmatprep.subr.mxu0 %v4060
      %4144 = vmatpush1.msra.mxu0 %v4058
      %4145 = vmatprep.subr.mxu0 %v4064
      %4146 = vmatpush1.msra.mxu0 %v4062
      %4147 = vmatprep.subr.mxu0 %v4068
      %4148 = vmatpush1.msra.mxu0 %v4066
      %4149 = vmatprep.subr.mxu0 %v4072
      %4150 = vmatpush1.msra.mxu0 %v4070
      %4151 = vmatprep.subr.mxu0 %v4076
      %4152 = vmatpush1.msra.mxu0 %v4074
      %4153 = vmatprep.subr.mxu0 %v4080
      %4154 = vmatpush1.msra.mxu0 %v4078
      %4155 = vmatprep.subr.mxu0 0.0
      %4156 = vmatpush1.msra.mxu0 0.0
      %4157 = vmatprep.subr.mxu0 0.0
      %4158 = vmatpush1.msra.mxu0 0.0
      %4159 = vmatprep.subr.mxu0 0.0
      %4160 = vmatpush1.msra.mxu0 0.0
      %4161 = vmatprep.subr.mxu0 0.0
      %4162 = vmatpush1.msra.mxu0 0.0
      %4163 = vmatprep.subr.mxu0 0.0
      %4164 = vmatpush1.msra.mxu0 0.0
      %4165 = vmatprep.mubr.f32.mxu0 %v4090
      %4166 = vmatmul.mubr.f32.gmra.mrb[0].mxu0 %v4081
      %v4167 = vpop.f32.mrb[0].mxu0
      %v4168 = vadd.f32 0.0, %v4167
      %v4169 = vpop.f32.mrb[0].mxu0
      %v4170 = vadd.f32 0.0, %v4169
      %4171 = vmatprep.mubr.f32.mxu0 %v4093
      %4172 = vmatmul.mubr.f32.gmra.mrb[0].mxu0 %v4083
      %v4173 = vpop.f32.mrb[0].mxu0
      %v4174 = vadd.f32 0.0, %v4173
      %v4175 = vpop.f32.mrb[0].mxu0
      %v4176 = vadd.f32 0.0, %v4175
      %4177 = vmatprep.mubr.f32.mxu0 %v4096
      %4178 = vmatmul.mubr.f32.gmra.mrb[0].mxu0 %v4085
      %v4179 = vpop.f32.mrb[0].mxu0
      %v4180 = vadd.f32 0.0, %v4179
      %v4181 = vpop.f32.mrb[0].mxu0
      %v4182 = vadd.f32 0.0, %v4181
      %4183 = vmatprep.mubr.f32.mxu0 %v4099
      %4184 = vmatmul.mubr.f32.gmra.mrb[0].mxu0 %v4087
      %v4185 = vpop.f32.mrb[0].mxu0
      %v4186 = vadd.f32 0.0, %v4185
      %v4187 = vpop.f32.mrb[0].mxu0
      %v4188 = vadd.f32 0.0, %v4187
      %4189 = vdwg.mxu0
      %v4190 = vmax.f32 %v4168, 1e-30
      %v4191 = vmax.f32 %v4170, 1e-30
      %v4192 = vmax.f32 %v4174, 1e-30
      %v4193 = vmax.f32 %v4176, 1e-30
      %v4194 = vmax.f32 %v4180, 1e-30
      %v4195 = vmax.f32 %v4182, 1e-30
      %v4196 = vmax.f32 %v4186, 1e-30
      %v4197 = vmax.f32 %v4188, 1e-30
      %v4198 = vrcp.pop %v4190
      %v4199 = vrcp.pop %v4191
      %v4200 = vrcp.pop %v4192
      %v4201 = vrcp.pop %v4193
      %v4202 = vrcp.pop %v4194
      %v4203 = vrcp.pop %v4195
      %v4204 = vrcp.pop %v4196
      %v4205 = vrcp.pop %v4197
      %v4206 = vld [vmem:[%s17] sm:$0xff]
      %v4207 = vld [vmem:[%s17 + $0x8] sm:$0xff]
      %v4208 = vld [vmem:[%s17 + $0x10] sm:$0xff]
      %v4209 = vld [vmem:[%s17 + $0x18] sm:$0xff]
      %v4210 = vld [vmem:[%s17 + $0x20] sm:$0xff]
      %v4211 = vld [vmem:[%s17 + $0x28] sm:$0xff]
      %v4212 = vld [vmem:[%s17 + $0x30] sm:$0xff]
      %v4213 = vld [vmem:[%s17 + $0x38] sm:$0xff]
      %v4214 = vld [vmem:[%s17 + $0x40] sm:$0xff]
      %v4215 = vld [vmem:[%s17 + $0x48] sm:$0xff]
      %v4216 = vld [vmem:[%s17 + $0x50] sm:$0xff]
      %v4217 = vld [vmem:[%s17 + $0x58] sm:$0xff]
      %v4218 = vld [vmem:[%s17 + $0x60] sm:$0xff]
      %v4219 = vld [vmem:[%s17 + $0x68] sm:$0xff]
      %v4220 = vld [vmem:[%s17 + $0x70] sm:$0xff]
      %v4221 = vld [vmem:[%s17 + $0x78] sm:$0xff]
      %v4222 = vld [vmem:[%s17 + $0x80] sm:$0xff]
      %v4223 = vld [vmem:[%s17 + $0x88] sm:$0xff]
      %v4224 = vld [vmem:[%s17 + $0x90] sm:$0xff]
      %v4225 = vld [vmem:[%s17 + $0x98] sm:$0xff]
      %v4226 = vld [vmem:[%s17 + $0xa0] sm:$0xff]
      %v4227 = vld [vmem:[%s17 + $0xa8] sm:$0xff]
      %v4228 = vld [vmem:[%s17 + $0xb0] sm:$0xff]
      %v4229 = vld [vmem:[%s17 + $0xb8] sm:$0xff]
      %v4230 = vld [vmem:[%s17 + $0xc0] sm:$0xff]
      %v4231 = vld [vmem:[%s17 + $0xc8] sm:$0xff]
      %v4232 = vld [vmem:[%s17 + $0xd0] sm:$0xff]
      %vm4233 = vcmask 220160
      %v4235 = vsel %vm4233, %v4206, 0
      %v4238 = vsel %vm4233, %v4207, 0
      %v4241 = vsel %vm4233, %v4208, 0
      %v4244 = vsel %vm4233, %v4209, 0
      %v4247 = vsel %vm4233, %v4210, 0
      %v4250 = vsel %vm4233, %v4211, 0
      %v4253 = vsel %vm4233, %v4212, 0
      %v4256 = vsel %vm4233, %v4213, 0
      %v4259 = vsel %vm4233, %v4214, 0
      %v4262 = vsel %vm4233, %v4215, 0
      %v4265 = vsel %vm4233, %v4216, 0
      %v4268 = vsel %vm4233, %v4217, 0
      %v4271 = vsel %vm4233, %v4218, 0
      %v4274 = vsel %vm4233, %v4219, 0
      %v4277 = vsel %vm4233, %v4220, 0
      %v4280 = vsel %vm4233, %v4221, 0
      %v4283 = vsel %vm4233, %v4222, 0
      %v4286 = vsel %vm4233, %v4223, 0
      %v4289 = vsel %vm4233, %v4224, 0
      %v4292 = vsel %vm4233, %v4225, 0
      %v4295 = vsel %vm4233, %v4226, 0
      %v4298 = vsel %vm4233, %v4227, 0
      %v4301 = vsel %vm4233, %v4228, 0
      %v4304 = vsel %vm4233, %v4229, 0
      %v4307 = vsel %vm4233, %v4230, 0
      %v4310 = vsel %vm4233, %v4231, 0
      %v4313 = vsel %vm4233, %v4232, 0
      %vm4315 = vcmask 1042432
      %v4317 = vsel %vm4315, %v4204, 0
      %v4320 = vsel %vm4315, %v4205, 0
      %4322 = vmatprep.subr.mxu0 %v4199
      %4323 = vmatpush1.msra.mxu0 %v4198
      %4324 = vmatprep.subr.mxu0 %v4201
      %4325 = vmatpush1.msra.mxu0 %v4200
      %4326 = vmatprep.subr.mxu0 %v4203
      %4327 = vmatpush1.msra.mxu0 %v4202
      %4328 = vmatprep.subr.mxu0 %v4320
      %4329 = vmatpush1.msra.mxu0 %v4317
      %4330 = vmatprep.subr.mxu0 0.0
      %4331 = vmatpush1.msra.mxu0 0.0
      %4332 = vmatprep.subr.mxu0 0.0
      %4333 = vmatpush1.msra.mxu0 0.0
      %4334 = vmatprep.subr.mxu0 0.0
      %4335 = vmatpush1.msra.mxu0 0.0
      %4336 = vmatprep.subr.mxu0 0.0
      %4337 = vmatpush1.msra.mxu0 0.0
      %4338 = vmatprep.subr.mxu0 0.0
      %4339 = vmatpush1.msra.mxu0 0.0
      %4340 = vmatprep.subr.mxu0 0.0
      %4341 = vmatpush1.msra.mxu0 0.0
      %4342 = vmatprep.subr.mxu0 0.0
      %4343 = vmatpush1.msra.mxu0 0.0
      %4344 = vmatprep.subr.mxu0 0.0
      %4345 = vmatpush1.msra.mxu0 0.0
      %4346 = vmatprep.subr.mxu0 0.0
      %4347 = vmatpush1.msra.mxu0 0.0
      %4348 = vmatprep.subr.mxu0 0.0
      %4349 = vmatpush1.msra.mxu0 0.0
      %4350 = vmatprep.subr.mxu0 0.0
      %4351 = vmatpush1.msra.mxu0 0.0
      %4352 = vmatprep.subr.mxu0 0.0
      %4353 = vmatpush1.msra.mxu0 0.0
      %4354 = vmatprep.subr.mxu0 0.0
      %4355 = vmatpush1.msra.mxu0 0.0
      %4356 = vmatprep.subr.mxu0 0.0
      %4357 = vmatpush1.msra.mxu0 0.0
      %4358 = vmatprep.subr.mxu0 0.0
      %4359 = vmatpush1.msra.mxu0 0.0
      %4360 = vmatprep.subr.mxu0 0.0
      %4361 = vmatpush1.msra.mxu0 0.0
      %4362 = vmatprep.subr.mxu0 0.0
      %4363 = vmatpush1.msra.mxu0 0.0
      %4364 = vmatprep.subr.mxu0 0.0
      %4365 = vmatpush1.msra.mxu0 0.0
      %4366 = vmatprep.subr.mxu0 0.0
      %4367 = vmatpush1.msra.mxu0 0.0
      %4368 = vmatprep.subr.mxu0 0.0
      %4369 = vmatpush1.msra.mxu0 0.0
      %4370 = vmatprep.subr.mxu0 0.0
      %4371 = vmatpush1.msra.mxu0 0.0
      %4372 = vmatprep.subr.mxu0 0.0
      %4373 = vmatpush1.msra.mxu0 0.0
      %4374 = vmatprep.subr.mxu0 0.0
      %4375 = vmatpush1.msra.mxu0 0.0
      %4376 = vmatprep.subr.mxu0 0.0
      %4377 = vmatpush1.msra.mxu0 0.0
      %4378 = vmatprep.subr.mxu0 0.0
      %4379 = vmatpush1.msra.mxu0 0.0
      %4380 = vmatprep.subr.mxu0 0.0
      %4381 = vmatpush1.msra.mxu0 0.0
      %4382 = vmatprep.subr.mxu0 0.0
      %4383 = vmatpush1.msra.mxu0 0.0
      %4384 = vmatprep.subr.mxu0 0.0
      %4385 = vmatpush1.msra.mxu0 0.0
      %4386 = vmatprep.mubr.f32.mxu0 0.0
      %4387 = vmatmul.mubr.f32.gmra.mrb[0].mxu0 %v4235
      %v4388 = vpop.f32.mrb[0].mxu0
      %v4389 = vadd.f32 0.0, %v4388
      %v4390 = vpop.f32.mrb[0].mxu0
      %v4391 = vadd.f32 0.0, %v4390
      %4392 = vmatprep.mubr.f32.mxu0 0.0
      %4393 = vmatmul.mubr.f32.gmra.mrb[0].mxu0 %v4238
      %v4394 = vpop.f32.mrb[0].mxu0
      %v4395 = vadd.f32 0.0, %v4394
      %v4396 = vpop.f32.mrb[0].mxu0
      %v4397 = vadd.f32 0.0, %v4396
      %4398 = vmatprep.mubr.f32.mxu0 0.0
      %4399 = vmatmul.mubr.f32.gmra.mrb[0].mxu0 %v4241
      %v4400 = vpop.f32.mrb[0].mxu0
      %v4401 = vadd.f32 0.0, %v4400
      %v4402 = vpop.f32.mrb[0].mxu0
      %v4403 = vadd.f32 0.0, %v4402
      %4404 = vmatprep.mubr.f32.mxu0 0.0
      %4405 = vmatmul.mubr.f32.gmra.mrb[0].mxu0 %v4244
      %v4406 = vpop.f32.mrb[0].mxu0
      %v4407 = vadd.f32 0.0, %v4406
      %v4408 = vpop.f32.mrb[0].mxu0
      %v4409 = vadd.f32 0.0, %v4408
      %4410 = vmatprep.mubr.f32.mxu0 0.0
      %4411 = vmatmul.mubr.f32.gmra.mrb[0].mxu0 %v4247
      %v4412 = vpop.f32.mrb[0].mxu0
      %v4413 = vadd.f32 0.0, %v4412
      %v4414 = vpop.f32.mrb[0].mxu0
      %v4415 = vadd.f32 0.0, %v4414
      %4416 = vmatprep.mubr.f32.mxu0 0.0
      %4417 = vmatmul.mubr.f32.gmra.mrb[0].mxu0 %v4250
      %v4418 = vpop.f32.mrb[0].mxu0
      %v4419 = vadd.f32 0.0, %v4418
      %v4420 = vpop.f32.mrb[0].mxu0
      %v4421 = vadd.f32 0.0, %v4420
      %4422 = vmatprep.mubr.f32.mxu0 0.0
      %4423 = vmatmul.mubr.f32.gmra.mrb[0].mxu0 %v4253
      %v4424 = vpop.f32.mrb[0].mxu0
      %v4425 = vadd.f32 0.0, %v4424
      %v4426 = vpop.f32.mrb[0].mxu0
      %v4427 = vadd.f32 0.0, %v4426
      %4428 = vmatprep.mubr.f32.mxu0 0.0
      %4429 = vmatmul.mubr.f32.gmra.mrb[0].mxu0 %v4256
      %v4430 = vpop.f32.mrb[0].mxu0
      %v4431 = vadd.f32 0.0, %v4430
      %v4432 = vpop.f32.mrb[0].mxu0
      %v4433 = vadd.f32 0.0, %v4432
      %4434 = vmatprep.mubr.f32.mxu0 0.0
      %4435 = vmatmul.mubr.f32.gmra.mrb[0].mxu0 %v4259
      %v4436 = vpop.f32.mrb[0].mxu0
      %v4437 = vadd.f32 0.0, %v4436
      %v4438 = vpop.f32.mrb[0].mxu0
      %v4439 = vadd.f32 0.0, %v4438
      %4440 = vmatprep.mubr.f32.mxu0 0.0
      %4441 = vmatmul.mubr.f32.gmra.mrb[0].mxu0 %v4262
      %v4442 = vpop.f32.mrb[0].mxu0
      %v4443 = vadd.f32 0.0, %v4442
      %v4444 = vpop.f32.mrb[0].mxu0
      %v4445 = vadd.f32 0.0, %v4444
      %4446 = vmatprep.mubr.f32.mxu0 0.0
      %4447 = vmatmul.mubr.f32.gmra.mrb[0].mxu0 %v4265
      %v4448 = vpop.f32.mrb[0].mxu0
      %v4449 = vadd.f32 0.0, %v4448
      %v4450 = vpop.f32.mrb[0].mxu0
      %v4451 = vadd.f32 0.0, %v4450
      %4452 = vmatprep.mubr.f32.mxu0 0.0
      %4453 = vmatmul.mubr.f32.gmra.mrb[0].mxu0 %v4268
      %v4454 = vpop.f32.mrb[0].mxu0
      %v4455 = vadd.f32 0.0, %v4454
      %v4456 = vpop.f32.mrb[0].mxu0
      %v4457 = vadd.f32 0.0, %v4456
      %4458 = vmatprep.mubr.f32.mxu0 0.0
      %4459 = vmatmul.mubr.f32.gmra.mrb[0].mxu0 %v4271
      %v4460 = vpop.f32.mrb[0].mxu0
      %v4461 = vadd.f32 0.0, %v4460
      %v4462 = vpop.f32.mrb[0].mxu0
      %v4463 = vadd.f32 0.0, %v4462
      %4464 = vmatprep.mubr.f32.mxu0 0.0
      %4465 = vmatmul.mubr.f32.gmra.mrb[0].mxu0 %v4274
      %v4466 = vpop.f32.mrb[0].mxu0
      %v4467 = vadd.f32 0.0, %v4466
      %v4468 = vpop.f32.mrb[0].mxu0
      %v4469 = vadd.f32 0.0, %v4468
      %4470 = vmatprep.mubr.f32.mxu0 0.0
      %4471 = vmatmul.mubr.f32.gmra.mrb[0].mxu0 %v4277
      %v4472 = vpop.f32.mrb[0].mxu0
      %v4473 = vadd.f32 0.0, %v4472
      %v4474 = vpop.f32.mrb[0].mxu0
      %v4475 = vadd.f32 0.0, %v4474
      %4476 = vmatprep.mubr.f32.mxu0 0.0
      %4477 = vmatmul.mubr.f32.gmra.mrb[0].mxu0 %v4280
      %v4478 = vpop.f32.mrb[0].mxu0
      %v4479 = vadd.f32 0.0, %v4478
      %v4480 = vpop.f32.mrb[0].mxu0
      %v4481 = vadd.f32 0.0, %v4480
      %4482 = vmatprep.mubr.f32.mxu0 0.0
      %4483 = vmatmul.mubr.f32.gmra.mrb[0].mxu0 %v4283
      %v4484 = vpop.f32.mrb[0].mxu0
      %v4485 = vadd.f32 0.0, %v4484
      %v4486 = vpop.f32.mrb[0].mxu0
      %v4487 = vadd.f32 0.0, %v4486
      %4488 = vmatprep.mubr.f32.mxu0 0.0
      %4489 = vmatmul.mubr.f32.gmra.mrb[0].mxu0 %v4286
      %v4490 = vpop.f32.mrb[0].mxu0
      %v4491 = vadd.f32 0.0, %v4490
      %v4492 = vpop.f32.mrb[0].mxu0
      %v4493 = vadd.f32 0.0, %v4492
      %4494 = vmatprep.mubr.f32.mxu0 0.0
      %4495 = vmatmul.mubr.f32.gmra.mrb[0].mxu0 %v4289
      %v4496 = vpop.f32.mrb[0].mxu0
      %v4497 = vadd.f32 0.0, %v4496
      %v4498 = vpop.f32.mrb[0].mxu0
      %v4499 = vadd.f32 0.0, %v4498
      %4500 = vmatprep.mubr.f32.mxu0 0.0
      %4501 = vmatmul.mubr.f32.gmra.mrb[0].mxu0 %v4292
      %v4502 = vpop.f32.mrb[0].mxu0
      %v4503 = vadd.f32 0.0, %v4502
      %v4504 = vpop.f32.mrb[0].mxu0
      %v4505 = vadd.f32 0.0, %v4504
      %4506 = vmatprep.mubr.f32.mxu0 0.0
      %4507 = vmatmul.mubr.f32.gmra.mrb[0].mxu0 %v4295
      %v4508 = vpop.f32.mrb[0].mxu0
      %v4509 = vadd.f32 0.0, %v4508
      %v4510 = vpop.f32.mrb[0].mxu0
      %v4511 = vadd.f32 0.0, %v4510
      %4512 = vmatprep.mubr.f32.mxu0 0.0
      %4513 = vmatmul.mubr.f32.gmra.mrb[0].mxu0 %v4298
      %v4514 = vpop.f32.mrb[0].mxu0
      %v4515 = vadd.f32 0.0, %v4514
      %v4516 = vpop.f32.mrb[0].mxu0
      %v4517 = vadd.f32 0.0, %v4516
      %4518 = vmatprep.mubr.f32.mxu0 0.0
      %4519 = vmatmul.mubr.f32.gmra.mrb[0].mxu0 %v4301
      %v4520 = vpop.f32.mrb[0].mxu0
      %v4521 = vadd.f32 0.0, %v4520
      %v4522 = vpop.f32.mrb[0].mxu0
      %v4523 = vadd.f32 0.0, %v4522
      %4524 = vmatprep.mubr.f32.mxu0 0.0
      %4525 = vmatmul.mubr.f32.gmra.mrb[0].mxu0 %v4304
      %v4526 = vpop.f32.mrb[0].mxu0
      %v4527 = vadd.f32 0.0, %v4526
      %v4528 = vpop.f32.mrb[0].mxu0
      %v4529 = vadd.f32 0.0, %v4528
      %4530 = vmatprep.mubr.f32.mxu0 0.0
      %4531 = vmatmul.mubr.f32.gmra.mrb[0].mxu0 %v4307
      %v4532 = vpop.f32.mrb[0].mxu0
      %v4533 = vadd.f32 0.0, %v4532
      %v4534 = vpop.f32.mrb[0].mxu0
      %v4535 = vadd.f32 0.0, %v4534
      %4536 = vmatprep.mubr.f32.mxu0 0.0
      %4537 = vmatmul.mubr.f32.gmra.mrb[0].mxu0 %v4310
      %v4538 = vpop.f32.mrb[0].mxu0
      %v4539 = vadd.f32 0.0, %v4538
      %v4540 = vpop.f32.mrb[0].mxu0
      %v4541 = vadd.f32 0.0, %v4540
      %4542 = vmatprep.mubr.f32.mxu0 0.0
      %4543 = vmatmul.mubr.f32.gmra.mrb[0].mxu0 %v4313
      %v4544 = vpop.f32.mrb[0].mxu0
      %v4545 = vadd.f32 0.0, %v4544
      %v4546 = vpop.f32.mrb[0].mxu0
      %v4547 = vadd.f32 0.0, %v4546
      %4548 = vdwg.mxu0
      %v4549 = vmul.f32 %v3974, %v4389
      %v4550 = vmul.f32 %v3976, %v4391
      %v4551 = vmul.f32 %v3978, %v4395
      %v4552 = vmul.f32 %v3980, %v4397
      %v4553 = vmul.f32 %v3982, %v4401
      %v4554 = vmul.f32 %v3984, %v4403
      %v4555 = vmul.f32 %v3986, %v4407
      %v4556 = vmul.f32 %v3988, %v4409
      %v4557 = vmul.f32 %v3990, %v4413
      %v4558 = vmul.f32 %v3992, %v4415
      %v4559 = vmul.f32 %v3994, %v4419
      %v4560 = vmul.f32 %v3996, %v4421
      %v4561 = vmul.f32 %v3998, %v4425
      %v4562 = vmul.f32 %v4000, %v4427
      %v4563 = vmul.f32 %v4002, %v4431
      %v4564 = vmul.f32 %v4004, %v4433
      %v4565 = vmul.f32 %v4006, %v4437
      %v4566 = vmul.f32 %v4008, %v4439
      %v4567 = vmul.f32 %v4010, %v4443
      %v4568 = vmul.f32 %v4012, %v4445
      %v4569 = vmul.f32 %v4014, %v4449
      %v4570 = vmul.f32 %v4016, %v4451
      %v4571 = vmul.f32 %v4018, %v4455
      %v4572 = vmul.f32 %v4020, %v4457
      %v4573 = vmul.f32 %v4022, %v4461
      %v4574 = vmul.f32 %v4024, %v4463
      %v4575 = vmul.f32 %v4026, %v4467
      %v4576 = vmul.f32 %v4028, %v4469
      %v4577 = vmul.f32 %v4030, %v4473
      %v4578 = vmul.f32 %v4032, %v4475
      %v4579 = vmul.f32 %v4034, %v4479
      %v4580 = vmul.f32 %v4036, %v4481
      %v4581 = vmul.f32 %v4038, %v4485
      %v4582 = vmul.f32 %v4040, %v4487
      %v4583 = vmul.f32 %v4042, %v4491
      %v4584 = vmul.f32 %v4044, %v4493
      %v4585 = vmul.f32 %v4046, %v4497
      %v4586 = vmul.f32 %v4048, %v4499
      %v4587 = vmul.f32 %v4050, %v4503
      %v4588 = vmul.f32 %v4052, %v4505
      %v4589 = vmul.f32 %v4054, %v4509
      %v4590 = vmul.f32 %v4056, %v4511
      %v4591 = vmul.f32 %v4058, %v4515
      %v4592 = vmul.f32 %v4060, %v4517
      %v4593 = vmul.f32 %v4062, %v4521
      %v4594 = vmul.f32 %v4064, %v4523
      %v4595 = vmul.f32 %v4066, %v4527
      %v4596 = vmul.f32 %v4068, %v4529
      %v4597 = vmul.f32 %v4070, %v4533
      %v4598 = vmul.f32 %v4072, %v4535
      %v4599 = vmul.f32 %v4074, %v4539
      %v4600 = vmul.f32 %v4076, %v4541
      %v4601 = vmul.f32 %v4078, %v4545
      %v4602 = vmul.f32 %v4080, %v4547
      %v4604 = vsel %vm1273, %v4550, 0
      %v4607 = vsel %vm1273, %v4552, 0
      %v4610 = vsel %vm1273, %v4554, 0
      %v4613 = vsel %vm1273, %v4556, 0
      %v4616 = vsel %vm1273, %v4558, 0
      %v4619 = vsel %vm1273, %v4560, 0
      %v4622 = vsel %vm1273, %v4562, 0
      %v4625 = vsel %vm1273, %v4564, 0
      %v4628 = vsel %vm1273, %v4566, 0
      %v4631 = vsel %vm1273, %v4568, 0
      %v4634 = vsel %vm1273, %v4570, 0
      %v4637 = vsel %vm1273, %v4572, 0
      %v4640 = vsel %vm1273, %v4574, 0
      %v4643 = vsel %vm1273, %v4576, 0
      %v4646 = vsel %vm1273, %v4578, 0
      %v4649 = vsel %vm1273, %v4580, 0
      %v4652 = vsel %vm1273, %v4582, 0
      %v4655 = vsel %vm1273, %v4584, 0
      %v4658 = vsel %vm1273, %v4586, 0
      %v4661 = vsel %vm1273, %v4588, 0
      %v4664 = vsel %vm1273, %v4590, 0
      %v4667 = vsel %vm1273, %v4592, 0
      %v4670 = vsel %vm1273, %v4594, 0
      %v4673 = vsel %vm1273, %v4596, 0
      %v4676 = vsel %vm1273, %v4598, 0
      %v4679 = vsel %vm1273, %v4600, 0
      %v4682 = vsel %vm1273, %v4602, 0
      %4684 = vmatprep.subr.mxu0 0.0
      %4685 = vmatpush1.msra.mxu0 %v4206
      %4686 = vmatprep.subr.mxu0 0.0
      %4687 = vmatpush1.msra.mxu0 %v4207
      %4688 = vmatprep.subr.mxu0 0.0
      %4689 = vmatpush1.msra.mxu0 %v4208
      %4690 = vmatprep.subr.mxu0 0.0
      %4691 = vmatpush1.msra.mxu0 %v4209
      %4692 = vmatprep.subr.mxu0 0.0
      %4693 = vmatpush1.msra.mxu0 %v4210
      %4694 = vmatprep.subr.mxu0 0.0
      %4695 = vmatpush1.msra.mxu0 %v4211
      %4696 = vmatprep.subr.mxu0 0.0
      %4697 = vmatpush1.msra.mxu0 %v4212
      %4698 = vmatprep.subr.mxu0 0.0
      %4699 = vmatpush1.msra.mxu0 %v4213
      %4700 = vmatprep.subr.mxu0 0.0
      %4701 = vmatpush1.msra.mxu0 %v4214
      %4702 = vmatprep.subr.mxu0 0.0
      %4703 = vmatpush1.msra.mxu0 %v4215
      %4704 = vmatprep.subr.mxu0 0.0
      %4705 = vmatpush1.msra.mxu0 %v4216
      %4706 = vmatprep.subr.mxu0 0.0
      %4707 = vmatpush1.msra.mxu0 %v4217
      %4708 = vmatprep.subr.mxu0 0.0
      %4709 = vmatpush1.msra.mxu0 %v4218
      %4710 = vmatprep.subr.mxu0 0.0
      %4711 = vmatpush1.msra.mxu0 %v4219
      %4712 = vmatprep.subr.mxu0 0.0
      %4713 = vmatpush1.msra.mxu0 %v4220
      %4714 = vmatprep.subr.mxu0 0.0
      %4715 = vmatpush1.msra.mxu0 %v4221
      %4716 = vmatprep.subr.mxu0 0.0
      %4717 = vmatpush1.msra.mxu0 %v4222
      %4718 = vmatprep.subr.mxu0 0.0
      %4719 = vmatpush1.msra.mxu0 %v4223
      %4720 = vmatprep.subr.mxu0 0.0
      %4721 = vmatpush1.msra.mxu0 %v4224
      %4722 = vmatprep.subr.mxu0 0.0
      %4723 = vmatpush1.msra.mxu0 %v4225
      %4724 = vmatprep.subr.mxu0 0.0
      %4725 = vmatpush1.msra.mxu0 %v4226
      %4726 = vmatprep.subr.mxu0 0.0
      %4727 = vmatpush1.msra.mxu0 %v4227
      %4728 = vmatprep.subr.mxu0 0.0
      %4729 = vmatpush1.msra.mxu0 %v4228
      %4730 = vmatprep.subr.mxu0 0.0
      %4731 = vmatpush1.msra.mxu0 %v4229
      %4732 = vmatprep.subr.mxu0 0.0
      %4733 = vmatpush1.msra.mxu0 %v4230
      %4734 = vmatprep.subr.mxu0 0.0
      %4735 = vmatpush1.msra.mxu0 %v4231
      %4736 = vmatprep.subr.mxu0 0.0
      %4737 = vmatpush1.msra.mxu0 %v4232
      %4738 = vmatprep.subr.mxu0 0.0
      %4739 = vmatpush1.msra.mxu0 0.0
      %4740 = vmatprep.subr.mxu0 0.0
      %4741 = vmatpush1.msra.mxu0 0.0
      %4742 = vmatprep.subr.mxu0 0.0
      %4743 = vmatpush1.msra.mxu0 0.0
      %4744 = vmatprep.subr.mxu0 0.0
      %4745 = vmatpush1.msra.mxu0 0.0
      %4746 = vmatprep.subr.mxu0 0.0
      %4747 = vmatpush1.msra.mxu0 0.0
      %4748 = vmatprep.mubr.f32.mxu0 %v4604
      %4749 = vmatmul.mubr.f32.gmra.mrb[0].mxu0 %v4549
      %v4750 = vpop.f32.mrb[0].mxu0
      %v4751 = vadd.f32 0.0, %v4750
      %v4752 = vpop.f32.mrb[0].mxu0
      %4753 = vmatprep.mubr.f32.mxu0 %v4607
      %4754 = vmatmul.mubr.f32.gmra.mrb[0].mxu0 %v4551
      %v4755 = vpop.f32.mrb[0].mxu0
      %v4756 = vadd.f32 0.0, %v4755
      %v4757 = vpop.f32.mrb[0].mxu0
      %4758 = vmatprep.mubr.f32.mxu0 %v4610
      %4759 = vmatmul.mubr.f32.gmra.mrb[0].mxu0 %v4553
      %v4760 = vpop.f32.mrb[0].mxu0
      %v4761 = vadd.f32 0.0, %v4760
      %v4762 = vpop.f32.mrb[0].mxu0
      %4763 = vmatprep.mubr.f32.mxu0 %v4613
      %4764 = vmatmul.mubr.f32.gmra.mrb[0].mxu0 %v4555
      %v4765 = vpop.f32.mrb[0].mxu0
      %v4766 = vadd.f32 0.0, %v4765
      %v4767 = vpop.f32.mrb[0].mxu0
      %4768 = vmatprep.mubr.f32.mxu0 %v4616
      %4769 = vmatmul.mubr.f32.gmra.mrb[0].mxu0 %v4557
      %v4770 = vpop.f32.mrb[0].mxu0
      %v4771 = vadd.f32 0.0, %v4770
      %v4772 = vpop.f32.mrb[0].mxu0
      %4773 = vmatprep.mubr.f32.mxu0 %v4619
      %4774 = vmatmul.mubr.f32.gmra.mrb[0].mxu0 %v4559
      %v4775 = vpop.f32.mrb[0].mxu0
      %v4776 = vadd.f32 0.0, %v4775
      %v4777 = vpop.f32.mrb[0].mxu0
      %4778 = vmatprep.mubr.f32.mxu0 %v4622
      %4779 = vmatmul.mubr.f32.gmra.mrb[0].mxu0 %v4561
      %v4780 = vpop.f32.mrb[0].mxu0
      %v4781 = vadd.f32 0.0, %v4780
      %v4782 = vpop.f32.mrb[0].mxu0
      %4783 = vmatprep.mubr.f32.mxu0 %v4625
      %4784 = vmatmul.mubr.f32.gmra.mrb[0].mxu0 %v4563
      %v4785 = vpop.f32.mrb[0].mxu0
      %v4786 = vadd.f32 0.0, %v4785
      %v4787 = vpop.f32.mrb[0].mxu0
      %4788 = vmatprep.mubr.f32.mxu0 %v4628
      %4789 = vmatmul.mubr.f32.gmra.mrb[0].mxu0 %v4565
      %v4790 = vpop.f32.mrb[0].mxu0
      %v4791 = vadd.f32 0.0, %v4790
      %v4792 = vpop.f32.mrb[0].mxu0
      %4793 = vmatprep.mubr.f32.mxu0 %v4631
      %4794 = vmatmul.mubr.f32.gmra.mrb[0].mxu0 %v4567
      %v4795 = vpop.f32.mrb[0].mxu0
      %v4796 = vadd.f32 0.0, %v4795
      %v4797 = vpop.f32.mrb[0].mxu0
      %4798 = vmatprep.mubr.f32.mxu0 %v4634
      %4799 = vmatmul.mubr.f32.gmra.mrb[0].mxu0 %v4569
      %v4800 = vpop.f32.mrb[0].mxu0
      %v4801 = vadd.f32 0.0, %v4800
      %v4802 = vpop.f32.mrb[0].mxu0
      %4803 = vmatprep.mubr.f32.mxu0 %v4637
      %4804 = vmatmul.mubr.f32.gmra.mrb[0].mxu0 %v4571
      %v4805 = vpop.f32.mrb[0].mxu0
      %v4806 = vadd.f32 0.0, %v4805
      %v4807 = vpop.f32.mrb[0].mxu0
      %4808 = vmatprep.mubr.f32.mxu0 %v4640
      %4809 = vmatmul.mubr.f32.gmra.mrb[0].mxu0 %v4573
      %v4810 = vpop.f32.mrb[0].mxu0
      %v4811 = vadd.f32 0.0, %v4810
      %v4812 = vpop.f32.mrb[0].mxu0
      %4813 = vmatprep.mubr.f32.mxu0 %v4643
      %4814 = vmatmul.mubr.f32.gmra.mrb[0].mxu0 %v4575
      %v4815 = vpop.f32.mrb[0].mxu0
      %v4816 = vadd.f32 0.0, %v4815
      %v4817 = vpop.f32.mrb[0].mxu0
      %4818 = vmatprep.mubr.f32.mxu0 %v4646
      %4819 = vmatmul.mubr.f32.gmra.mrb[0].mxu0 %v4577
      %v4820 = vpop.f32.mrb[0].mxu0
      %v4821 = vadd.f32 0.0, %v4820
      %v4822 = vpop.f32.mrb[0].mxu0
      %4823 = vmatprep.mubr.f32.mxu0 %v4649
      %4824 = vmatmul.mubr.f32.gmra.mrb[0].mxu0 %v4579
      %v4825 = vpop.f32.mrb[0].mxu0
      %v4826 = vadd.f32 0.0, %v4825
      %v4827 = vpop.f32.mrb[0].mxu0
      %4828 = vmatprep.mubr.f32.mxu0 %v4652
      %4829 = vmatmul.mubr.f32.gmra.mrb[0].mxu0 %v4581
      %v4830 = vpop.f32.mrb[0].mxu0
      %v4831 = vadd.f32 0.0, %v4830
      %v4832 = vpop.f32.mrb[0].mxu0
      %4833 = vmatprep.mubr.f32.mxu0 %v4655
      %4834 = vmatmul.mubr.f32.gmra.mrb[0].mxu0 %v4583
      %v4835 = vpop.f32.mrb[0].mxu0
      %v4836 = vadd.f32 0.0, %v4835
      %v4837 = vpop.f32.mrb[0].mxu0
      %4838 = vmatprep.mubr.f32.mxu0 %v4658
      %4839 = vmatmul.mubr.f32.gmra.mrb[0].mxu0 %v4585
      %v4840 = vpop.f32.mrb[0].mxu0
      %v4841 = vadd.f32 0.0, %v4840
      %v4842 = vpop.f32.mrb[0].mxu0
      %4843 = vmatprep.mubr.f32.mxu0 %v4661
      %4844 = vmatmul.mubr.f32.gmra.mrb[0].mxu0 %v4587
      %v4845 = vpop.f32.mrb[0].mxu0
      %v4846 = vadd.f32 0.0, %v4845
      %v4847 = vpop.f32.mrb[0].mxu0
      %4848 = vmatprep.mubr.f32.mxu0 %v4664
      %4849 = vmatmul.mubr.f32.gmra.mrb[0].mxu0 %v4589
      %v4850 = vpop.f32.mrb[0].mxu0
      %v4851 = vadd.f32 0.0, %v4850
      %v4852 = vpop.f32.mrb[0].mxu0
      %4853 = vmatprep.mubr.f32.mxu0 %v4667
      %4854 = vmatmul.mubr.f32.gmra.mrb[0].mxu0 %v4591
      %v4855 = vpop.f32.mrb[0].mxu0
      %v4856 = vadd.f32 0.0, %v4855
      %v4857 = vpop.f32.mrb[0].mxu0
      %4858 = vmatprep.mubr.f32.mxu0 %v4670
      %4859 = vmatmul.mubr.f32.gmra.mrb[0].mxu0 %v4593
      %v4860 = vpop.f32.mrb[0].mxu0
      %v4861 = vadd.f32 0.0, %v4860
      %v4862 = vpop.f32.mrb[0].mxu0
      %4863 = vmatprep.mubr.f32.mxu0 %v4673
      %4864 = vmatmul.mubr.f32.gmra.mrb[0].mxu0 %v4595
      %v4865 = vpop.f32.mrb[0].mxu0
      %v4866 = vadd.f32 0.0, %v4865
      %v4867 = vpop.f32.mrb[0].mxu0
      %4868 = vmatprep.mubr.f32.mxu0 %v4676
      %4869 = vmatmul.mubr.f32.gmra.mrb[0].mxu0 %v4597
      %v4870 = vpop.f32.mrb[0].mxu0
      %v4871 = vadd.f32 0.0, %v4870
      %v4872 = vpop.f32.mrb[0].mxu0
      %4873 = vmatprep.mubr.f32.mxu0 %v4679
      %4874 = vmatmul.mubr.f32.gmra.mrb[0].mxu0 %v4599
      %v4875 = vpop.f32.mrb[0].mxu0
      %v4876 = vadd.f32 0.0, %v4875
      %v4877 = vpop.f32.mrb[0].mxu0
      %4878 = vmatprep.mubr.f32.mxu0 %v4682
      %4879 = vmatmul.mubr.f32.gmra.mrb[0].mxu0 %v4601
      %v4880 = vpop.f32.mrb[0].mxu0
      %v4881 = vadd.f32 0.0, %v4880
      %v4882 = vpop.f32.mrb[0].mxu0
      %4883 = vdwg.mxu0
      %v4884 = vmul.f32 %v4751, 0.125
      %v4885 = vmul.f32 %v4756, 0.125
      %v4886 = vmul.f32 %v4761, 0.125
      %v4887 = vmul.f32 %v4766, 0.125
      %v4888 = vmul.f32 %v4771, 0.125
      %v4889 = vmul.f32 %v4776, 0.125
      %v4890 = vmul.f32 %v4781, 0.125
      %v4891 = vmul.f32 %v4786, 0.125
      %v4892 = vmul.f32 %v4791, 0.125
      %v4893 = vmul.f32 %v4796, 0.125
      %v4894 = vmul.f32 %v4801, 0.125
      %v4895 = vmul.f32 %v4806, 0.125
      %v4896 = vmul.f32 %v4811, 0.125
      %v4897 = vmul.f32 %v4816, 0.125
      %v4898 = vmul.f32 %v4821, 0.125
      %v4899 = vmul.f32 %v4826, 0.125
      %v4900 = vmul.f32 %v4831, 0.125
      %v4901 = vmul.f32 %v4836, 0.125
      %v4902 = vmul.f32 %v4841, 0.125
      %v4903 = vmul.f32 %v4846, 0.125
      %v4904 = vmul.f32 %v4851, 0.125
      %v4905 = vmul.f32 %v4856, 0.125
      %v4906 = vmul.f32 %v4861, 0.125
      %v4907 = vmul.f32 %v4866, 0.125
      %v4908 = vmul.f32 %v4871, 0.125
      %v4909 = vmul.f32 %v4876, 0.125
      %v4910 = vmul.f32 %v4881, 0.125
      %4911 = vst.msk [vmem:[#allocation4] sm:$0xff] %vm4233, %v4884
      %4912 = vst.msk [vmem:[#allocation4 + $0x8] sm:$0xff] %vm4233, %v4885
      %4913 = vst.msk [vmem:[#allocation4 + $0x10] sm:$0xff] %vm4233, %v4886
      %4914 = vst.msk [vmem:[#allocation4 + $0x18] sm:$0xff] %vm4233, %v4887
      %4915 = vst.msk [vmem:[#allocation4 + $0x20] sm:$0xff] %vm4233, %v4888
      %4916 = vst.msk [vmem:[#allocation4 + $0x28] sm:$0xff] %vm4233, %v4889
      %4917 = vst.msk [vmem:[#allocation4 + $0x30] sm:$0xff] %vm4233, %v4890
      %4918 = vst.msk [vmem:[#allocation4 + $0x38] sm:$0xff] %vm4233, %v4891
      %4919 = vst.msk [vmem:[#allocation4 + $0x40] sm:$0xff] %vm4233, %v4892
      %4920 = vst.msk [vmem:[#allocation4 + $0x48] sm:$0xff] %vm4233, %v4893
      %4921 = vst.msk [vmem:[#allocation4 + $0x50] sm:$0xff] %vm4233, %v4894
      %4922 = vst.msk [vmem:[#allocation4 + $0x58] sm:$0xff] %vm4233, %v4895
      %4923 = vst.msk [vmem:[#allocation4 + $0x60] sm:$0xff] %vm4233, %v4896
      %4924 = vst.msk [vmem:[#allocation4 + $0x68] sm:$0xff] %vm4233, %v4897
      %4925 = vst.msk [vmem:[#allocation4 + $0x70] sm:$0xff] %vm4233, %v4898
      %4926 = vst.msk [vmem:[#allocation4 + $0x78] sm:$0xff] %vm4233, %v4899
      %4927 = vst.msk [vmem:[#allocation4 + $0x80] sm:$0xff] %vm4233, %v4900
      %4928 = vst.msk [vmem:[#allocation4 + $0x88] sm:$0xff] %vm4233, %v4901
      %4929 = vst.msk [vmem:[#allocation4 + $0x90] sm:$0xff] %vm4233, %v4902
      %4930 = vst.msk [vmem:[#allocation4 + $0x98] sm:$0xff] %vm4233, %v4903
      %4931 = vst.msk [vmem:[#allocation4 + $0xa0] sm:$0xff] %vm4233, %v4904
      %4932 = vst.msk [vmem:[#allocation4 + $0xa8] sm:$0xff] %vm4233, %v4905
      %4933 = vst.msk [vmem:[#allocation4 + $0xb0] sm:$0xff] %vm4233, %v4906
      %4934 = vst.msk [vmem:[#allocation4 + $0xb8] sm:$0xff] %vm4233, %v4907
      %4935 = vst.msk [vmem:[#allocation4 + $0xc0] sm:$0xff] %vm4233, %v4908
      %4936 = vst.msk [vmem:[#allocation4 + $0xc8] sm:$0xff] %vm4233, %v4909
      %4937 = vst.msk [vmem:[#allocation4 + $0xd0] sm:$0xff] %vm4233, %v4910
      loop: start=0, step=1, limit=27
      $region105: #{mefarg_forward.1} parent=103 // loop_pre_header
        _
      $region106: #{mefarg_forward.1} parent=103 // loop_header
        %s4939 = sphi 0, %s4943
        %p4940 = scmp.ge.s32.totalorder %s4939, 27
      $region107: #{mefarg_forward.1} parent=103 // loop_header_branch
        %4942 = sbr.rel (%p4940) target = $region111
      $region108: #{mefarg_forward.1} parent=103 // loop_body
        %s4944 = smul.u32 %s4939, 8
        %s4945 = scalar_lea.vmem [#allocation4], %s4944
        %v4946 = vld [vmem:[%s4945] sm:$0xff]
        %s4947 = scalar_lea.vmem [#allocation3], %s4944
        %v4948 = vld [vmem:[%s4947] sm:$0xff]
        %4949 = vxpose.xlu0.b32.start [1/16] %v4946, 128
        %4950 = vxpose.xlu0.b32.cont [2/16] 0.0, 128
        %4951 = vxpose.xlu0.b32.cont [3/16] 0.0, 128
        %4952 = vxpose.xlu0.b32.cont [4/16] 0.0, 128
        %4953 = vxpose.xlu0.b32.cont [5/16] 0.0, 128
        %4954 = vxpose.xlu0.b32.cont [6/16] 0.0, 128
        %4955 = vxpose.xlu0.b32.cont [7/16] 0.0, 128
        %4956 = vxpose.xlu0.b32.cont [8/16] 0.0, 128
        %4957 = vxpose.xlu0.b32.cont [9/16] 0.0, 128
        %4958 = vxpose.xlu0.b32.cont [10/16] 0.0, 128
        %4959 = vxpose.xlu0.b32.cont [11/16] 0.0, 128
        %4960 = vxpose.xlu0.b32.cont [12/16] 0.0, 128
        %4961 = vxpose.xlu0.b32.cont [13/16] 0.0, 128
        %4962 = vxpose.xlu0.b32.cont [14/16] 0.0, 128
        %4963 = vxpose.xlu0.b32.cont [15/16] 0.0, 128
        %4964 = vxpose.xlu0.b32.end [16/16] 0.0, 128
        %v4965 = vpop.trf.xlu0
        %v4966 = vpop.trf.xlu0
        %v4967 = vpop.trf.xlu0
        %v4968 = vpop.trf.xlu0
        %v4969 = vpop.trf.xlu0
        %v4970 = vpop.trf.xlu0
        %v4971 = vpop.trf.xlu0
        %v4972 = vpop.trf.xlu0
        %v4973 = vpop.trf.xlu0
        %v4974 = vpop.trf.xlu0
        %v4975 = vpop.trf.xlu0
        %v4976 = vpop.trf.xlu0
        %v4977 = vpop.trf.xlu0
        %v4978 = vpop.trf.xlu0
        %v4979 = vpop.trf.xlu0
        %v4980 = vpop.trf.xlu0
        %v4982 = vsel %vm2119, %v4965, 0
        %v4985 = vsel %vm2119, %v4966, 0
        %v4988 = vsel %vm2119, %v4967, 0
        %v4991 = vsel %vm2119, %v4968, 0
        %4993 = vmatprep.subr.mxu0 0.0
        %4994 = vmatpush1.msra.mxu0 %v4948
        %4995 = vmatprep.subr.mxu0 0.0
        %4996 = vmatpush1.msra.mxu0 0.0
        %4997 = vmatprep.subr.mxu0 0.0
        %4998 = vmatpush1.msra.mxu0 0.0
        %4999 = vmatprep.subr.mxu0 0.0
        %5000 = vmatpush1.msra.mxu0 0.0
        %5001 = vmatprep.subr.mxu0 0.0
        %5002 = vmatpush1.msra.mxu0 0.0
        %5003 = vmatprep.subr.mxu0 0.0
        %5004 = vmatpush1.msra.mxu0 0.0
        %5005 = vmatprep.subr.mxu0 0.0
        %5006 = vmatpush1.msra.mxu0 0.0
        %5007 = vmatprep.subr.mxu0 0.0
        %5008 = vmatpush1.msra.mxu0 0.0
        %5009 = vmatprep.subr.mxu0 0.0
        %5010 = vmatpush1.msra.mxu0 0.0
        %5011 = vmatprep.subr.mxu0 0.0
        %5012 = vmatpush1.msra.mxu0 0.0
        %5013 = vmatprep.subr.mxu0 0.0
        %5014 = vmatpush1.msra.mxu0 0.0
        %5015 = vmatprep.subr.mxu0 0.0
        %5016 = vmatpush1.msra.mxu0 0.0
        %5017 = vmatprep.subr.mxu0 0.0
        %5018 = vmatpush1.msra.mxu0 0.0
        %5019 = vmatprep.subr.mxu0 0.0
        %5020 = vmatpush1.msra.mxu0 0.0
        %5021 = vmatprep.subr.mxu0 0.0
        %5022 = vmatpush1.msra.mxu0 0.0
        %5023 = vmatprep.subr.mxu0 0.0
        %5024 = vmatpush1.msra.mxu0 0.0
        %5025 = vmatprep.subr.mxu0 0.0
        %5026 = vmatpush1.msra.mxu0 0.0
        %5027 = vmatprep.subr.mxu0 0.0
        %5028 = vmatpush1.msra.mxu0 0.0
        %5029 = vmatprep.subr.mxu0 0.0
        %5030 = vmatpush1.msra.mxu0 0.0
        %5031 = vmatprep.subr.mxu0 0.0
        %5032 = vmatpush1.msra.mxu0 0.0
        %5033 = vmatprep.subr.mxu0 0.0
        %5034 = vmatpush1.msra.mxu0 0.0
        %5035 = vmatprep.subr.mxu0 0.0
        %5036 = vmatpush1.msra.mxu0 0.0
        %5037 = vmatprep.subr.mxu0 0.0
        %5038 = vmatpush1.msra.mxu0 0.0
        %5039 = vmatprep.subr.mxu0 0.0
        %5040 = vmatpush1.msra.mxu0 0.0
        %5041 = vmatprep.subr.mxu0 0.0
        %5042 = vmatpush1.msra.mxu0 0.0
        %5043 = vmatprep.subr.mxu0 0.0
        %5044 = vmatpush1.msra.mxu0 0.0
        %5045 = vmatprep.subr.mxu0 0.0
        %5046 = vmatpush1.msra.mxu0 0.0
        %5047 = vmatprep.subr.mxu0 0.0
        %5048 = vmatpush1.msra.mxu0 0.0
        %5049 = vmatprep.subr.mxu0 0.0
        %5050 = vmatpush1.msra.mxu0 0.0
        %5051 = vmatprep.subr.mxu0 0.0
        %5052 = vmatpush1.msra.mxu0 0.0
        %5053 = vmatprep.subr.mxu0 0.0
        %5054 = vmatpush1.msra.mxu0 0.0
        %5055 = vmatprep.subr.mxu0 0.0
        %5056 = vmatpush1.msra.mxu0 0.0
        %5057 = vmatprep.mubr.f32.mxu0 0.0
        %5058 = vmatmul.mubr.f32.gmra.mrb[0].mxu0 %v4982
        %v5059 = vpop.f32.mrb[0].mxu0
        %v5060 = vadd.f32 0.0, %v5059
        %v5061 = vpop.f32.mrb[0].mxu0
        %5062 = vmatprep.mubr.f32.mxu0 0.0
        %5063 = vmatmul.mubr.f32.gmra.mrb[0].mxu0 %v4985
        %v5064 = vpop.f32.mrb[0].mxu0
        %v5065 = vadd.f32 0.0, %v5064
        %v5066 = vpop.f32.mrb[0].mxu0
        %5067 = vmatprep.mubr.f32.mxu0 0.0
        %5068 = vmatmul.mubr.f32.gmra.mrb[0].mxu0 %v4988
        %v5069 = vpop.f32.mrb[0].mxu0
        %v5070 = vadd.f32 0.0, %v5069
        %v5071 = vpop.f32.mrb[0].mxu0
        %5072 = vmatprep.mubr.f32.mxu0 0.0
        %5073 = vmatmul.mubr.f32.gmra.mrb[0].mxu0 %v4991
        %v5074 = vpop.f32.mrb[0].mxu0
        %v5075 = vadd.f32 0.0, %v5074
        %v5076 = vpop.f32.mrb[0].mxu0
        %5077 = vdwg.mxu0
        %s5078 = smul.u32 %s4939, 32
        %s5079 = scalar_lea.vmem %s19, %s5078
        %v5080 = vld [vmem:[%s5079] sm:$0xff]
        %v5081 = vld [vmem:[%s5079 + $0x8] sm:$0xff]
        %v5082 = vld [vmem:[%s5079 + $0x10] sm:$0xff]
        %v5083 = vld [vmem:[%s5079 + $0x18] sm:$0x7]
        %v5084 = vmul.f32 %v5060, %v5080
        %v5085 = vmul.f32 %v5065, %v5081
        %v5086 = vmul.f32 %v5070, %v5082
        %v5087 = vmul.f32 %v5075, %v5083
        %s5088 = scalar_lea.vmem %s20, %s5078
        %v5089 = vld [vmem:[%s5088] sm:$0xff]
        %v5090 = vld [vmem:[%s5088 + $0x8] sm:$0xff]
        %v5091 = vld [vmem:[%s5088 + $0x10] sm:$0xff]
        %v5092 = vld [vmem:[%s5088 + $0x18] sm:$0x7]
        %v5093 = vadd.f32 %v5084, %v5089
        %v5094 = vadd.f32 %v5085, %v5090
        %v5095 = vadd.f32 %v5086, %v5091
        %v5096 = vadd.f32 %v5087, %v5092
        %s5097 = scalar_lea.vmem %s693, %s5078
        %5098 = vst.msk [vmem:[%s5097] sm:$0xff] %vm850, %v5093
        %5099 = vst.msk [vmem:[%s5097 + $0x8] sm:$0xff] %vm850, %v5094
        %5100 = vst.msk [vmem:[%s5097 + $0x10] sm:$0xff] %vm850, %v5095
        %5101 = vst.msk [vmem:[%s5097 + $0x18] sm:$0x7] %vm1378, %v5096
      $region109: #{mefarg_forward.1} parent=103 // loop_footer
        %s4943 = sadd.s32 1, %s4939
      $region110: #{mefarg_forward.1} parent=103 // loop_footer_branch
        %4938 = sbr.rel target = $region106
      $region111: #{mefarg_forward.1} parent=103 // loop_exit
        _
      %p5102 = scmp.lt.s32.totalorder %s34, 1
      %s5103 = scalar_select %p5102, %s34, 1
      %s5104 = smul.addr %s5103, 4
      %s5105 = smul.addr %s5104, 8
      %s5106 = scalar_lea.vmem %s21, %s5105
      %p5107 = scmp.lt.s32.totalorder %s34, 1
      %s5108 = scalar_select %p5107, %s34, 1
      %s5109 = smul.addr %s5108, 108
      %s5110 = smul.addr %s5109, 8
      %s5111 = scalar_lea.vmem %s22, %s5110
      // Predicated region
      $region112: #{mefarg_forward.1} parent=103 // pred_check
        %p5112 = pneg %p498
      $region113: #{mefarg_forward.1} parent=103 // pred_check_branch
        %5114 = sbr.rel (%p5112) target = $region115
      $region114: #{mefarg_forward.1} parent=103 // pred_region
        _
      $region115: #{mefarg_forward.1} parent=103 // pred_fallthru
        _
      // Predicated region
      $region116: #{mefarg_forward.1} parent=103 // pred_check
        %p5115 = pneg %p524
      $region117: #{mefarg_forward.1} parent=103 // pred_check_branch
        %5117 = sbr.rel (%p5115) target = $region119
      $region118: #{mefarg_forward.1} parent=103 // pred_region
        _
      $region119: #{mefarg_forward.1} parent=103 // pred_fallthru
        _
    $region104: #{mefarg_forward.1} parent=5 // pred_fallthru
      _
    %p5118 = scmp.le.s32.totalorder 2, %s29
    // Predicated region
    $region120: #{mefarg_forward.1} parent=5 // pred_check
      %p5119 = pneg %p5118
    $region121: #{mefarg_forward.1} parent=5 // pred_check_branch
      %5121 = sbr.rel (%p5119) target = $region123
    $region122: #{mefarg_forward.1} parent=5 // pred_region
      %s5122 = ssub.s32 %s29, 2
      // Predicated region
      $region124: #{mefarg_forward.1} parent=122 // pred_check
        %p5123 = pneg %p504
      $region125: #{mefarg_forward.1} parent=122 // pred_check_branch
        %5125 = sbr.rel (%p5123) target = $region127
      $region126: #{mefarg_forward.1} parent=122 // pred_region
        %p5126 = scmp.lt.s32.totalorder %s35, 1
        %s5127 = scalar_select %p5126, %s35, 1
        %s5128 = smul.addr %s5127, 4
        %s5129 = smul.addr %s5128, 8
        %s5130 = scalar_lea.vmem %s21, %s5129
      $region127: #{mefarg_forward.1} parent=122 // pred_fallthru
        _
      // Predicated region
      $region128: #{mefarg_forward.1} parent=122 // pred_check
        %p5131 = pneg %p530
      $region129: #{mefarg_forward.1} parent=122 // pred_check_branch
        %5133 = sbr.rel (%p5131) target = $region131
      $region130: #{mefarg_forward.1} parent=122 // pred_region
        %p5134 = scmp.lt.s32.totalorder %s35, 1
        %s5135 = scalar_select %p5134, %s35, 1
        %s5136 = smul.addr %s5135, 108
        %s5137 = smul.addr %s5136, 8
        %s5138 = scalar_lea.vmem %s22, %s5137
      $region131: #{mefarg_forward.1} parent=122 // pred_fallthru
        _
    $region123: #{mefarg_forward.1} parent=5 // pred_fallthru
      _
  $region6: #{mefarg_forward.1} parent=0 // loop_footer
    %s33 = sadd.s32 1, %s29
  $region7: #{mefarg_forward.1} parent=0 // loop_footer_branch
    %28 = sbr.rel target = $region3
  $region8: #{mefarg_forward.1} parent=0 // loop_exit
    _

</llo_original>
